<compile_context>
chip_gen: v5e
topology: v5e:2x2
jax: 0.10.0
libtpu: 0.0.40
codegen_flags: <defaults>
</compile_context>

<pallas_src>
import jax
import jax.numpy as jnp
from jax.experimental import pallas as pl
from jax.experimental.pallas import tpu as pltpu


_NEG_SLOPE = 0.1  # LeakyReLU slope used by the KPConv UnaryBlock


def _leaky_relu(y):
    # Elementwise path stays in f32 (v5e VPU/EUP have no native bf16 support).
    return jnp.where(y >= 0.0, y, _NEG_SLOPE * y)


# ----------------------------------------------------------------------------
# Fused Pallas kernel: whole per-point MLP for one tile of points.
# ----------------------------------------------------------------------------
def _pids_mlp_kernel(x_ref,
                     we1_ref, be1_ref,
                     we2_ref, be2_ref,
                     wd_ref, bd_ref,
                     wh_ref, bh_ref,
                     wc_ref, bc_ref,
                     o_ref):
    bf16 = jnp.bfloat16
    x = x_ref[...].astype(jnp.float32)

    # encoder block 0: F_IN -> E1   (UnaryBlock: Linear + bias + LeakyReLU)
    h1 = _leaky_relu(
        jnp.dot(x.astype(bf16), we1_ref[...],
                preferred_element_type=jnp.float32) + be1_ref[...])
    h1_bf = h1.astype(bf16)

    # encoder block 1: E1 -> E2     (the skip tensor h1 stays live in VMEM/vregs)
    h2 = _leaky_relu(
        jnp.dot(h1_bf, we2_ref[...],
                preferred_element_type=jnp.float32) + be2_ref[...])

    # decoder block 0: concat(h2, h1) @ Wd  -- one lane-concat + ONE MXU row-pass
    cat = jnp.concatenate([h2, h1], axis=-1).astype(bf16)
    d = _leaky_relu(
        jnp.dot(cat, wd_ref[...],
                preferred_element_type=jnp.float32) + bd_ref[...])

    # head_mlp: D1 -> head_conv_dim  (UnaryBlock, no_relu=False)
    h = _leaky_relu(
        jnp.dot(d.astype(bf16), wh_ref[...],
                preferred_element_type=jnp.float32) + bh_ref[...])

    # config.dropout == 0.0 -> the F.dropout branch is skipped (matches guard)

    # head_softmax: head_conv_dim -> C  (no relu).  The weight/bias are lane-
    # padded to 128 for the matmul only; the HBM store is narrow (num_classes).
    logits = jnp.dot(h.astype(bf16), wc_ref[...],
                     preferred_element_type=jnp.float32) + bc_ref[...]
    o_ref[...] = logits[:, : o_ref.shape[-1]].astype(o_ref.dtype)


# ----------------------------------------------------------------------------
# Wrapper: weight prep (bf16 cast, class-dim pad), pallas_call with point grid.
# ----------------------------------------------------------------------------
def pids_segmentation_forward(x, params, *, tile_n=2048):
    """Forward pass mirroring PIDS_Segmentation.forward (point-wise path).

    tile_n is a sweep parameter: bigger tiles amortize grid-step / MXU weight
    staging overhead; keep grid >= 2 steps on v7x so both TensorCores get work.
    """
    N, f_in = x.shape
    we1, be1 = params["encoder"][0]
    we2, be2 = params["encoder"][1]
    wd, bd = params["decoder"][0]
    wh, bh = params["head_mlp"]
    wc, bc = params["head_softmax"]

    E1 = we1.shape[1]
    E2 = we2.shape[1]
    # Decoder consumes concat([current (E2 ch), skip (E1 ch)]) in that order --
    # must match the PyTorch torch.cat([x, pop_op], dim=1) ordering.
    assert wd.shape[0] == E2 + E1, "decoder weight must accept concat(E2, E1)"

    # Pad the class dim to a lane multiple for the final matmul only (the HBM
    # output stays narrow: (N, num_classes)).
    num_classes = wc.shape[1]
    c_pad = pl.cdiv(num_classes, 128) * 128
    wc_p = jnp.pad(wc, ((0, 0), (0, c_pad - num_classes)))
    bc_p = jnp.pad(bc, ((0, 0), (0, c_pad - num_classes)))

    # bf16 matmul operands (f32 accumulation in-kernel); biases stay f32.
    bf16 = jnp.bfloat16
    we1_b = we1.astype(bf16)
    we2_b = we2.astype(bf16)
    wd_b = wd.astype(bf16)
    wh_b = wh.astype(bf16)
    wc_b = wc_p.astype(bf16)

    grid_n = pl.cdiv(N, tile_n)   # ragged tail block handled by Pallas masking

    const = lambda i: (0, 0)      # weights/biases: same block every step -> DMA once
    full = lambda a: pl.BlockSpec(a.shape, const)

    out = pl.pallas_call(
        _pids_mlp_kernel,
        out_shape=jax.ShapeDtypeStruct((N, num_classes), x.dtype),
        grid=(grid_n,),
        in_specs=[
            pl.BlockSpec((tile_n, f_in), lambda i: (i, 0)),   # point tile
            full(we1_b), full(be1),
            full(we2_b), full(be2),
            full(wd_b), full(bd),
            full(wh_b), full(bh),
            full(wc_b), full(bc_p),
        ],
        out_specs=pl.BlockSpec((tile_n, num_classes), lambda i: (i, 0)),
        compiler_params=pltpu.CompilerParams(
            dimension_semantics=("parallel",),   # shard point tiles across TCs (v7x)
        ),
    )(x, we1_b, be1, we2_b, be2, wd_b, bd, wh_b, bh, wc_b, bc_p)

    return out


# ----------------------------------------------------------------------------
# Deterministic parameter init (synthetic; shapes follow the module __init__)
# ----------------------------------------------------------------------------
def _init_linear(key, cin, cout, dtype=jnp.float32):
    kw, kb = jax.random.split(key)
    w = (jax.random.normal(kw, (cin, cout), dtype) * (1.0 / jnp.sqrt(cin))).astype(dtype)
    b = (jax.random.normal(kb, (1, cout), dtype) * 0.01).astype(dtype)
    return w, b


def make_pids_params(key, f_in, num_classes, head_conv_dim):
    """Small synthetic PIDS_Segmentation-shaped network.

    Encoder:  f_in -> E1 -> (skip saved, channels E1) -> E2
    Decoder:  concat(E2, E1) -> D1
    Head:     D1 -> head_conv_dim -> num_classes
    """
    E1, E2, D1 = 32, 64, 32
    ks = jax.random.split(key, 6)
    return {
        "encoder": [
            _init_linear(ks[0], f_in, E1),
            _init_linear(ks[1], E1, E2),
        ],
        "encoder_skips": (1,),          # skip saved before block 1 (channels E1)
        "decoder": [
            _init_linear(ks[2], E2 + E1, D1),
        ],
        "decoder_concats": (0,),
        "head_mlp": _init_linear(ks[3], D1, head_conv_dim),
        "head_softmax": _init_linear(ks[4], head_conv_dim, num_classes),
    }


# ----------------------------------------------------------------------------
# Pure-JAX reference (mirrors the PyTorch block structure and the kernel's
# mixed-precision policy: bf16 matmul operands, f32 accumulate/elementwise).
# ----------------------------------------------------------------------------
def _reference_forward(x, params):
    bf16 = jnp.bfloat16

    def unary(h, w, b, relu=True):
        y = jnp.dot(h.astype(bf16), w.astype(bf16),
                    preferred_element_type=jnp.float32) + b
        return jnp.where(y >= 0.0, y, _NEG_SLOPE * y) if relu else y

    skip_x = []
    h = x
    for bi, (w, b) in enumerate(params["encoder"]):
        if bi in params["encoder_skips"]:
            skip_x.append(h)
        h = unary(h, w, b, relu=True)
    for bi, (w, b) in enumerate(params["decoder"]):
        if bi in params["decoder_concats"]:
            h = jnp.concatenate([h, skip_x.pop()], axis=1)
        h = unary(h, w, b, relu=True)
    h = unary(h, *params["head_mlp"], relu=True)
    return unary(h, *params["head_softmax"], relu=False)


# ----------------------------------------------------------------------------
if __name__ == "__main__":
    key = jax.random.PRNGKey(0)
    k_in, k_par = jax.random.split(key)

    N_POINTS = 1000         # not a multiple of tile_n -> exercises ragged tail block
    F_IN = 16               # input feature dim (batch.features channel dim)
    HEAD_CONV_DIM = 32      # config.head_conv_dim
    # self.C = len(lbl_values) - len(ign_lbls): lbl_values=range(10), ign_lbls=[0]
    NUM_CLASSES = 9

    x = jax.random.normal(k_in, (N_POINTS, F_IN), jnp.float32)
    params = make_pids_params(k_par, F_IN, NUM_CLASSES, HEAD_CONV_DIM)

    # tile_n=512 here so this toy 1000-point cloud still produces 2 grid steps
    # (keeps both v7x TensorCores busy); sweep up to 2048-4096 for large clouds.
    logits = pids_segmentation_forward(x, params, tile_n=512)
    jax.block_until_ready(logits)

    assert logits.shape == (N_POINTS, NUM_CLASSES)
    assert logits.dtype == jnp.float32

    ref = _reference_forward(x, params)
    assert jnp.allclose(logits, ref, atol=2e-3, rtol=2e-3), "mismatch vs reference"

    print("KERNEL_OK")
</pallas_src>

<mosaic_0001>
module attributes {stable_mosaic.version = 11 : i64} {
  func.func @_pids_mlp_kernel(%arg0: i32, %arg1: memref<512x16xf32, #tpu.memory_space<vmem>>, %arg2: memref<16x32xbf16, #tpu.memory_space<vmem>>, %arg3: memref<1x32xf32, #tpu.memory_space<vmem>>, %arg4: memref<32x64xbf16, #tpu.memory_space<vmem>>, %arg5: memref<1x64xf32, #tpu.memory_space<vmem>>, %arg6: memref<96x32xbf16, #tpu.memory_space<vmem>>, %arg7: memref<1x32xf32, #tpu.memory_space<vmem>>, %arg8: memref<32x32xbf16, #tpu.memory_space<vmem>>, %arg9: memref<1x32xf32, #tpu.memory_space<vmem>>, %arg10: memref<32x128xbf16, #tpu.memory_space<vmem>>, %arg11: memref<1x128xf32, #tpu.memory_space<vmem>>, %arg12: memref<512x9xf32, #tpu.memory_space<vmem>>) attributes {dimension_semantics = [#tpu.dimension_semantics<parallel>], iteration_bounds = array<i64: 2>, scalar_prefetch = 0 : i64, scratch_operands = 0 : i64, tpu.core_type = #tpu.core_type<tc>, window_params = [{transform_indices = @transform_0, window_bounds = array<i64: 512, 16>}, {pipeline_mode = #tpu.pipeline_mode<synchronous>, transform_indices = @transform_1, window_bounds = array<i64: 16, 32>}, {pipeline_mode = #tpu.pipeline_mode<synchronous>, transform_indices = @transform_2, window_bounds = array<i64: 1, 32>}, {pipeline_mode = #tpu.pipeline_mode<synchronous>, transform_indices = @transform_3, window_bounds = array<i64: 32, 64>}, {pipeline_mode = #tpu.pipeline_mode<synchronous>, transform_indices = @transform_4, window_bounds = array<i64: 1, 64>}, {pipeline_mode = #tpu.pipeline_mode<synchronous>, transform_indices = @transform_5, window_bounds = array<i64: 96, 32>}, {pipeline_mode = #tpu.pipeline_mode<synchronous>, transform_indices = @transform_6, window_bounds = array<i64: 1, 32>}, {pipeline_mode = #tpu.pipeline_mode<synchronous>, transform_indices = @transform_7, window_bounds = array<i64: 32, 32>}, {pipeline_mode = #tpu.pipeline_mode<synchronous>, transform_indices = @transform_8, window_bounds = array<i64: 1, 32>}, {pipeline_mode = #tpu.pipeline_mode<synchronous>, transform_indices = @transform_9, window_bounds = array<i64: 32, 128>}, {pipeline_mode = #tpu.pipeline_mode<synchronous>, transform_indices = @transform_10, window_bounds = array<i64: 1, 128>}, {transform_indices = @transform_11, window_bounds = array<i64: 512, 9>}]} {
    %c0 = arith.constant 0 : index
    %c0_0 = arith.constant 0 : index
    %0 = vector.load %arg1[%c0, %c0_0] : memref<512x16xf32, #tpu.memory_space<vmem>>, vector<512x16xf32>
    %1 = arith.truncf %0 : vector<512x16xf32> to vector<512x16xbf16>
    %c0_1 = arith.constant 0 : index
    %c0_2 = arith.constant 0 : index
    %2 = vector.load %arg2[%c0_1, %c0_2] : memref<16x32xbf16, #tpu.memory_space<vmem>>, vector<16x32xbf16>
    %cst = arith.constant dense<0.000000e+00> : vector<512x32xf32>
    %3 = tpu.matmul %1, %2, %cst {dimension_numbers = #tpu.dot_dimension_numbers<[1], [0], [0], [1], [0, 0, 1, 1], [], []>} : vector<512x16xbf16>, vector<16x32xbf16>, vector<512x32xf32> -> vector<512x32xf32>
    %c0_3 = arith.constant 0 : index
    %c0_4 = arith.constant 0 : index
    %4 = vector.load %arg3[%c0_3, %c0_4] : memref<1x32xf32, #tpu.memory_space<vmem>>, vector<1x32xf32>
    %5 = vector.broadcast %4 : vector<1x32xf32> to vector<512x32xf32>
    %6 = arith.addf %3, %5 : vector<512x32xf32>
    %cst_5 = arith.constant 0.000000e+00 : f32
    %7 = vector.broadcast %cst_5 : f32 to vector<512x32xf32>
    %8 = arith.cmpf oge, %6, %7 : vector<512x32xf32>
    %cst_6 = arith.constant 1.000000e-01 : f32
    %9 = vector.broadcast %cst_6 : f32 to vector<512x32xf32>
    %10 = arith.mulf %9, %6 : vector<512x32xf32>
    %11 = arith.select %8, %6, %10 : vector<512x32xi1>, vector<512x32xf32>
    %12 = arith.truncf %11 : vector<512x32xf32> to vector<512x32xbf16>
    %c0_7 = arith.constant 0 : index
    %c0_8 = arith.constant 0 : index
    %13 = vector.load %arg4[%c0_7, %c0_8] : memref<32x64xbf16, #tpu.memory_space<vmem>>, vector<32x64xbf16>
    %cst_9 = arith.constant dense<0.000000e+00> : vector<512x64xf32>
    %14 = tpu.matmul %12, %13, %cst_9 {dimension_numbers = #tpu.dot_dimension_numbers<[1], [0], [0], [1], [0, 0, 1, 1], [], []>} : vector<512x32xbf16>, vector<32x64xbf16>, vector<512x64xf32> -> vector<512x64xf32>
    %c0_10 = arith.constant 0 : index
    %c0_11 = arith.constant 0 : index
    %15 = vector.load %arg5[%c0_10, %c0_11] : memref<1x64xf32, #tpu.memory_space<vmem>>, vector<1x64xf32>
    %16 = vector.broadcast %15 : vector<1x64xf32> to vector<512x64xf32>
    %17 = arith.addf %14, %16 : vector<512x64xf32>
    %cst_12 = arith.constant 0.000000e+00 : f32
    %18 = vector.broadcast %cst_12 : f32 to vector<512x64xf32>
    %19 = arith.cmpf oge, %17, %18 : vector<512x64xf32>
    %cst_13 = arith.constant 1.000000e-01 : f32
    %20 = vector.broadcast %cst_13 : f32 to vector<512x64xf32>
    %21 = arith.mulf %20, %17 : vector<512x64xf32>
    %22 = arith.select %19, %17, %21 : vector<512x64xi1>, vector<512x64xf32>
    %23 = tpu.concatenate %22, %11 in 1 : vector<512x64xf32>, vector<512x32xf32> -> vector<512x96xf32>
    %24 = arith.truncf %23 : vector<512x96xf32> to vector<512x96xbf16>
    %c0_14 = arith.constant 0 : index
    %c0_15 = arith.constant 0 : index
    %25 = vector.load %arg6[%c0_14, %c0_15] : memref<96x32xbf16, #tpu.memory_space<vmem>>, vector<96x32xbf16>
    %cst_16 = arith.constant dense<0.000000e+00> : vector<512x32xf32>
    %26 = tpu.matmul %24, %25, %cst_16 {dimension_numbers = #tpu.dot_dimension_numbers<[1], [0], [0], [1], [0, 0, 1, 1], [], []>} : vector<512x96xbf16>, vector<96x32xbf16>, vector<512x32xf32> -> vector<512x32xf32>
    %c0_17 = arith.constant 0 : index
    %c0_18 = arith.constant 0 : index
    %27 = vector.load %arg7[%c0_17, %c0_18] : memref<1x32xf32, #tpu.memory_space<vmem>>, vector<1x32xf32>
    %28 = vector.broadcast %27 : vector<1x32xf32> to vector<512x32xf32>
    %29 = arith.addf %26, %28 : vector<512x32xf32>
    %cst_19 = arith.constant 0.000000e+00 : f32
    %30 = vector.broadcast %cst_19 : f32 to vector<512x32xf32>
    %31 = arith.cmpf oge, %29, %30 : vector<512x32xf32>
    %cst_20 = arith.constant 1.000000e-01 : f32
    %32 = vector.broadcast %cst_20 : f32 to vector<512x32xf32>
    %33 = arith.mulf %32, %29 : vector<512x32xf32>
    %34 = arith.select %31, %29, %33 : vector<512x32xi1>, vector<512x32xf32>
    %35 = arith.truncf %34 : vector<512x32xf32> to vector<512x32xbf16>
    %c0_21 = arith.constant 0 : index
    %c0_22 = arith.constant 0 : index
    %36 = vector.load %arg8[%c0_21, %c0_22] : memref<32x32xbf16, #tpu.memory_space<vmem>>, vector<32x32xbf16>
    %cst_23 = arith.constant dense<0.000000e+00> : vector<512x32xf32>
    %37 = tpu.matmul %35, %36, %cst_23 {dimension_numbers = #tpu.dot_dimension_numbers<[1], [0], [0], [1], [0, 0, 1, 1], [], []>} : vector<512x32xbf16>, vector<32x32xbf16>, vector<512x32xf32> -> vector<512x32xf32>
    %c0_24 = arith.constant 0 : index
    %c0_25 = arith.constant 0 : index
    %38 = vector.load %arg9[%c0_24, %c0_25] : memref<1x32xf32, #tpu.memory_space<vmem>>, vector<1x32xf32>
    %39 = vector.broadcast %38 : vector<1x32xf32> to vector<512x32xf32>
    %40 = arith.addf %37, %39 : vector<512x32xf32>
    %cst_26 = arith.constant 0.000000e+00 : f32
    %41 = vector.broadcast %cst_26 : f32 to vector<512x32xf32>
    %42 = arith.cmpf oge, %40, %41 : vector<512x32xf32>
    %cst_27 = arith.constant 1.000000e-01 : f32
    %43 = vector.broadcast %cst_27 : f32 to vector<512x32xf32>
    %44 = arith.mulf %43, %40 : vector<512x32xf32>
    %45 = arith.select %42, %40, %44 : vector<512x32xi1>, vector<512x32xf32>
    %46 = arith.truncf %45 : vector<512x32xf32> to vector<512x32xbf16>
    %c0_28 = arith.constant 0 : index
    %c0_29 = arith.constant 0 : index
    %47 = vector.load %arg10[%c0_28, %c0_29] : memref<32x128xbf16, #tpu.memory_space<vmem>>, vector<32x128xbf16>
    %cst_30 = arith.constant dense<0.000000e+00> : vector<512x128xf32>
    %48 = tpu.matmul %46, %47, %cst_30 {dimension_numbers = #tpu.dot_dimension_numbers<[1], [0], [0], [1], [0, 0, 1, 1], [], []>} : vector<512x32xbf16>, vector<32x128xbf16>, vector<512x128xf32> -> vector<512x128xf32>
    %c0_31 = arith.constant 0 : index
    %c0_32 = arith.constant 0 : index
    %49 = vector.load %arg11[%c0_31, %c0_32] : memref<1x128xf32, #tpu.memory_space<vmem>>, vector<1x128xf32>
    %50 = vector.broadcast %49 : vector<1x128xf32> to vector<512x128xf32>
    %51 = arith.addf %48, %50 : vector<512x128xf32>
    %52 = vector.extract_strided_slice %51 {offsets = [0, 0], sizes = [512, 9], strides = [1, 1]} : vector<512x128xf32> to vector<512x9xf32>
    %c0_33 = arith.constant 0 : index
    %c0_34 = arith.constant 0 : index
    %53 = vector.load %arg12[%c0_33, %c0_34] : memref<512x9xf32, #tpu.memory_space<vmem>>, vector<512x9xf32>
    tpu.vector_store %arg12[%c0_33, %c0_34], %52 {strides = array<i32>} : memref<512x9xf32, #tpu.memory_space<vmem>>, vector<512x9xf32>,
    return
  }
  func.func @transform_0(%arg0: i32) -> (i32, i32) {
    %c0_i32 = arith.constant 0 : i32
    %c0_i32_0 = arith.constant 0 : i32
    return %arg0, %c0_i32 : i32, i32
  }
  func.func @transform_1(%arg0: i32) -> (i32, i32) {
    %c0_i32 = arith.constant 0 : i32
    %c0_i32_0 = arith.constant 0 : i32
    %c0_i32_1 = arith.constant 0 : i32
    return %c0_i32, %c0_i32_0 : i32, i32
  }
  func.func @transform_2(%arg0: i32) -> (i32, i32) {
    %c0_i32 = arith.constant 0 : i32
    %c0_i32_0 = arith.constant 0 : i32
    %c0_i32_1 = arith.constant 0 : i32
    return %c0_i32, %c0_i32_0 : i32, i32
  }
  func.func @transform_3(%arg0: i32) -> (i32, i32) {
    %c0_i32 = arith.constant 0 : i32
    %c0_i32_0 = arith.constant 0 : i32
    %c0_i32_1 = arith.constant 0 : i32
    return %c0_i32, %c0_i32_0 : i32, i32
  }
  func.func @transform_4(%arg0: i32) -> (i32, i32) {
    %c0_i32 = arith.constant 0 : i32
    %c0_i32_0 = arith.constant 0 : i32
    %c0_i32_1 = arith.constant 0 : i32
    return %c0_i32, %c0_i32_0 : i32, i32
  }
  func.func @transform_5(%arg0: i32) -> (i32, i32) {
    %c0_i32 = arith.constant 0 : i32
    %c0_i32_0 = arith.constant 0 : i32
    %c0_i32_1 = arith.constant 0 : i32
    return %c0_i32, %c0_i32_0 : i32, i32
  }
  func.func @transform_6(%arg0: i32) -> (i32, i32) {
    %c0_i32 = arith.constant 0 : i32
    %c0_i32_0 = arith.constant 0 : i32
    %c0_i32_1 = arith.constant 0 : i32
    return %c0_i32, %c0_i32_0 : i32, i32
  }
  func.func @transform_7(%arg0: i32) -> (i32, i32) {
    %c0_i32 = arith.constant 0 : i32
    %c0_i32_0 = arith.constant 0 : i32
    %c0_i32_1 = arith.constant 0 : i32
    return %c0_i32, %c0_i32_0 : i32, i32
  }
  func.func @transform_8(%arg0: i32) -> (i32, i32) {
    %c0_i32 = arith.constant 0 : i32
    %c0_i32_0 = arith.constant 0 : i32
    %c0_i32_1 = arith.constant 0 : i32
    return %c0_i32, %c0_i32_0 : i32, i32
  }
  func.func @transform_9(%arg0: i32) -> (i32, i32) {
    %c0_i32 = arith.constant 0 : i32
    %c0_i32_0 = arith.constant 0 : i32
    %c0_i32_1 = arith.constant 0 : i32
    return %c0_i32, %c0_i32_0 : i32, i32
  }
  func.func @transform_10(%arg0: i32) -> (i32, i32) {
    %c0_i32 = arith.constant 0 : i32
    %c0_i32_0 = arith.constant 0 : i32
    %c0_i32_1 = arith.constant 0 : i32
    return %c0_i32, %c0_i32_0 : i32, i32
  }
  func.func @transform_11(%arg0: i32) -> (i32, i32) {
    %c0_i32 = arith.constant 0 : i32
    %c0_i32_0 = arith.constant 0 : i32
    return %arg0, %c0_i32 : i32, i32
  }
}

</mosaic_0001>

<llo_original>
// kernel: tpu_custom_call.1
$region0: #{tpu_custom_call.1}
  #allocation0 [shape = 'u32[]', space=smem, size = 0x4, offset = 0x4, fixed_abs, tag = 'smem constant byte address 0x4 - core index']
  #allocation1 [shape = 'u32[72,128]{1,0:T(1,128)}', space=vmem, size = 0x9000, scoped, tag = 'internal scratch']
  %s0 = inlined_call_operand.vmem [shape: f32[1000,16], index: 0, kind: input, shape index: {}]
  %s1 = inlined_call_operand.vmem [shape: bf16[16,32], index: 1, kind: input, shape index: {}]
  %s2 = inlined_call_operand.vmem [shape: f32[1,32], index: 2, kind: input, shape index: {}]
  %s3 = inlined_call_operand.vmem [shape: bf16[32,64], index: 3, kind: input, shape index: {}]
  %s4 = inlined_call_operand.vmem [shape: f32[1,64], index: 4, kind: input, shape index: {}]
  %s5 = inlined_call_operand.vmem [shape: bf16[96,32], index: 5, kind: input, shape index: {}]
  %s6 = inlined_call_operand.vmem [shape: f32[1,32], index: 6, kind: input, shape index: {}]
  %s7 = inlined_call_operand.vmem [shape: bf16[32,32], index: 7, kind: input, shape index: {}]
  %s8 = inlined_call_operand.vmem [shape: f32[1,32], index: 8, kind: input, shape index: {}]
  %s9 = inlined_call_operand.vmem [shape: bf16[32,128], index: 9, kind: input, shape index: {}]
  %s10 = inlined_call_operand.vmem [shape: f32[1,128], index: 10, kind: input, shape index: {}]
  %s11 = inlined_call_operand.vmem [shape: f32[1000,9], index: 11, kind: output, shape index: {}]
  %s12 = sld [smem:[#allocation0]]
  $region125: #{tpu_custom_call.1} parent=0
    _
  %s14 = ssub.s32 1, %s12
  %s15 = scalar_select 0, %s14, %s12
  $region1: #{tpu_custom_call.1} parent=0
    #allocation2 [shape = 'u8[524288]{0}', space=vmem, size = 0x80000, scoped, tag = 'output window, operand 0']
    loop: start=0, step=1, limit=4
    $region2: #{tpu_custom_call.1} parent=1 // loop_pre_header
      _
    $region3: #{tpu_custom_call.1} parent=1 // loop_header
      %s17 = sphi 0, %s21
      %p18 = scmp.ge.s32.totalorder %s17, 4
      %s27 = sphi 0, %s29
      %s30 = sphi 0, %s27
      %s31 = sphi 0, %s30
      %s47 = sphi 0, %s31
      %s51 = sphi 0, %s51
      %s53 = sphi 0, %s51
      %s54 = sphi 0, %s53
      %s68 = sphi 0, %s54
      %s72 = sphi 0, %s72
      %s74 = sphi 0, %s72
      %s75 = sphi 0, %s74
      %s89 = sphi 0, %s75
      %s93 = sphi 0, %s93
      %s95 = sphi 0, %s93
      %s96 = sphi 0, %s95
      %s110 = sphi 0, %s96
      %s114 = sphi 0, %s114
      %s116 = sphi 0, %s114
      %s117 = sphi 0, %s116
      %s131 = sphi 0, %s117
      %s135 = sphi 0, %s135
      %s137 = sphi 0, %s135
      %s138 = sphi 0, %s137
      %s152 = sphi 0, %s138
      %s156 = sphi 0, %s156
      %s158 = sphi 0, %s156
      %s159 = sphi 0, %s158
      %s173 = sphi 0, %s159
      %s177 = sphi 0, %s177
      %s179 = sphi 0, %s177
      %s180 = sphi 0, %s179
      %s194 = sphi 0, %s180
      %s198 = sphi 0, %s198
      %s200 = sphi 0, %s198
      %s201 = sphi 0, %s200
      %s215 = sphi 0, %s201
      %s219 = sphi 0, %s219
      %s221 = sphi 0, %s219
      %s222 = sphi 0, %s221
      %s236 = sphi 0, %s222
      %s240 = sphi 0, %s240
      %s242 = sphi 0, %s240
      %s243 = sphi 0, %s242
      %s257 = sphi 0, %s243
      %s263 = sphi 0, %s265
      %s266 = sphi 0, %s263
      %s267 = sphi 0, %s266
      %s283 = sphi 0, %s267
    $region4: #{tpu_custom_call.1} parent=1 // loop_header_branch
      %20 = sbr.rel (%p18) target = $region8
    $region5: #{tpu_custom_call.1} parent=1 // loop_body
      %s22 = ssub.s32 %s17, 1
      %s23 = ssub.s32 %s17, 2
      %s24 = sadd.s32 %s17, 1
      %s25 = ssub.s32 %s17, %s24
      %p26 = scmp.eq.s32.totalorder %s25, 0
      %s28 = sadd.s32 %s27, 1
      %s29 = scalar_select %p26, %s27, %s28
      %p32 = pneg %p26
      %p33 = scmp.eq.s32.totalorder %s17, 1
      %p34 = por %p32, %p33
      %p35 = scmp.ne.s32.totalorder %s27, %s30
      %p36 = scmp.eq.s32.totalorder %s17, 0
      %p37 = por %p35, %p36
      %p38 = scmp.ne.s32.totalorder %s27, %s30
      %p39 = scmp.eq.s32.totalorder %s22, 1
      %p40 = por %p38, %p39
      %p41 = scmp.ne.s32.totalorder %s30, %s31
      %p42 = scmp.eq.s32.totalorder %s22, 0
      %p43 = por %p41, %p42
      %p44 = scmp.ne.s32.totalorder %s30, %s31
      %p45 = scmp.eq.s32.totalorder %s23, 1
      %p46 = por %p44, %p45
      %p48 = scmp.ne.s32.totalorder %s31, %s47
      %p49 = scmp.eq.s32.totalorder %s23, 0
      %p50 = por %p48, %p49
      %s52 = sadd.s32 %s51, 1
      %p55 = scmp.eq.s32.totalorder %s17, 1
      %p56 = scmp.ne.s32.totalorder %s51, %s53
      %p57 = scmp.eq.s32.totalorder %s17, 0
      %p58 = por %p56, %p57
      %p59 = scmp.ne.s32.totalorder %s51, %s53
      %p60 = scmp.eq.s32.totalorder %s22, 1
      %p61 = por %p59, %p60
      %p62 = scmp.ne.s32.totalorder %s53, %s54
      %p63 = scmp.eq.s32.totalorder %s22, 0
      %p64 = por %p62, %p63
      %p65 = scmp.ne.s32.totalorder %s53, %s54
      %p66 = scmp.eq.s32.totalorder %s23, 1
      %p67 = por %p65, %p66
      %p69 = scmp.ne.s32.totalorder %s54, %s68
      %p70 = scmp.eq.s32.totalorder %s23, 0
      %p71 = por %p69, %p70
      %s73 = sadd.s32 %s72, 1
      %p76 = scmp.eq.s32.totalorder %s17, 1
      %p77 = scmp.ne.s32.totalorder %s72, %s74
      %p78 = scmp.eq.s32.totalorder %s17, 0
      %p79 = por %p77, %p78
      %p80 = scmp.ne.s32.totalorder %s72, %s74
      %p81 = scmp.eq.s32.totalorder %s22, 1
      %p82 = por %p80, %p81
      %p83 = scmp.ne.s32.totalorder %s74, %s75
      %p84 = scmp.eq.s32.totalorder %s22, 0
      %p85 = por %p83, %p84
      %p86 = scmp.ne.s32.totalorder %s74, %s75
      %p87 = scmp.eq.s32.totalorder %s23, 1
      %p88 = por %p86, %p87
      %p90 = scmp.ne.s32.totalorder %s75, %s89
      %p91 = scmp.eq.s32.totalorder %s23, 0
      %p92 = por %p90, %p91
      %s94 = sadd.s32 %s93, 1
      %p97 = scmp.eq.s32.totalorder %s17, 1
      %p98 = scmp.ne.s32.totalorder %s93, %s95
      %p99 = scmp.eq.s32.totalorder %s17, 0
      %p100 = por %p98, %p99
      %p101 = scmp.ne.s32.totalorder %s93, %s95
      %p102 = scmp.eq.s32.totalorder %s22, 1
      %p103 = por %p101, %p102
      %p104 = scmp.ne.s32.totalorder %s95, %s96
      %p105 = scmp.eq.s32.totalorder %s22, 0
      %p106 = por %p104, %p105
      %p107 = scmp.ne.s32.totalorder %s95, %s96
      %p108 = scmp.eq.s32.totalorder %s23, 1
      %p109 = por %p107, %p108
      %p111 = scmp.ne.s32.totalorder %s96, %s110
      %p112 = scmp.eq.s32.totalorder %s23, 0
      %p113 = por %p111, %p112
      %s115 = sadd.s32 %s114, 1
      %p118 = scmp.eq.s32.totalorder %s17, 1
      %p119 = scmp.ne.s32.totalorder %s114, %s116
      %p120 = scmp.eq.s32.totalorder %s17, 0
      %p121 = por %p119, %p120
      %p122 = scmp.ne.s32.totalorder %s114, %s116
      %p123 = scmp.eq.s32.totalorder %s22, 1
      %p124 = por %p122, %p123
      %p125 = scmp.ne.s32.totalorder %s116, %s117
      %p126 = scmp.eq.s32.totalorder %s22, 0
      %p127 = por %p125, %p126
      %p128 = scmp.ne.s32.totalorder %s116, %s117
      %p129 = scmp.eq.s32.totalorder %s23, 1
      %p130 = por %p128, %p129
      %p132 = scmp.ne.s32.totalorder %s117, %s131
      %p133 = scmp.eq.s32.totalorder %s23, 0
      %p134 = por %p132, %p133
      %s136 = sadd.s32 %s135, 1
      %p139 = scmp.eq.s32.totalorder %s17, 1
      %p140 = scmp.ne.s32.totalorder %s135, %s137
      %p141 = scmp.eq.s32.totalorder %s17, 0
      %p142 = por %p140, %p141
      %p143 = scmp.ne.s32.totalorder %s135, %s137
      %p144 = scmp.eq.s32.totalorder %s22, 1
      %p145 = por %p143, %p144
      %p146 = scmp.ne.s32.totalorder %s137, %s138
      %p147 = scmp.eq.s32.totalorder %s22, 0
      %p148 = por %p146, %p147
      %p149 = scmp.ne.s32.totalorder %s137, %s138
      %p150 = scmp.eq.s32.totalorder %s23, 1
      %p151 = por %p149, %p150
      %p153 = scmp.ne.s32.totalorder %s138, %s152
      %p154 = scmp.eq.s32.totalorder %s23, 0
      %p155 = por %p153, %p154
      %s157 = sadd.s32 %s156, 1
      %p160 = scmp.eq.s32.totalorder %s17, 1
      %p161 = scmp.ne.s32.totalorder %s156, %s158
      %p162 = scmp.eq.s32.totalorder %s17, 0
      %p163 = por %p161, %p162
      %p164 = scmp.ne.s32.totalorder %s156, %s158
      %p165 = scmp.eq.s32.totalorder %s22, 1
      %p166 = por %p164, %p165
      %p167 = scmp.ne.s32.totalorder %s158, %s159
      %p168 = scmp.eq.s32.totalorder %s22, 0
      %p169 = por %p167, %p168
      %p170 = scmp.ne.s32.totalorder %s158, %s159
      %p171 = scmp.eq.s32.totalorder %s23, 1
      %p172 = por %p170, %p171
      %p174 = scmp.ne.s32.totalorder %s159, %s173
      %p175 = scmp.eq.s32.totalorder %s23, 0
      %p176 = por %p174, %p175
      %s178 = sadd.s32 %s177, 1
      %p181 = scmp.eq.s32.totalorder %s17, 1
      %p182 = scmp.ne.s32.totalorder %s177, %s179
      %p183 = scmp.eq.s32.totalorder %s17, 0
      %p184 = por %p182, %p183
      %p185 = scmp.ne.s32.totalorder %s177, %s179
      %p186 = scmp.eq.s32.totalorder %s22, 1
      %p187 = por %p185, %p186
      %p188 = scmp.ne.s32.totalorder %s179, %s180
      %p189 = scmp.eq.s32.totalorder %s22, 0
      %p190 = por %p188, %p189
      %p191 = scmp.ne.s32.totalorder %s179, %s180
      %p192 = scmp.eq.s32.totalorder %s23, 1
      %p193 = por %p191, %p192
      %p195 = scmp.ne.s32.totalorder %s180, %s194
      %p196 = scmp.eq.s32.totalorder %s23, 0
      %p197 = por %p195, %p196
      %s199 = sadd.s32 %s198, 1
      %p202 = scmp.eq.s32.totalorder %s17, 1
      %p203 = scmp.ne.s32.totalorder %s198, %s200
      %p204 = scmp.eq.s32.totalorder %s17, 0
      %p205 = por %p203, %p204
      %p206 = scmp.ne.s32.totalorder %s198, %s200
      %p207 = scmp.eq.s32.totalorder %s22, 1
      %p208 = por %p206, %p207
      %p209 = scmp.ne.s32.totalorder %s200, %s201
      %p210 = scmp.eq.s32.totalorder %s22, 0
      %p211 = por %p209, %p210
      %p212 = scmp.ne.s32.totalorder %s200, %s201
      %p213 = scmp.eq.s32.totalorder %s23, 1
      %p214 = por %p212, %p213
      %p216 = scmp.ne.s32.totalorder %s201, %s215
      %p217 = scmp.eq.s32.totalorder %s23, 0
      %p218 = por %p216, %p217
      %s220 = sadd.s32 %s219, 1
      %p223 = scmp.eq.s32.totalorder %s17, 1
      %p224 = scmp.ne.s32.totalorder %s219, %s221
      %p225 = scmp.eq.s32.totalorder %s17, 0
      %p226 = por %p224, %p225
      %p227 = scmp.ne.s32.totalorder %s219, %s221
      %p228 = scmp.eq.s32.totalorder %s22, 1
      %p229 = por %p227, %p228
      %p230 = scmp.ne.s32.totalorder %s221, %s222
      %p231 = scmp.eq.s32.totalorder %s22, 0
      %p232 = por %p230, %p231
      %p233 = scmp.ne.s32.totalorder %s221, %s222
      %p234 = scmp.eq.s32.totalorder %s23, 1
      %p235 = por %p233, %p234
      %p237 = scmp.ne.s32.totalorder %s222, %s236
      %p238 = scmp.eq.s32.totalorder %s23, 0
      %p239 = por %p237, %p238
      %s241 = sadd.s32 %s240, 1
      %p244 = scmp.eq.s32.totalorder %s17, 1
      %p245 = scmp.ne.s32.totalorder %s240, %s242
      %p246 = scmp.eq.s32.totalorder %s17, 0
      %p247 = por %p245, %p246
      %p248 = scmp.ne.s32.totalorder %s240, %s242
      %p249 = scmp.eq.s32.totalorder %s22, 1
      %p250 = por %p248, %p249
      %p251 = scmp.ne.s32.totalorder %s242, %s243
      %p252 = scmp.eq.s32.totalorder %s22, 0
      %p253 = por %p251, %p252
      %p254 = scmp.ne.s32.totalorder %s242, %s243
      %p255 = scmp.eq.s32.totalorder %s23, 1
      %p256 = por %p254, %p255
      %p258 = scmp.ne.s32.totalorder %s243, %s257
      %p259 = scmp.eq.s32.totalorder %s23, 0
      %p260 = por %p258, %p259
      %s261 = ssub.s32 %s17, %s24
      %p262 = scmp.eq.s32.totalorder %s261, 0
      %s264 = sadd.s32 %s263, 1
      %s265 = scalar_select %p262, %s263, %s264
      %p268 = pneg %p262
      %p269 = scmp.eq.s32.totalorder %s17, 1
      %p270 = por %p268, %p269
      %p271 = scmp.ne.s32.totalorder %s263, %s266
      %p272 = scmp.eq.s32.totalorder %s17, 0
      %p273 = por %p271, %p272
      %p274 = scmp.ne.s32.totalorder %s263, %s266
      %p275 = scmp.eq.s32.totalorder %s22, 1
      %p276 = por %p274, %p275
      %p277 = scmp.ne.s32.totalorder %s266, %s267
      %p278 = scmp.eq.s32.totalorder %s22, 0
      %p279 = por %p277, %p278
      %p280 = scmp.ne.s32.totalorder %s266, %s267
      %p281 = scmp.eq.s32.totalorder %s23, 1
      %p282 = por %p280, %p281
      %p284 = scmp.ne.s32.totalorder %s267, %s283
      %p285 = scmp.eq.s32.totalorder %s23, 0
      %p286 = por %p284, %p285
      %p287 = scmp.le.s32.totalorder 1, %s17
      %p288 = scmp.lt.s32.totalorder %s17, 3
      %p289 = pnand %p287, %p288
      %p290 = pneg %p289
      // Predicated region
      $region9: #{tpu_custom_call.1} parent=5 // pred_check
        _
      $region10: #{tpu_custom_call.1} parent=5 // pred_check_branch
        %292 = sbr.rel (%p289) target = $region12
      $region11: #{tpu_custom_call.1} parent=5 // pred_region
        %s293 = ssub.s32 %s17, 1
        // Predicated region
        $region13: #{tpu_custom_call.1} parent=11 // pred_check
          %p294 = pneg %p64
        $region14: #{tpu_custom_call.1} parent=11 // pred_check_branch
          %296 = sbr.rel (%p294) target = $region16
        $region15: #{tpu_custom_call.1} parent=11 // pred_region
          _
        $region16: #{tpu_custom_call.1} parent=11 // pred_fallthru
          _
        // Predicated region
        $region17: #{tpu_custom_call.1} parent=11 // pred_check
          %p297 = pneg %p85
        $region18: #{tpu_custom_call.1} parent=11 // pred_check_branch
          %299 = sbr.rel (%p297) target = $region20
        $region19: #{tpu_custom_call.1} parent=11 // pred_region
          _
        $region20: #{tpu_custom_call.1} parent=11 // pred_fallthru
          _
        // Predicated region
        $region21: #{tpu_custom_call.1} parent=11 // pred_check
          %p300 = pneg %p106
        $region22: #{tpu_custom_call.1} parent=11 // pred_check_branch
          %302 = sbr.rel (%p300) target = $region24
        $region23: #{tpu_custom_call.1} parent=11 // pred_region
          _
        $region24: #{tpu_custom_call.1} parent=11 // pred_fallthru
          _
        // Predicated region
        $region25: #{tpu_custom_call.1} parent=11 // pred_check
          %p303 = pneg %p127
        $region26: #{tpu_custom_call.1} parent=11 // pred_check_branch
          %305 = sbr.rel (%p303) target = $region28
        $region27: #{tpu_custom_call.1} parent=11 // pred_region
          _
        $region28: #{tpu_custom_call.1} parent=11 // pred_fallthru
          _
        // Predicated region
        $region29: #{tpu_custom_call.1} parent=11 // pred_check
          %p306 = pneg %p148
        $region30: #{tpu_custom_call.1} parent=11 // pred_check_branch
          %308 = sbr.rel (%p306) target = $region32
        $region31: #{tpu_custom_call.1} parent=11 // pred_region
          _
        $region32: #{tpu_custom_call.1} parent=11 // pred_fallthru
          _
        // Predicated region
        $region33: #{tpu_custom_call.1} parent=11 // pred_check
          %p309 = pneg %p169
        $region34: #{tpu_custom_call.1} parent=11 // pred_check_branch
          %311 = sbr.rel (%p309) target = $region36
        $region35: #{tpu_custom_call.1} parent=11 // pred_region
          _
        $region36: #{tpu_custom_call.1} parent=11 // pred_fallthru
          _
        // Predicated region
        $region37: #{tpu_custom_call.1} parent=11 // pred_check
          %p312 = pneg %p190
        $region38: #{tpu_custom_call.1} parent=11 // pred_check_branch
          %314 = sbr.rel (%p312) target = $region40
        $region39: #{tpu_custom_call.1} parent=11 // pred_region
          _
        $region40: #{tpu_custom_call.1} parent=11 // pred_fallthru
          _
        // Predicated region
        $region41: #{tpu_custom_call.1} parent=11 // pred_check
          %p315 = pneg %p211
        $region42: #{tpu_custom_call.1} parent=11 // pred_check_branch
          %317 = sbr.rel (%p315) target = $region44
        $region43: #{tpu_custom_call.1} parent=11 // pred_region
          _
        $region44: #{tpu_custom_call.1} parent=11 // pred_fallthru
          _
        // Predicated region
        $region45: #{tpu_custom_call.1} parent=11 // pred_check
          %p318 = pneg %p232
        $region46: #{tpu_custom_call.1} parent=11 // pred_check_branch
          %320 = sbr.rel (%p318) target = $region48
        $region47: #{tpu_custom_call.1} parent=11 // pred_region
          _
        $region48: #{tpu_custom_call.1} parent=11 // pred_fallthru
          _
        // Predicated region
        $region49: #{tpu_custom_call.1} parent=11 // pred_check
          %p321 = pneg %p253
        $region50: #{tpu_custom_call.1} parent=11 // pred_check_branch
          %323 = sbr.rel (%p321) target = $region52
        $region51: #{tpu_custom_call.1} parent=11 // pred_region
          _
        $region52: #{tpu_custom_call.1} parent=11 // pred_fallthru
          _
      $region12: #{tpu_custom_call.1} parent=5 // pred_fallthru
        _
      %p324 = scmp.lt.s32.totalorder %s17, 2
      // Predicated region
      $region53: #{tpu_custom_call.1} parent=5 // pred_check
        %p325 = pneg %p324
      $region54: #{tpu_custom_call.1} parent=5 // pred_check_branch
        %327 = sbr.rel (%p325) target = $region56
      $region55: #{tpu_custom_call.1} parent=5 // pred_region
        // Predicated region
        $region57: #{tpu_custom_call.1} parent=55 // pred_check
          %p328 = pneg %p37
        $region58: #{tpu_custom_call.1} parent=55 // pred_check_branch
          %330 = sbr.rel (%p328) target = $region60
        $region59: #{tpu_custom_call.1} parent=55 // pred_region
          %s331 = smul.u32 64, %s17
          %s332 = ssub.s32 125, %s331
          %p333 = scmp.lt.s32.totalorder %s332, 64
          %s334 = scalar_select %p333, %s332, 64
          %s335 = smul.u32 8, %s334
          %p336 = scmp.lt.s32.totalorder %s331, 124
          %s337 = scalar_select %p336, %s331, 124
          %s338 = smul.addr %s337, 8
          %s339 = scalar_lea.vmem %s0, %s338
          %s340 = smul.u32 64, %s17
          %s341 = ssub.s32 125, %s340
          %p342 = scmp.lt.s32.totalorder %s341, 64
          %s343 = scalar_select %p342, %s341, 64
          %s344 = smul.u32 8, %s343
        $region60: #{tpu_custom_call.1} parent=55 // pred_fallthru
          _
      $region56: #{tpu_custom_call.1} parent=5 // pred_fallthru
        _
      %p345 = scmp.le.s32.totalorder 1, %s17
      %p346 = scmp.lt.s32.totalorder %s17, 3
      %p347 = pnand %p345, %p346
      %p348 = pneg %p347
      // Predicated region
      $region61: #{tpu_custom_call.1} parent=5 // pred_check
        _
      $region62: #{tpu_custom_call.1} parent=5 // pred_check_branch
        %350 = sbr.rel (%p347) target = $region64
      $region63: #{tpu_custom_call.1} parent=5 // pred_region
        %s351 = ssub.s32 %s17, 1
        %s352 = smul.u32 64, %s22
        %s353 = ssub.s32 125, %s352
        %p354 = scmp.lt.s32.totalorder %s353, 64
        %s355 = scalar_select %p354, %s353, 64
        %s356 = smul.u32 8, %s355
        %p357 = scmp.lt.s32.totalorder %s352, 124
        %s358 = scalar_select %p357, %s352, 124
        %s359 = smul.addr %s358, 8
        %s360 = scalar_lea.vmem %s0, %s359
        %p361 = pneg %p43
        %p362 = pneg %p40
        %p363 = pneg %p64
        %p364 = pneg %p61
        %p365 = pneg %p85
        %p366 = pneg %p82
        %p367 = pneg %p106
        %p368 = pneg %p103
        %p369 = pneg %p127
        %p370 = pneg %p124
        %p371 = pneg %p148
        %p372 = pneg %p145
        %p373 = pneg %p169
        %p374 = pneg %p166
        %p375 = pneg %p190
        %p376 = pneg %p187
        %p377 = pneg %p211
        %p378 = pneg %p208
        %p379 = pneg %p232
        %p380 = pneg %p229
        %p381 = pneg %p253
        %p382 = pneg %p250
        %p383 = pneg %p279
        %p384 = pneg %p276
        %s385 = sand.u32 %s266, 1
        %s386 = sand.u32 %s266, 1
        %s387 = smul.addr %s386, 512
        %s388 = scalar_lea.vmem [#allocation2], %s387
        %s389 = smul.u32 64, %s22
        %s390 = ssub.s32 125, %s389
        %p391 = scmp.lt.s32.totalorder %s390, 64
        %s392 = scalar_select %p391, %s390, 64
        %s393 = smul.u32 8, %s392
        %p394 = scmp.lt.s32.totalorder %s389, 124
        %s395 = scalar_select %p394, %s389, 124
        %s396 = smul.addr %s395, 8
        %s397 = scalar_lea.vmem %s0, %s396
        %s398 = smul.u32 64, %s22
        %s399 = ssub.s32 125, %s398
        %p400 = scmp.lt.s32.totalorder %s399, 64
        %s401 = scalar_select %p400, %s399, 64
        %s402 = smul.u32 8, %s401
        %s403 = smul.u32 64, %s22
        %s404 = ssub.s32 125, %s403
        %p405 = scmp.lt.s32.totalorder %s404, 64
        %s406 = scalar_select %p405, %s404, 64
        %s407 = smul.u32 8, %s406
        %v409 = vld [vmem:[%s397] sm:$0xff]
        %v410 = vld [vmem:[%s397 + $0x8] sm:$0xff]
        %v411 = vld [vmem:[%s397 + $0x10] sm:$0xff]
        %v412 = vld [vmem:[%s397 + $0x18] sm:$0xff]
        %v413 = vld [vmem:[%s397 + $0x20] sm:$0xff]
        %v414 = vld [vmem:[%s397 + $0x28] sm:$0xff]
        %v415 = vld [vmem:[%s397 + $0x30] sm:$0xff]
        %v416 = vld [vmem:[%s397 + $0x38] sm:$0xff]
        %v417 = vld [vmem:[%s397 + $0x40] sm:$0xff]
        %v418 = vld [vmem:[%s397 + $0x48] sm:$0xff]
        %v419 = vld [vmem:[%s397 + $0x50] sm:$0xff]
        %v420 = vld [vmem:[%s397 + $0x58] sm:$0xff]
        %v421 = vld [vmem:[%s397 + $0x60] sm:$0xff]
        %v422 = vld [vmem:[%s397 + $0x68] sm:$0xff]
        %v423 = vld [vmem:[%s397 + $0x70] sm:$0xff]
        %v424 = vld [vmem:[%s397 + $0x78] sm:$0xff]
        %v425 = vld [vmem:[%s397 + $0x80] sm:$0xff]
        %v426 = vld [vmem:[%s397 + $0x88] sm:$0xff]
        %v427 = vld [vmem:[%s397 + $0x90] sm:$0xff]
        %v428 = vld [vmem:[%s397 + $0x98] sm:$0xff]
        %v429 = vld [vmem:[%s397 + $0xa0] sm:$0xff]
        %v430 = vld [vmem:[%s397 + $0xa8] sm:$0xff]
        %v431 = vld [vmem:[%s397 + $0xb0] sm:$0xff]
        %v432 = vld [vmem:[%s397 + $0xb8] sm:$0xff]
        %v433 = vld [vmem:[%s397 + $0xc0] sm:$0xff]
        %v434 = vld [vmem:[%s397 + $0xc8] sm:$0xff]
        %v435 = vld [vmem:[%s397 + $0xd0] sm:$0xff]
        %v436 = vld [vmem:[%s397 + $0xd8] sm:$0xff]
        %v437 = vld [vmem:[%s397 + $0xe0] sm:$0xff]
        %v438 = vld [vmem:[%s397 + $0xe8] sm:$0xff]
        %v439 = vld [vmem:[%s397 + $0xf0] sm:$0xff]
        %v440 = vld [vmem:[%s397 + $0xf8] sm:$0xff]
        %v441 = vld [vmem:[%s397 + $0x100] sm:$0xff]
        %v442 = vld [vmem:[%s397 + $0x108] sm:$0xff]
        %v443 = vld [vmem:[%s397 + $0x110] sm:$0xff]
        %v444 = vld [vmem:[%s397 + $0x118] sm:$0xff]
        %v445 = vld [vmem:[%s397 + $0x120] sm:$0xff]
        %v446 = vld [vmem:[%s397 + $0x128] sm:$0xff]
        %v447 = vld [vmem:[%s397 + $0x130] sm:$0xff]
        %v448 = vld [vmem:[%s397 + $0x138] sm:$0xff]
        %v449 = vld [vmem:[%s397 + $0x140] sm:$0xff]
        %v450 = vld [vmem:[%s397 + $0x148] sm:$0xff]
        %v451 = vld [vmem:[%s397 + $0x150] sm:$0xff]
        %v452 = vld [vmem:[%s397 + $0x158] sm:$0xff]
        %v453 = vld [vmem:[%s397 + $0x160] sm:$0xff]
        %v454 = vld [vmem:[%s397 + $0x168] sm:$0xff]
        %v455 = vld [vmem:[%s397 + $0x170] sm:$0xff]
        %v456 = vld [vmem:[%s397 + $0x178] sm:$0xff]
        %v457 = vld [vmem:[%s397 + $0x180] sm:$0xff]
        %v458 = vld [vmem:[%s397 + $0x188] sm:$0xff]
        %v459 = vld [vmem:[%s397 + $0x190] sm:$0xff]
        %v460 = vld [vmem:[%s397 + $0x198] sm:$0xff]
        %v461 = vld [vmem:[%s397 + $0x1a0] sm:$0xff]
        %v462 = vld [vmem:[%s397 + $0x1a8] sm:$0xff]
        %v463 = vld [vmem:[%s397 + $0x1b0] sm:$0xff]
        %v464 = vld [vmem:[%s397 + $0x1b8] sm:$0xff]
        %v465 = vld [vmem:[%s397 + $0x1c0] sm:$0xff]
        %v466 = vld [vmem:[%s397 + $0x1c8] sm:$0xff]
        %v467 = vld [vmem:[%s397 + $0x1d0] sm:$0xff]
        %v468 = vld [vmem:[%s397 + $0x1d8] sm:$0xff]
        %v469 = vld [vmem:[%s397 + $0x1e0] sm:$0xff]
        %v470 = vld [vmem:[%s397 + $0x1e8] sm:$0xff]
        %v471 = vld [vmem:[%s397 + $0x1f0] sm:$0xff]
        %v472 = vld [vmem:[%s397 + $0x1f8] sm:$0xff]
        %v473 = vpack.c.bf16 %v410, %v409
        %v474 = vpack.c.bf16 %v412, %v411
        %v475 = vpack.c.bf16 %v414, %v413
        %v476 = vpack.c.bf16 %v416, %v415
        %v477 = vpack.c.bf16 %v418, %v417
        %v478 = vpack.c.bf16 %v420, %v419
        %v479 = vpack.c.bf16 %v422, %v421
        %v480 = vpack.c.bf16 %v424, %v423
        %v481 = vpack.c.bf16 %v426, %v425
        %v482 = vpack.c.bf16 %v428, %v427
        %v483 = vpack.c.bf16 %v430, %v429
        %v484 = vpack.c.bf16 %v432, %v431
        %v485 = vpack.c.bf16 %v434, %v433
        %v486 = vpack.c.bf16 %v436, %v435
        %v487 = vpack.c.bf16 %v438, %v437
        %v488 = vpack.c.bf16 %v440, %v439
        %v489 = vpack.c.bf16 %v442, %v441
        %v490 = vpack.c.bf16 %v444, %v443
        %v491 = vpack.c.bf16 %v446, %v445
        %v492 = vpack.c.bf16 %v448, %v447
        %v493 = vpack.c.bf16 %v450, %v449
        %v494 = vpack.c.bf16 %v452, %v451
        %v495 = vpack.c.bf16 %v454, %v453
        %v496 = vpack.c.bf16 %v456, %v455
        %v497 = vpack.c.bf16 %v458, %v457
        %v498 = vpack.c.bf16 %v460, %v459
        %v499 = vpack.c.bf16 %v462, %v461
        %v500 = vpack.c.bf16 %v464, %v463
        %v501 = vpack.c.bf16 %v466, %v465
        %v502 = vpack.c.bf16 %v468, %v467
        %v503 = vpack.c.bf16 %v470, %v469
        %v504 = vpack.c.bf16 %v472, %v471
        %v505 = vld [vmem:[%s1] sm:$0xf]
        %v506 = vld [vmem:[%s1 + $0x4] sm:$0xf]
        %v507 = vld [vmem:[%s2] sm:$0x1]
        %v509 = vperm.slane %v507, 0
        %v513 = vunpack.c.l.b16 %v505
        %v514 = vunpack.c.l.b16 %v506
        %v515 = vpack.c.b16 %v514, %v513
        %vm517 = vcmask 130048
        %v519 = vsel %vm517, %v473, 0
        %v522 = vsel %vm517, %v474, 0
        %v525 = vsel %vm517, %v475, 0
        %v528 = vsel %vm517, %v476, 0
        %v531 = vsel %vm517, %v477, 0
        %v534 = vsel %vm517, %v478, 0
        %v537 = vsel %vm517, %v479, 0
        %v540 = vsel %vm517, %v480, 0
        %v543 = vsel %vm517, %v481, 0
        %v546 = vsel %vm517, %v482, 0
        %v549 = vsel %vm517, %v483, 0
        %v552 = vsel %vm517, %v484, 0
        %v555 = vsel %vm517, %v485, 0
        %v558 = vsel %vm517, %v486, 0
        %v561 = vsel %vm517, %v487, 0
        %v564 = vsel %vm517, %v488, 0
        %v567 = vsel %vm517, %v489, 0
        %v570 = vsel %vm517, %v490, 0
        %v573 = vsel %vm517, %v491, 0
        %v576 = vsel %vm517, %v492, 0
        %v579 = vsel %vm517, %v493, 0
        %v582 = vsel %vm517, %v494, 0
        %v585 = vsel %vm517, %v495, 0
        %v588 = vsel %vm517, %v496, 0
        %v591 = vsel %vm517, %v497, 0
        %v594 = vsel %vm517, %v498, 0
        %v597 = vsel %vm517, %v499, 0
        %v600 = vsel %vm517, %v500, 0
        %v603 = vsel %vm517, %v501, 0
        %v606 = vsel %vm517, %v502, 0
        %v609 = vsel %vm517, %v503, 0
        %v612 = vsel %vm517, %v504, 0
        %614 = vmatpush.bf16.msra.mxu0 0
        %615 = vmatpush.bf16.msra.mxu0 0
        %616 = vmatpush.bf16.msra.mxu0 0
        %617 = vmatpush.bf16.msra.mxu0 0
        %618 = vmatpush.bf16.msra.mxu0 0
        %619 = vmatpush.bf16.msra.mxu0 0
        %620 = vmatpush.bf16.msra.mxu0 0
        %621 = vmatpush.bf16.msra.mxu0 %v515
        %622 = vmatmul.bf16.gmra.mxu0 %v519
        %v623 = vpop.f32.mrf.mxu0
        %v624 = vadd.f32 %v509, %v623
        %v625 = vpop.f32.mrf.mxu0
        %v626 = vadd.f32 %v509, %v625
        %627 = vmatmul.bf16.gmra.mxu0 %v522
        %v628 = vpop.f32.mrf.mxu0
        %v629 = vadd.f32 %v509, %v628
        %v630 = vpop.f32.mrf.mxu0
        %v631 = vadd.f32 %v509, %v630
        %632 = vmatmul.bf16.gmra.mxu0 %v525
        %v633 = vpop.f32.mrf.mxu0
        %v634 = vadd.f32 %v509, %v633
        %v635 = vpop.f32.mrf.mxu0
        %v636 = vadd.f32 %v509, %v635
        %637 = vmatmul.bf16.gmra.mxu0 %v528
        %v638 = vpop.f32.mrf.mxu0
        %v639 = vadd.f32 %v509, %v638
        %v640 = vpop.f32.mrf.mxu0
        %v641 = vadd.f32 %v509, %v640
        %642 = vmatmul.bf16.gmra.mxu0 %v531
        %v643 = vpop.f32.mrf.mxu0
        %v644 = vadd.f32 %v509, %v643
        %v645 = vpop.f32.mrf.mxu0
        %v646 = vadd.f32 %v509, %v645
        %647 = vmatmul.bf16.gmra.mxu0 %v534
        %v648 = vpop.f32.mrf.mxu0
        %v649 = vadd.f32 %v509, %v648
        %v650 = vpop.f32.mrf.mxu0
        %v651 = vadd.f32 %v509, %v650
        %652 = vmatmul.bf16.gmra.mxu0 %v537
        %v653 = vpop.f32.mrf.mxu0
        %v654 = vadd.f32 %v509, %v653
        %v655 = vpop.f32.mrf.mxu0
        %v656 = vadd.f32 %v509, %v655
        %657 = vmatmul.bf16.gmra.mxu0 %v540
        %v658 = vpop.f32.mrf.mxu0
        %v659 = vadd.f32 %v509, %v658
        %v660 = vpop.f32.mrf.mxu0
        %v661 = vadd.f32 %v509, %v660
        %662 = vmatmul.bf16.gmra.mxu0 %v543
        %v663 = vpop.f32.mrf.mxu0
        %v664 = vadd.f32 %v509, %v663
        %v665 = vpop.f32.mrf.mxu0
        %v666 = vadd.f32 %v509, %v665
        %667 = vmatmul.bf16.gmra.mxu0 %v546
        %v668 = vpop.f32.mrf.mxu0
        %v669 = vadd.f32 %v509, %v668
        %v670 = vpop.f32.mrf.mxu0
        %v671 = vadd.f32 %v509, %v670
        %672 = vmatmul.bf16.gmra.mxu0 %v549
        %v673 = vpop.f32.mrf.mxu0
        %v674 = vadd.f32 %v509, %v673
        %v675 = vpop.f32.mrf.mxu0
        %v676 = vadd.f32 %v509, %v675
        %677 = vmatmul.bf16.gmra.mxu0 %v552
        %v678 = vpop.f32.mrf.mxu0
        %v679 = vadd.f32 %v509, %v678
        %v680 = vpop.f32.mrf.mxu0
        %v681 = vadd.f32 %v509, %v680
        %682 = vmatmul.bf16.gmra.mxu0 %v555
        %v683 = vpop.f32.mrf.mxu0
        %v684 = vadd.f32 %v509, %v683
        %v685 = vpop.f32.mrf.mxu0
        %v686 = vadd.f32 %v509, %v685
        %687 = vmatmul.bf16.gmra.mxu0 %v558
        %v688 = vpop.f32.mrf.mxu0
        %v689 = vadd.f32 %v509, %v688
        %v690 = vpop.f32.mrf.mxu0
        %v691 = vadd.f32 %v509, %v690
        %692 = vmatmul.bf16.gmra.mxu0 %v561
        %v693 = vpop.f32.mrf.mxu0
        %v694 = vadd.f32 %v509, %v693
        %v695 = vpop.f32.mrf.mxu0
        %v696 = vadd.f32 %v509, %v695
        %697 = vmatmul.bf16.gmra.mxu0 %v564
        %v698 = vpop.f32.mrf.mxu0
        %v699 = vadd.f32 %v509, %v698
        %v700 = vpop.f32.mrf.mxu0
        %v701 = vadd.f32 %v509, %v700
        %702 = vmatmul.bf16.gmra.mxu0 %v567
        %v703 = vpop.f32.mrf.mxu0
        %v704 = vadd.f32 %v509, %v703
        %v705 = vpop.f32.mrf.mxu0
        %v706 = vadd.f32 %v509, %v705
        %707 = vmatmul.bf16.gmra.mxu0 %v570
        %v708 = vpop.f32.mrf.mxu0
        %v709 = vadd.f32 %v509, %v708
        %v710 = vpop.f32.mrf.mxu0
        %v711 = vadd.f32 %v509, %v710
        %712 = vmatmul.bf16.gmra.mxu0 %v573
        %v713 = vpop.f32.mrf.mxu0
        %v714 = vadd.f32 %v509, %v713
        %v715 = vpop.f32.mrf.mxu0
        %v716 = vadd.f32 %v509, %v715
        %717 = vmatmul.bf16.gmra.mxu0 %v576
        %v718 = vpop.f32.mrf.mxu0
        %v719 = vadd.f32 %v509, %v718
        %v720 = vpop.f32.mrf.mxu0
        %v721 = vadd.f32 %v509, %v720
        %722 = vmatmul.bf16.gmra.mxu0 %v579
        %v723 = vpop.f32.mrf.mxu0
        %v724 = vadd.f32 %v509, %v723
        %v725 = vpop.f32.mrf.mxu0
        %v726 = vadd.f32 %v509, %v725
        %727 = vmatmul.bf16.gmra.mxu0 %v582
        %v728 = vpop.f32.mrf.mxu0
        %v729 = vadd.f32 %v509, %v728
        %v730 = vpop.f32.mrf.mxu0
        %v731 = vadd.f32 %v509, %v730
        %732 = vmatmul.bf16.gmra.mxu0 %v585
        %v733 = vpop.f32.mrf.mxu0
        %v734 = vadd.f32 %v509, %v733
        %v735 = vpop.f32.mrf.mxu0
        %v736 = vadd.f32 %v509, %v735
        %737 = vmatmul.bf16.gmra.mxu0 %v588
        %v738 = vpop.f32.mrf.mxu0
        %v739 = vadd.f32 %v509, %v738
        %v740 = vpop.f32.mrf.mxu0
        %v741 = vadd.f32 %v509, %v740
        %742 = vmatmul.bf16.gmra.mxu0 %v591
        %v743 = vpop.f32.mrf.mxu0
        %v744 = vadd.f32 %v509, %v743
        %v745 = vpop.f32.mrf.mxu0
        %v746 = vadd.f32 %v509, %v745
        %747 = vmatmul.bf16.gmra.mxu0 %v594
        %v748 = vpop.f32.mrf.mxu0
        %v749 = vadd.f32 %v509, %v748
        %v750 = vpop.f32.mrf.mxu0
        %v751 = vadd.f32 %v509, %v750
        %752 = vmatmul.bf16.gmra.mxu0 %v597
        %v753 = vpop.f32.mrf.mxu0
        %v754 = vadd.f32 %v509, %v753
        %v755 = vpop.f32.mrf.mxu0
        %v756 = vadd.f32 %v509, %v755
        %757 = vmatmul.bf16.gmra.mxu0 %v600
        %v758 = vpop.f32.mrf.mxu0
        %v759 = vadd.f32 %v509, %v758
        %v760 = vpop.f32.mrf.mxu0
        %v761 = vadd.f32 %v509, %v760
        %762 = vmatmul.bf16.gmra.mxu0 %v603
        %v763 = vpop.f32.mrf.mxu0
        %v764 = vadd.f32 %v509, %v763
        %v765 = vpop.f32.mrf.mxu0
        %v766 = vadd.f32 %v509, %v765
        %767 = vmatmul.bf16.gmra.mxu0 %v606
        %v768 = vpop.f32.mrf.mxu0
        %v769 = vadd.f32 %v509, %v768
        %v770 = vpop.f32.mrf.mxu0
        %v771 = vadd.f32 %v509, %v770
        %772 = vmatmul.bf16.gmra.mxu0 %v609
        %v773 = vpop.f32.mrf.mxu0
        %v774 = vadd.f32 %v509, %v773
        %v775 = vpop.f32.mrf.mxu0
        %v776 = vadd.f32 %v509, %v775
        %777 = vmatmul.bf16.gmra.mxu0 %v612
        %v778 = vpop.f32.mrf.mxu0
        %v779 = vadd.f32 %v509, %v778
        %v780 = vpop.f32.mrf.mxu0
        %v781 = vadd.f32 %v509, %v780
        %782 = vdwg.mxu0
        %vm783 = vcmp.ge.f32.partialorder %v624, 0.0
        %vm784 = vcmp.ge.f32.partialorder %v626, 0.0
        %vm785 = vcmp.ge.f32.partialorder %v629, 0.0
        %vm786 = vcmp.ge.f32.partialorder %v631, 0.0
        %vm787 = vcmp.ge.f32.partialorder %v634, 0.0
        %vm788 = vcmp.ge.f32.partialorder %v636, 0.0
        %vm789 = vcmp.ge.f32.partialorder %v639, 0.0
        %vm790 = vcmp.ge.f32.partialorder %v641, 0.0
        %vm791 = vcmp.ge.f32.partialorder %v644, 0.0
        %vm792 = vcmp.ge.f32.partialorder %v646, 0.0
        %vm793 = vcmp.ge.f32.partialorder %v649, 0.0
        %vm794 = vcmp.ge.f32.partialorder %v651, 0.0
        %vm795 = vcmp.ge.f32.partialorder %v654, 0.0
        %vm796 = vcmp.ge.f32.partialorder %v656, 0.0
        %vm797 = vcmp.ge.f32.partialorder %v659, 0.0
        %vm798 = vcmp.ge.f32.partialorder %v661, 0.0
        %vm799 = vcmp.ge.f32.partialorder %v664, 0.0
        %vm800 = vcmp.ge.f32.partialorder %v666, 0.0
        %vm801 = vcmp.ge.f32.partialorder %v669, 0.0
        %vm802 = vcmp.ge.f32.partialorder %v671, 0.0
        %vm803 = vcmp.ge.f32.partialorder %v674, 0.0
        %vm804 = vcmp.ge.f32.partialorder %v676, 0.0
        %vm805 = vcmp.ge.f32.partialorder %v679, 0.0
        %vm806 = vcmp.ge.f32.partialorder %v681, 0.0
        %vm807 = vcmp.ge.f32.partialorder %v684, 0.0
        %vm808 = vcmp.ge.f32.partialorder %v686, 0.0
        %vm809 = vcmp.ge.f32.partialorder %v689, 0.0
        %vm810 = vcmp.ge.f32.partialorder %v691, 0.0
        %vm811 = vcmp.ge.f32.partialorder %v694, 0.0
        %vm812 = vcmp.ge.f32.partialorder %v696, 0.0
        %vm813 = vcmp.ge.f32.partialorder %v699, 0.0
        %vm814 = vcmp.ge.f32.partialorder %v701, 0.0
        %vm815 = vcmp.ge.f32.partialorder %v704, 0.0
        %vm816 = vcmp.ge.f32.partialorder %v706, 0.0
        %vm817 = vcmp.ge.f32.partialorder %v709, 0.0
        %vm818 = vcmp.ge.f32.partialorder %v711, 0.0
        %vm819 = vcmp.ge.f32.partialorder %v714, 0.0
        %vm820 = vcmp.ge.f32.partialorder %v716, 0.0
        %vm821 = vcmp.ge.f32.partialorder %v719, 0.0
        %vm822 = vcmp.ge.f32.partialorder %v721, 0.0
        %vm823 = vcmp.ge.f32.partialorder %v724, 0.0
        %vm824 = vcmp.ge.f32.partialorder %v726, 0.0
        %vm825 = vcmp.ge.f32.partialorder %v729, 0.0
        %vm826 = vcmp.ge.f32.partialorder %v731, 0.0
        %vm827 = vcmp.ge.f32.partialorder %v734, 0.0
        %vm828 = vcmp.ge.f32.partialorder %v736, 0.0
        %vm829 = vcmp.ge.f32.partialorder %v739, 0.0
        %vm830 = vcmp.ge.f32.partialorder %v741, 0.0
        %vm831 = vcmp.ge.f32.partialorder %v744, 0.0
        %vm832 = vcmp.ge.f32.partialorder %v746, 0.0
        %vm833 = vcmp.ge.f32.partialorder %v749, 0.0
        %vm834 = vcmp.ge.f32.partialorder %v751, 0.0
        %vm835 = vcmp.ge.f32.partialorder %v754, 0.0
        %vm836 = vcmp.ge.f32.partialorder %v756, 0.0
        %vm837 = vcmp.ge.f32.partialorder %v759, 0.0
        %vm838 = vcmp.ge.f32.partialorder %v761, 0.0
        %vm839 = vcmp.ge.f32.partialorder %v764, 0.0
        %vm840 = vcmp.ge.f32.partialorder %v766, 0.0
        %vm841 = vcmp.ge.f32.partialorder %v769, 0.0
        %vm842 = vcmp.ge.f32.partialorder %v771, 0.0
        %vm843 = vcmp.ge.f32.partialorder %v774, 0.0
        %vm844 = vcmp.ge.f32.partialorder %v776, 0.0
        %vm845 = vcmp.ge.f32.partialorder %v779, 0.0
        %vm846 = vcmp.ge.f32.partialorder %v781, 0.0
        %v847 = vmul.f32 %v624, 0.1
        %v848 = vmul.f32 %v626, 0.1
        %v849 = vmul.f32 %v629, 0.1
        %v850 = vmul.f32 %v631, 0.1
        %v851 = vmul.f32 %v634, 0.1
        %v852 = vmul.f32 %v636, 0.1
        %v853 = vmul.f32 %v639, 0.1
        %v854 = vmul.f32 %v641, 0.1
        %v855 = vmul.f32 %v644, 0.1
        %v856 = vmul.f32 %v646, 0.1
        %v857 = vmul.f32 %v649, 0.1
        %v858 = vmul.f32 %v651, 0.1
        %v859 = vmul.f32 %v654, 0.1
        %v860 = vmul.f32 %v656, 0.1
        %v861 = vmul.f32 %v659, 0.1
        %v862 = vmul.f32 %v661, 0.1
        %v863 = vmul.f32 %v664, 0.1
        %v864 = vmul.f32 %v666, 0.1
        %v865 = vmul.f32 %v669, 0.1
        %v866 = vmul.f32 %v671, 0.1
        %v867 = vmul.f32 %v674, 0.1
        %v868 = vmul.f32 %v676, 0.1
        %v869 = vmul.f32 %v679, 0.1
        %v870 = vmul.f32 %v681, 0.1
        %v871 = vmul.f32 %v684, 0.1
        %v872 = vmul.f32 %v686, 0.1
        %v873 = vmul.f32 %v689, 0.1
        %v874 = vmul.f32 %v691, 0.1
        %v875 = vmul.f32 %v694, 0.1
        %v876 = vmul.f32 %v696, 0.1
        %v877 = vmul.f32 %v699, 0.1
        %v878 = vmul.f32 %v701, 0.1
        %v879 = vmul.f32 %v704, 0.1
        %v880 = vmul.f32 %v706, 0.1
        %v881 = vmul.f32 %v709, 0.1
        %v882 = vmul.f32 %v711, 0.1
        %v883 = vmul.f32 %v714, 0.1
        %v884 = vmul.f32 %v716, 0.1
        %v885 = vmul.f32 %v719, 0.1
        %v886 = vmul.f32 %v721, 0.1
        %v887 = vmul.f32 %v724, 0.1
        %v888 = vmul.f32 %v726, 0.1
        %v889 = vmul.f32 %v729, 0.1
        %v890 = vmul.f32 %v731, 0.1
        %v891 = vmul.f32 %v734, 0.1
        %v892 = vmul.f32 %v736, 0.1
        %v893 = vmul.f32 %v739, 0.1
        %v894 = vmul.f32 %v741, 0.1
        %v895 = vmul.f32 %v744, 0.1
        %v896 = vmul.f32 %v746, 0.1
        %v897 = vmul.f32 %v749, 0.1
        %v898 = vmul.f32 %v751, 0.1
        %v899 = vmul.f32 %v754, 0.1
        %v900 = vmul.f32 %v756, 0.1
        %v901 = vmul.f32 %v759, 0.1
        %v902 = vmul.f32 %v761, 0.1
        %v903 = vmul.f32 %v764, 0.1
        %v904 = vmul.f32 %v766, 0.1
        %v905 = vmul.f32 %v769, 0.1
        %v906 = vmul.f32 %v771, 0.1
        %v907 = vmul.f32 %v774, 0.1
        %v908 = vmul.f32 %v776, 0.1
        %v909 = vmul.f32 %v779, 0.1
        %v910 = vmul.f32 %v781, 0.1
        %v911 = vsel %vm783, %v624, %v847
        %v912 = vsel %vm784, %v626, %v848
        %v913 = vsel %vm785, %v629, %v849
        %v914 = vsel %vm786, %v631, %v850
        %v915 = vsel %vm787, %v634, %v851
        %v916 = vsel %vm788, %v636, %v852
        %v917 = vsel %vm789, %v639, %v853
        %v918 = vsel %vm790, %v641, %v854
        %v919 = vsel %vm791, %v644, %v855
        %v920 = vsel %vm792, %v646, %v856
        %v921 = vsel %vm793, %v649, %v857
        %v922 = vsel %vm794, %v651, %v858
        %v923 = vsel %vm795, %v654, %v859
        %v924 = vsel %vm796, %v656, %v860
        %v925 = vsel %vm797, %v659, %v861
        %v926 = vsel %vm798, %v661, %v862
        %v927 = vsel %vm799, %v664, %v863
        %v928 = vsel %vm800, %v666, %v864
        %v929 = vsel %vm801, %v669, %v865
        %v930 = vsel %vm802, %v671, %v866
        %v931 = vsel %vm803, %v674, %v867
        %v932 = vsel %vm804, %v676, %v868
        %v933 = vsel %vm805, %v679, %v869
        %v934 = vsel %vm806, %v681, %v870
        %v935 = vsel %vm807, %v684, %v871
        %v936 = vsel %vm808, %v686, %v872
        %v937 = vsel %vm809, %v689, %v873
        %v938 = vsel %vm810, %v691, %v874
        %v939 = vsel %vm811, %v694, %v875
        %v940 = vsel %vm812, %v696, %v876
        %v941 = vsel %vm813, %v699, %v877
        %v942 = vsel %vm814, %v701, %v878
        %v943 = vsel %vm815, %v704, %v879
        %v944 = vsel %vm816, %v706, %v880
        %v945 = vsel %vm817, %v709, %v881
        %v946 = vsel %vm818, %v711, %v882
        %v947 = vsel %vm819, %v714, %v883
        %v948 = vsel %vm820, %v716, %v884
        %v949 = vsel %vm821, %v719, %v885
        %v950 = vsel %vm822, %v721, %v886
        %v951 = vsel %vm823, %v724, %v887
        %v952 = vsel %vm824, %v726, %v888
        %v953 = vsel %vm825, %v729, %v889
        %v954 = vsel %vm826, %v731, %v890
        %v955 = vsel %vm827, %v734, %v891
        %v956 = vsel %vm828, %v736, %v892
        %v957 = vsel %vm829, %v739, %v893
        %v958 = vsel %vm830, %v741, %v894
        %v959 = vsel %vm831, %v744, %v895
        %v960 = vsel %vm832, %v746, %v896
        %v961 = vsel %vm833, %v749, %v897
        %v962 = vsel %vm834, %v751, %v898
        %v963 = vsel %vm835, %v754, %v899
        %v964 = vsel %vm836, %v756, %v900
        %v965 = vsel %vm837, %v759, %v901
        %v966 = vsel %vm838, %v761, %v902
        %v967 = vsel %vm839, %v764, %v903
        %v968 = vsel %vm840, %v766, %v904
        %v969 = vsel %vm841, %v769, %v905
        %v970 = vsel %vm842, %v771, %v906
        %v971 = vsel %vm843, %v774, %v907
        %v972 = vsel %vm844, %v776, %v908
        %v973 = vsel %vm845, %v779, %v909
        %v974 = vsel %vm846, %v781, %v910
        %v975 = vpack.c.bf16 %v912, %v911
        %v976 = vpack.c.bf16 %v914, %v913
        %v977 = vpack.c.bf16 %v916, %v915
        %v978 = vpack.c.bf16 %v918, %v917
        %v979 = vpack.c.bf16 %v920, %v919
        %v980 = vpack.c.bf16 %v922, %v921
        %v981 = vpack.c.bf16 %v924, %v923
        %v982 = vpack.c.bf16 %v926, %v925
        %v983 = vpack.c.bf16 %v928, %v927
        %v984 = vpack.c.bf16 %v930, %v929
        %v985 = vpack.c.bf16 %v932, %v931
        %v986 = vpack.c.bf16 %v934, %v933
        %v987 = vpack.c.bf16 %v936, %v935
        %v988 = vpack.c.bf16 %v938, %v937
        %v989 = vpack.c.bf16 %v940, %v939
        %v990 = vpack.c.bf16 %v942, %v941
        %v991 = vpack.c.bf16 %v944, %v943
        %v992 = vpack.c.bf16 %v946, %v945
        %v993 = vpack.c.bf16 %v948, %v947
        %v994 = vpack.c.bf16 %v950, %v949
        %v995 = vpack.c.bf16 %v952, %v951
        %v996 = vpack.c.bf16 %v954, %v953
        %v997 = vpack.c.bf16 %v956, %v955
        %v998 = vpack.c.bf16 %v958, %v957
        %v999 = vpack.c.bf16 %v960, %v959
        %v1000 = vpack.c.bf16 %v962, %v961
        %v1001 = vpack.c.bf16 %v964, %v963
        %v1002 = vpack.c.bf16 %v966, %v965
        %v1003 = vpack.c.bf16 %v968, %v967
        %v1004 = vpack.c.bf16 %v970, %v969
        %v1005 = vpack.c.bf16 %v972, %v971
        %v1006 = vpack.c.bf16 %v974, %v973
        %v1007 = vld [vmem:[%s3] sm:$0xf]
        %v1008 = vld [vmem:[%s3 + $0x4] sm:$0xf]
        %v1009 = vld [vmem:[%s3 + $0x8] sm:$0xf]
        %v1010 = vld [vmem:[%s3 + $0xc] sm:$0xf]
        %v1011 = vld [vmem:[%s4] sm:$0x1]
        %v1013 = vperm.slane %v1011, 0
        %v1019 = vunpack.c.l.b16 %v1007
        %v1020 = vunpack.c.l.b16 %v1008
        %v1021 = vunpack.c.l.b16 %v1009
        %v1022 = vunpack.c.l.b16 %v1010
        %v1023 = vpack.c.b16 %v1020, %v1019
        %v1024 = vpack.c.b16 %v1022, %v1021
        %vm1027 = vcmask 261120
        %v1029 = vsel %vm1027, %v975, 0
        %v1032 = vsel %vm1027, %v976, 0
        %v1035 = vsel %vm1027, %v977, 0
        %v1038 = vsel %vm1027, %v978, 0
        %v1041 = vsel %vm1027, %v979, 0
        %v1044 = vsel %vm1027, %v980, 0
        %v1047 = vsel %vm1027, %v981, 0
        %v1050 = vsel %vm1027, %v982, 0
        %v1053 = vsel %vm1027, %v983, 0
        %v1056 = vsel %vm1027, %v984, 0
        %v1059 = vsel %vm1027, %v985, 0
        %v1062 = vsel %vm1027, %v986, 0
        %v1065 = vsel %vm1027, %v987, 0
        %v1068 = vsel %vm1027, %v988, 0
        %v1071 = vsel %vm1027, %v989, 0
        %v1074 = vsel %vm1027, %v990, 0
        %v1077 = vsel %vm1027, %v991, 0
        %v1080 = vsel %vm1027, %v992, 0
        %v1083 = vsel %vm1027, %v993, 0
        %v1086 = vsel %vm1027, %v994, 0
        %v1089 = vsel %vm1027, %v995, 0
        %v1092 = vsel %vm1027, %v996, 0
        %v1095 = vsel %vm1027, %v997, 0
        %v1098 = vsel %vm1027, %v998, 0
        %v1101 = vsel %vm1027, %v999, 0
        %v1104 = vsel %vm1027, %v1000, 0
        %v1107 = vsel %vm1027, %v1001, 0
        %v1110 = vsel %vm1027, %v1002, 0
        %v1113 = vsel %vm1027, %v1003, 0
        %v1116 = vsel %vm1027, %v1004, 0
        %v1119 = vsel %vm1027, %v1005, 0
        %v1122 = vsel %vm1027, %v1006, 0
        %1124 = vmatpush.bf16.msra.mxu0 0
        %1125 = vmatpush.bf16.msra.mxu0 0
        %1126 = vmatpush.bf16.msra.mxu0 0
        %1127 = vmatpush.bf16.msra.mxu0 0
        %1128 = vmatpush.bf16.msra.mxu0 0
        %1129 = vmatpush.bf16.msra.mxu0 0
        %1130 = vmatpush.bf16.msra.mxu0 %v1024
        %1131 = vmatpush.bf16.msra.mxu0 %v1023
        %1132 = vmatmul.bf16.gmra.mxu0 %v1029
        %v1133 = vpop.f32.mrf.mxu0
        %v1134 = vadd.f32 %v1013, %v1133
        %v1135 = vpop.f32.mrf.mxu0
        %v1136 = vadd.f32 %v1013, %v1135
        %1137 = vmatmul.bf16.gmra.mxu0 %v1032
        %v1138 = vpop.f32.mrf.mxu0
        %v1139 = vadd.f32 %v1013, %v1138
        %v1140 = vpop.f32.mrf.mxu0
        %v1141 = vadd.f32 %v1013, %v1140
        %1142 = vmatmul.bf16.gmra.mxu0 %v1035
        %v1143 = vpop.f32.mrf.mxu0
        %v1144 = vadd.f32 %v1013, %v1143
        %v1145 = vpop.f32.mrf.mxu0
        %v1146 = vadd.f32 %v1013, %v1145
        %1147 = vmatmul.bf16.gmra.mxu0 %v1038
        %v1148 = vpop.f32.mrf.mxu0
        %v1149 = vadd.f32 %v1013, %v1148
        %v1150 = vpop.f32.mrf.mxu0
        %v1151 = vadd.f32 %v1013, %v1150
        %1152 = vmatmul.bf16.gmra.mxu0 %v1041
        %v1153 = vpop.f32.mrf.mxu0
        %v1154 = vadd.f32 %v1013, %v1153
        %v1155 = vpop.f32.mrf.mxu0
        %v1156 = vadd.f32 %v1013, %v1155
        %1157 = vmatmul.bf16.gmra.mxu0 %v1044
        %v1158 = vpop.f32.mrf.mxu0
        %v1159 = vadd.f32 %v1013, %v1158
        %v1160 = vpop.f32.mrf.mxu0
        %v1161 = vadd.f32 %v1013, %v1160
        %1162 = vmatmul.bf16.gmra.mxu0 %v1047
        %v1163 = vpop.f32.mrf.mxu0
        %v1164 = vadd.f32 %v1013, %v1163
        %v1165 = vpop.f32.mrf.mxu0
        %v1166 = vadd.f32 %v1013, %v1165
        %1167 = vmatmul.bf16.gmra.mxu0 %v1050
        %v1168 = vpop.f32.mrf.mxu0
        %v1169 = vadd.f32 %v1013, %v1168
        %v1170 = vpop.f32.mrf.mxu0
        %v1171 = vadd.f32 %v1013, %v1170
        %1172 = vmatmul.bf16.gmra.mxu0 %v1053
        %v1173 = vpop.f32.mrf.mxu0
        %v1174 = vadd.f32 %v1013, %v1173
        %v1175 = vpop.f32.mrf.mxu0
        %v1176 = vadd.f32 %v1013, %v1175
        %1177 = vmatmul.bf16.gmra.mxu0 %v1056
        %v1178 = vpop.f32.mrf.mxu0
        %v1179 = vadd.f32 %v1013, %v1178
        %v1180 = vpop.f32.mrf.mxu0
        %v1181 = vadd.f32 %v1013, %v1180
        %1182 = vmatmul.bf16.gmra.mxu0 %v1059
        %v1183 = vpop.f32.mrf.mxu0
        %v1184 = vadd.f32 %v1013, %v1183
        %v1185 = vpop.f32.mrf.mxu0
        %v1186 = vadd.f32 %v1013, %v1185
        %1187 = vmatmul.bf16.gmra.mxu0 %v1062
        %v1188 = vpop.f32.mrf.mxu0
        %v1189 = vadd.f32 %v1013, %v1188
        %v1190 = vpop.f32.mrf.mxu0
        %v1191 = vadd.f32 %v1013, %v1190
        %1192 = vmatmul.bf16.gmra.mxu0 %v1065
        %v1193 = vpop.f32.mrf.mxu0
        %v1194 = vadd.f32 %v1013, %v1193
        %v1195 = vpop.f32.mrf.mxu0
        %v1196 = vadd.f32 %v1013, %v1195
        %1197 = vmatmul.bf16.gmra.mxu0 %v1068
        %v1198 = vpop.f32.mrf.mxu0
        %v1199 = vadd.f32 %v1013, %v1198
        %v1200 = vpop.f32.mrf.mxu0
        %v1201 = vadd.f32 %v1013, %v1200
        %1202 = vmatmul.bf16.gmra.mxu0 %v1071
        %v1203 = vpop.f32.mrf.mxu0
        %v1204 = vadd.f32 %v1013, %v1203
        %v1205 = vpop.f32.mrf.mxu0
        %v1206 = vadd.f32 %v1013, %v1205
        %1207 = vmatmul.bf16.gmra.mxu0 %v1074
        %v1208 = vpop.f32.mrf.mxu0
        %v1209 = vadd.f32 %v1013, %v1208
        %v1210 = vpop.f32.mrf.mxu0
        %v1211 = vadd.f32 %v1013, %v1210
        %1212 = vmatmul.bf16.gmra.mxu0 %v1077
        %v1213 = vpop.f32.mrf.mxu0
        %v1214 = vadd.f32 %v1013, %v1213
        %v1215 = vpop.f32.mrf.mxu0
        %v1216 = vadd.f32 %v1013, %v1215
        %1217 = vmatmul.bf16.gmra.mxu0 %v1080
        %v1218 = vpop.f32.mrf.mxu0
        %v1219 = vadd.f32 %v1013, %v1218
        %v1220 = vpop.f32.mrf.mxu0
        %v1221 = vadd.f32 %v1013, %v1220
        %1222 = vmatmul.bf16.gmra.mxu0 %v1083
        %v1223 = vpop.f32.mrf.mxu0
        %v1224 = vadd.f32 %v1013, %v1223
        %v1225 = vpop.f32.mrf.mxu0
        %v1226 = vadd.f32 %v1013, %v1225
        %1227 = vmatmul.bf16.gmra.mxu0 %v1086
        %v1228 = vpop.f32.mrf.mxu0
        %v1229 = vadd.f32 %v1013, %v1228
        %v1230 = vpop.f32.mrf.mxu0
        %v1231 = vadd.f32 %v1013, %v1230
        %1232 = vmatmul.bf16.gmra.mxu0 %v1089
        %v1233 = vpop.f32.mrf.mxu0
        %v1234 = vadd.f32 %v1013, %v1233
        %v1235 = vpop.f32.mrf.mxu0
        %v1236 = vadd.f32 %v1013, %v1235
        %1237 = vmatmul.bf16.gmra.mxu0 %v1092
        %v1238 = vpop.f32.mrf.mxu0
        %v1239 = vadd.f32 %v1013, %v1238
        %v1240 = vpop.f32.mrf.mxu0
        %v1241 = vadd.f32 %v1013, %v1240
        %1242 = vmatmul.bf16.gmra.mxu0 %v1095
        %v1243 = vpop.f32.mrf.mxu0
        %v1244 = vadd.f32 %v1013, %v1243
        %v1245 = vpop.f32.mrf.mxu0
        %v1246 = vadd.f32 %v1013, %v1245
        %1247 = vmatmul.bf16.gmra.mxu0 %v1098
        %v1248 = vpop.f32.mrf.mxu0
        %v1249 = vadd.f32 %v1013, %v1248
        %v1250 = vpop.f32.mrf.mxu0
        %v1251 = vadd.f32 %v1013, %v1250
        %1252 = vmatmul.bf16.gmra.mxu0 %v1101
        %v1253 = vpop.f32.mrf.mxu0
        %v1254 = vadd.f32 %v1013, %v1253
        %v1255 = vpop.f32.mrf.mxu0
        %v1256 = vadd.f32 %v1013, %v1255
        %1257 = vmatmul.bf16.gmra.mxu0 %v1104
        %v1258 = vpop.f32.mrf.mxu0
        %v1259 = vadd.f32 %v1013, %v1258
        %v1260 = vpop.f32.mrf.mxu0
        %v1261 = vadd.f32 %v1013, %v1260
        %1262 = vmatmul.bf16.gmra.mxu0 %v1107
        %v1263 = vpop.f32.mrf.mxu0
        %v1264 = vadd.f32 %v1013, %v1263
        %v1265 = vpop.f32.mrf.mxu0
        %v1266 = vadd.f32 %v1013, %v1265
        %1267 = vmatmul.bf16.gmra.mxu0 %v1110
        %v1268 = vpop.f32.mrf.mxu0
        %v1269 = vadd.f32 %v1013, %v1268
        %v1270 = vpop.f32.mrf.mxu0
        %v1271 = vadd.f32 %v1013, %v1270
        %1272 = vmatmul.bf16.gmra.mxu0 %v1113
        %v1273 = vpop.f32.mrf.mxu0
        %v1274 = vadd.f32 %v1013, %v1273
        %v1275 = vpop.f32.mrf.mxu0
        %v1276 = vadd.f32 %v1013, %v1275
        %1277 = vmatmul.bf16.gmra.mxu0 %v1116
        %v1278 = vpop.f32.mrf.mxu0
        %v1279 = vadd.f32 %v1013, %v1278
        %v1280 = vpop.f32.mrf.mxu0
        %v1281 = vadd.f32 %v1013, %v1280
        %1282 = vmatmul.bf16.gmra.mxu0 %v1119
        %v1283 = vpop.f32.mrf.mxu0
        %v1284 = vadd.f32 %v1013, %v1283
        %v1285 = vpop.f32.mrf.mxu0
        %v1286 = vadd.f32 %v1013, %v1285
        %1287 = vmatmul.bf16.gmra.mxu0 %v1122
        %v1288 = vpop.f32.mrf.mxu0
        %v1289 = vadd.f32 %v1013, %v1288
        %v1290 = vpop.f32.mrf.mxu0
        %v1291 = vadd.f32 %v1013, %v1290
        %1292 = vdwg.mxu0
        %vm1293 = vcmp.ge.f32.partialorder %v1134, 0.0
        %vm1294 = vcmp.ge.f32.partialorder %v1136, 0.0
        %vm1295 = vcmp.ge.f32.partialorder %v1139, 0.0
        %vm1296 = vcmp.ge.f32.partialorder %v1141, 0.0
        %vm1297 = vcmp.ge.f32.partialorder %v1144, 0.0
        %vm1298 = vcmp.ge.f32.partialorder %v1146, 0.0
        %vm1299 = vcmp.ge.f32.partialorder %v1149, 0.0
        %vm1300 = vcmp.ge.f32.partialorder %v1151, 0.0
        %vm1301 = vcmp.ge.f32.partialorder %v1154, 0.0
        %vm1302 = vcmp.ge.f32.partialorder %v1156, 0.0
        %vm1303 = vcmp.ge.f32.partialorder %v1159, 0.0
        %vm1304 = vcmp.ge.f32.partialorder %v1161, 0.0
        %vm1305 = vcmp.ge.f32.partialorder %v1164, 0.0
        %vm1306 = vcmp.ge.f32.partialorder %v1166, 0.0
        %vm1307 = vcmp.ge.f32.partialorder %v1169, 0.0
        %vm1308 = vcmp.ge.f32.partialorder %v1171, 0.0
        %vm1309 = vcmp.ge.f32.partialorder %v1174, 0.0
        %vm1310 = vcmp.ge.f32.partialorder %v1176, 0.0
        %vm1311 = vcmp.ge.f32.partialorder %v1179, 0.0
        %vm1312 = vcmp.ge.f32.partialorder %v1181, 0.0
        %vm1313 = vcmp.ge.f32.partialorder %v1184, 0.0
        %vm1314 = vcmp.ge.f32.partialorder %v1186, 0.0
        %vm1315 = vcmp.ge.f32.partialorder %v1189, 0.0
        %vm1316 = vcmp.ge.f32.partialorder %v1191, 0.0
        %vm1317 = vcmp.ge.f32.partialorder %v1194, 0.0
        %vm1318 = vcmp.ge.f32.partialorder %v1196, 0.0
        %vm1319 = vcmp.ge.f32.partialorder %v1199, 0.0
        %vm1320 = vcmp.ge.f32.partialorder %v1201, 0.0
        %vm1321 = vcmp.ge.f32.partialorder %v1204, 0.0
        %vm1322 = vcmp.ge.f32.partialorder %v1206, 0.0
        %vm1323 = vcmp.ge.f32.partialorder %v1209, 0.0
        %vm1324 = vcmp.ge.f32.partialorder %v1211, 0.0
        %vm1325 = vcmp.ge.f32.partialorder %v1214, 0.0
        %vm1326 = vcmp.ge.f32.partialorder %v1216, 0.0
        %vm1327 = vcmp.ge.f32.partialorder %v1219, 0.0
        %vm1328 = vcmp.ge.f32.partialorder %v1221, 0.0
        %vm1329 = vcmp.ge.f32.partialorder %v1224, 0.0
        %vm1330 = vcmp.ge.f32.partialorder %v1226, 0.0
        %vm1331 = vcmp.ge.f32.partialorder %v1229, 0.0
        %vm1332 = vcmp.ge.f32.partialorder %v1231, 0.0
        %vm1333 = vcmp.ge.f32.partialorder %v1234, 0.0
        %vm1334 = vcmp.ge.f32.partialorder %v1236, 0.0
        %vm1335 = vcmp.ge.f32.partialorder %v1239, 0.0
        %vm1336 = vcmp.ge.f32.partialorder %v1241, 0.0
        %vm1337 = vcmp.ge.f32.partialorder %v1244, 0.0
        %vm1338 = vcmp.ge.f32.partialorder %v1246, 0.0
        %vm1339 = vcmp.ge.f32.partialorder %v1249, 0.0
        %vm1340 = vcmp.ge.f32.partialorder %v1251, 0.0
        %vm1341 = vcmp.ge.f32.partialorder %v1254, 0.0
        %vm1342 = vcmp.ge.f32.partialorder %v1256, 0.0
        %vm1343 = vcmp.ge.f32.partialorder %v1259, 0.0
        %vm1344 = vcmp.ge.f32.partialorder %v1261, 0.0
        %vm1345 = vcmp.ge.f32.partialorder %v1264, 0.0
        %vm1346 = vcmp.ge.f32.partialorder %v1266, 0.0
        %vm1347 = vcmp.ge.f32.partialorder %v1269, 0.0
        %vm1348 = vcmp.ge.f32.partialorder %v1271, 0.0
        %vm1349 = vcmp.ge.f32.partialorder %v1274, 0.0
        %vm1350 = vcmp.ge.f32.partialorder %v1276, 0.0
        %vm1351 = vcmp.ge.f32.partialorder %v1279, 0.0
        %vm1352 = vcmp.ge.f32.partialorder %v1281, 0.0
        %vm1353 = vcmp.ge.f32.partialorder %v1284, 0.0
        %vm1354 = vcmp.ge.f32.partialorder %v1286, 0.0
        %vm1355 = vcmp.ge.f32.partialorder %v1289, 0.0
        %vm1356 = vcmp.ge.f32.partialorder %v1291, 0.0
        %v1357 = vmul.f32 %v1134, 0.1
        %v1358 = vmul.f32 %v1136, 0.1
        %v1359 = vmul.f32 %v1139, 0.1
        %v1360 = vmul.f32 %v1141, 0.1
        %v1361 = vmul.f32 %v1144, 0.1
        %v1362 = vmul.f32 %v1146, 0.1
        %v1363 = vmul.f32 %v1149, 0.1
        %v1364 = vmul.f32 %v1151, 0.1
        %v1365 = vmul.f32 %v1154, 0.1
        %v1366 = vmul.f32 %v1156, 0.1
        %v1367 = vmul.f32 %v1159, 0.1
        %v1368 = vmul.f32 %v1161, 0.1
        %v1369 = vmul.f32 %v1164, 0.1
        %v1370 = vmul.f32 %v1166, 0.1
        %v1371 = vmul.f32 %v1169, 0.1
        %v1372 = vmul.f32 %v1171, 0.1
        %v1373 = vmul.f32 %v1174, 0.1
        %v1374 = vmul.f32 %v1176, 0.1
        %v1375 = vmul.f32 %v1179, 0.1
        %v1376 = vmul.f32 %v1181, 0.1
        %v1377 = vmul.f32 %v1184, 0.1
        %v1378 = vmul.f32 %v1186, 0.1
        %v1379 = vmul.f32 %v1189, 0.1
        %v1380 = vmul.f32 %v1191, 0.1
        %v1381 = vmul.f32 %v1194, 0.1
        %v1382 = vmul.f32 %v1196, 0.1
        %v1383 = vmul.f32 %v1199, 0.1
        %v1384 = vmul.f32 %v1201, 0.1
        %v1385 = vmul.f32 %v1204, 0.1
        %v1386 = vmul.f32 %v1206, 0.1
        %v1387 = vmul.f32 %v1209, 0.1
        %v1388 = vmul.f32 %v1211, 0.1
        %v1389 = vmul.f32 %v1214, 0.1
        %v1390 = vmul.f32 %v1216, 0.1
        %v1391 = vmul.f32 %v1219, 0.1
        %v1392 = vmul.f32 %v1221, 0.1
        %v1393 = vmul.f32 %v1224, 0.1
        %v1394 = vmul.f32 %v1226, 0.1
        %v1395 = vmul.f32 %v1229, 0.1
        %v1396 = vmul.f32 %v1231, 0.1
        %v1397 = vmul.f32 %v1234, 0.1
        %v1398 = vmul.f32 %v1236, 0.1
        %v1399 = vmul.f32 %v1239, 0.1
        %v1400 = vmul.f32 %v1241, 0.1
        %v1401 = vmul.f32 %v1244, 0.1
        %v1402 = vmul.f32 %v1246, 0.1
        %v1403 = vmul.f32 %v1249, 0.1
        %v1404 = vmul.f32 %v1251, 0.1
        %v1405 = vmul.f32 %v1254, 0.1
        %v1406 = vmul.f32 %v1256, 0.1
        %v1407 = vmul.f32 %v1259, 0.1
        %v1408 = vmul.f32 %v1261, 0.1
        %v1409 = vmul.f32 %v1264, 0.1
        %v1410 = vmul.f32 %v1266, 0.1
        %v1411 = vmul.f32 %v1269, 0.1
        %v1412 = vmul.f32 %v1271, 0.1
        %v1413 = vmul.f32 %v1274, 0.1
        %v1414 = vmul.f32 %v1276, 0.1
        %v1415 = vmul.f32 %v1279, 0.1
        %v1416 = vmul.f32 %v1281, 0.1
        %v1417 = vmul.f32 %v1284, 0.1
        %v1418 = vmul.f32 %v1286, 0.1
        %v1419 = vmul.f32 %v1289, 0.1
        %v1420 = vmul.f32 %v1291, 0.1
        %v1421 = vsel %vm1293, %v1134, %v1357
        %v1422 = vsel %vm1294, %v1136, %v1358
        %v1423 = vsel %vm1295, %v1139, %v1359
        %v1424 = vsel %vm1296, %v1141, %v1360
        %v1425 = vsel %vm1297, %v1144, %v1361
        %v1426 = vsel %vm1298, %v1146, %v1362
        %v1427 = vsel %vm1299, %v1149, %v1363
        %v1428 = vsel %vm1300, %v1151, %v1364
        %v1429 = vsel %vm1301, %v1154, %v1365
        %v1430 = vsel %vm1302, %v1156, %v1366
        %v1431 = vsel %vm1303, %v1159, %v1367
        %v1432 = vsel %vm1304, %v1161, %v1368
        %v1433 = vsel %vm1305, %v1164, %v1369
        %v1434 = vsel %vm1306, %v1166, %v1370
        %v1435 = vsel %vm1307, %v1169, %v1371
        %v1436 = vsel %vm1308, %v1171, %v1372
        %v1437 = vsel %vm1309, %v1174, %v1373
        %v1438 = vsel %vm1310, %v1176, %v1374
        %v1439 = vsel %vm1311, %v1179, %v1375
        %v1440 = vsel %vm1312, %v1181, %v1376
        %v1441 = vsel %vm1313, %v1184, %v1377
        %v1442 = vsel %vm1314, %v1186, %v1378
        %v1443 = vsel %vm1315, %v1189, %v1379
        %v1444 = vsel %vm1316, %v1191, %v1380
        %v1445 = vsel %vm1317, %v1194, %v1381
        %v1446 = vsel %vm1318, %v1196, %v1382
        %v1447 = vsel %vm1319, %v1199, %v1383
        %v1448 = vsel %vm1320, %v1201, %v1384
        %v1449 = vsel %vm1321, %v1204, %v1385
        %v1450 = vsel %vm1322, %v1206, %v1386
        %v1451 = vsel %vm1323, %v1209, %v1387
        %v1452 = vsel %vm1324, %v1211, %v1388
        %v1453 = vsel %vm1325, %v1214, %v1389
        %v1454 = vsel %vm1326, %v1216, %v1390
        %v1455 = vsel %vm1327, %v1219, %v1391
        %v1456 = vsel %vm1328, %v1221, %v1392
        %v1457 = vsel %vm1329, %v1224, %v1393
        %v1458 = vsel %vm1330, %v1226, %v1394
        %v1459 = vsel %vm1331, %v1229, %v1395
        %v1460 = vsel %vm1332, %v1231, %v1396
        %v1461 = vsel %vm1333, %v1234, %v1397
        %v1462 = vsel %vm1334, %v1236, %v1398
        %v1463 = vsel %vm1335, %v1239, %v1399
        %v1464 = vsel %vm1336, %v1241, %v1400
        %v1465 = vsel %vm1337, %v1244, %v1401
        %v1466 = vsel %vm1338, %v1246, %v1402
        %v1467 = vsel %vm1339, %v1249, %v1403
        %v1468 = vsel %vm1340, %v1251, %v1404
        %v1469 = vsel %vm1341, %v1254, %v1405
        %v1470 = vsel %vm1342, %v1256, %v1406
        %v1471 = vsel %vm1343, %v1259, %v1407
        %v1472 = vsel %vm1344, %v1261, %v1408
        %v1473 = vsel %vm1345, %v1264, %v1409
        %v1474 = vsel %vm1346, %v1266, %v1410
        %v1475 = vsel %vm1347, %v1269, %v1411
        %v1476 = vsel %vm1348, %v1271, %v1412
        %v1477 = vsel %vm1349, %v1274, %v1413
        %v1478 = vsel %vm1350, %v1276, %v1414
        %v1479 = vsel %vm1351, %v1279, %v1415
        %v1480 = vsel %vm1352, %v1281, %v1416
        %v1481 = vsel %vm1353, %v1284, %v1417
        %v1482 = vsel %vm1354, %v1286, %v1418
        %v1483 = vsel %vm1355, %v1289, %v1419
        %v1484 = vsel %vm1356, %v1291, %v1420
        %1549 = vrot.lane.b32.xlu0 %v911, 64
        %v1550 = vpop.permute.xlu0 %1549
        %1551 = vrot.lane.b32.xlu0 %v912, 64
        %v1552 = vpop.permute.xlu0 %1551
        %1553 = vrot.lane.b32.xlu0 %v913, 64
        %v1554 = vpop.permute.xlu0 %1553
        %1555 = vrot.lane.b32.xlu0 %v914, 64
        %v1556 = vpop.permute.xlu0 %1555
        %1557 = vrot.lane.b32.xlu0 %v915, 64
        %v1558 = vpop.permute.xlu0 %1557
        %1559 = vrot.lane.b32.xlu0 %v916, 64
        %v1560 = vpop.permute.xlu0 %1559
        %1561 = vrot.lane.b32.xlu0 %v917, 64
        %v1562 = vpop.permute.xlu0 %1561
        %1563 = vrot.lane.b32.xlu0 %v918, 64
        %v1564 = vpop.permute.xlu0 %1563
        %1565 = vrot.lane.b32.xlu0 %v919, 64
        %v1566 = vpop.permute.xlu0 %1565
        %1567 = vrot.lane.b32.xlu0 %v920, 64
        %v1568 = vpop.permute.xlu0 %1567
        %1569 = vrot.lane.b32.xlu0 %v921, 64
        %v1570 = vpop.permute.xlu0 %1569
        %1571 = vrot.lane.b32.xlu0 %v922, 64
        %v1572 = vpop.permute.xlu0 %1571
        %1573 = vrot.lane.b32.xlu0 %v923, 64
        %v1574 = vpop.permute.xlu0 %1573
        %1575 = vrot.lane.b32.xlu0 %v924, 64
        %v1576 = vpop.permute.xlu0 %1575
        %1577 = vrot.lane.b32.xlu0 %v925, 64
        %v1578 = vpop.permute.xlu0 %1577
        %1579 = vrot.lane.b32.xlu0 %v926, 64
        %v1580 = vpop.permute.xlu0 %1579
        %1581 = vrot.lane.b32.xlu0 %v927, 64
        %v1582 = vpop.permute.xlu0 %1581
        %1583 = vrot.lane.b32.xlu0 %v928, 64
        %v1584 = vpop.permute.xlu0 %1583
        %1585 = vrot.lane.b32.xlu0 %v929, 64
        %v1586 = vpop.permute.xlu0 %1585
        %1587 = vrot.lane.b32.xlu0 %v930, 64
        %v1588 = vpop.permute.xlu0 %1587
        %1589 = vrot.lane.b32.xlu0 %v931, 64
        %v1590 = vpop.permute.xlu0 %1589
        %1591 = vrot.lane.b32.xlu0 %v932, 64
        %v1592 = vpop.permute.xlu0 %1591
        %1593 = vrot.lane.b32.xlu0 %v933, 64
        %v1594 = vpop.permute.xlu0 %1593
        %1595 = vrot.lane.b32.xlu0 %v934, 64
        %v1596 = vpop.permute.xlu0 %1595
        %1597 = vrot.lane.b32.xlu0 %v935, 64
        %v1598 = vpop.permute.xlu0 %1597
        %1599 = vrot.lane.b32.xlu0 %v936, 64
        %v1600 = vpop.permute.xlu0 %1599
        %1601 = vrot.lane.b32.xlu0 %v937, 64
        %v1602 = vpop.permute.xlu0 %1601
        %1603 = vrot.lane.b32.xlu0 %v938, 64
        %v1604 = vpop.permute.xlu0 %1603
        %1605 = vrot.lane.b32.xlu0 %v939, 64
        %v1606 = vpop.permute.xlu0 %1605
        %1607 = vrot.lane.b32.xlu0 %v940, 64
        %v1608 = vpop.permute.xlu0 %1607
        %1609 = vrot.lane.b32.xlu0 %v941, 64
        %v1610 = vpop.permute.xlu0 %1609
        %1611 = vrot.lane.b32.xlu0 %v942, 64
        %v1612 = vpop.permute.xlu0 %1611
        %1613 = vrot.lane.b32.xlu0 %v943, 64
        %v1614 = vpop.permute.xlu0 %1613
        %1615 = vrot.lane.b32.xlu0 %v944, 64
        %v1616 = vpop.permute.xlu0 %1615
        %1617 = vrot.lane.b32.xlu0 %v945, 64
        %v1618 = vpop.permute.xlu0 %1617
        %1619 = vrot.lane.b32.xlu0 %v946, 64
        %v1620 = vpop.permute.xlu0 %1619
        %1621 = vrot.lane.b32.xlu0 %v947, 64
        %v1622 = vpop.permute.xlu0 %1621
        %1623 = vrot.lane.b32.xlu0 %v948, 64
        %v1624 = vpop.permute.xlu0 %1623
        %1625 = vrot.lane.b32.xlu0 %v949, 64
        %v1626 = vpop.permute.xlu0 %1625
        %1627 = vrot.lane.b32.xlu0 %v950, 64
        %v1628 = vpop.permute.xlu0 %1627
        %1629 = vrot.lane.b32.xlu0 %v951, 64
        %v1630 = vpop.permute.xlu0 %1629
        %1631 = vrot.lane.b32.xlu0 %v952, 64
        %v1632 = vpop.permute.xlu0 %1631
        %1633 = vrot.lane.b32.xlu0 %v953, 64
        %v1634 = vpop.permute.xlu0 %1633
        %1635 = vrot.lane.b32.xlu0 %v954, 64
        %v1636 = vpop.permute.xlu0 %1635
        %1637 = vrot.lane.b32.xlu0 %v955, 64
        %v1638 = vpop.permute.xlu0 %1637
        %1639 = vrot.lane.b32.xlu0 %v956, 64
        %v1640 = vpop.permute.xlu0 %1639
        %1641 = vrot.lane.b32.xlu0 %v957, 64
        %v1642 = vpop.permute.xlu0 %1641
        %1643 = vrot.lane.b32.xlu0 %v958, 64
        %v1644 = vpop.permute.xlu0 %1643
        %1645 = vrot.lane.b32.xlu0 %v959, 64
        %v1646 = vpop.permute.xlu0 %1645
        %1647 = vrot.lane.b32.xlu0 %v960, 64
        %v1648 = vpop.permute.xlu0 %1647
        %1649 = vrot.lane.b32.xlu0 %v961, 64
        %v1650 = vpop.permute.xlu0 %1649
        %1651 = vrot.lane.b32.xlu0 %v962, 64
        %v1652 = vpop.permute.xlu0 %1651
        %1653 = vrot.lane.b32.xlu0 %v963, 64
        %v1654 = vpop.permute.xlu0 %1653
        %1655 = vrot.lane.b32.xlu0 %v964, 64
        %v1656 = vpop.permute.xlu0 %1655
        %1657 = vrot.lane.b32.xlu0 %v965, 64
        %v1658 = vpop.permute.xlu0 %1657
        %1659 = vrot.lane.b32.xlu0 %v966, 64
        %v1660 = vpop.permute.xlu0 %1659
        %1661 = vrot.lane.b32.xlu0 %v967, 64
        %v1662 = vpop.permute.xlu0 %1661
        %1663 = vrot.lane.b32.xlu0 %v968, 64
        %v1664 = vpop.permute.xlu0 %1663
        %1665 = vrot.lane.b32.xlu0 %v969, 64
        %v1666 = vpop.permute.xlu0 %1665
        %1667 = vrot.lane.b32.xlu0 %v970, 64
        %v1668 = vpop.permute.xlu0 %1667
        %1669 = vrot.lane.b32.xlu0 %v971, 64
        %v1670 = vpop.permute.xlu0 %1669
        %1671 = vrot.lane.b32.xlu0 %v972, 64
        %v1672 = vpop.permute.xlu0 %1671
        %1673 = vrot.lane.b32.xlu0 %v973, 64
        %v1674 = vpop.permute.xlu0 %1673
        %1675 = vrot.lane.b32.xlu0 %v974, 64
        %v1676 = vpop.permute.xlu0 %1675
        %vm1741 = vcmask 523264
        %v1742 = vsel %vm1741, %v1421, %v1550
        %v1743 = vsel %vm1741, %v1422, %v1552
        %v1744 = vsel %vm1741, %v1423, %v1554
        %v1745 = vsel %vm1741, %v1424, %v1556
        %v1746 = vsel %vm1741, %v1425, %v1558
        %v1747 = vsel %vm1741, %v1426, %v1560
        %v1748 = vsel %vm1741, %v1427, %v1562
        %v1749 = vsel %vm1741, %v1428, %v1564
        %v1750 = vsel %vm1741, %v1429, %v1566
        %v1751 = vsel %vm1741, %v1430, %v1568
        %v1752 = vsel %vm1741, %v1431, %v1570
        %v1753 = vsel %vm1741, %v1432, %v1572
        %v1754 = vsel %vm1741, %v1433, %v1574
        %v1755 = vsel %vm1741, %v1434, %v1576
        %v1756 = vsel %vm1741, %v1435, %v1578
        %v1757 = vsel %vm1741, %v1436, %v1580
        %v1758 = vsel %vm1741, %v1437, %v1582
        %v1759 = vsel %vm1741, %v1438, %v1584
        %v1760 = vsel %vm1741, %v1439, %v1586
        %v1761 = vsel %vm1741, %v1440, %v1588
        %v1762 = vsel %vm1741, %v1441, %v1590
        %v1763 = vsel %vm1741, %v1442, %v1592
        %v1764 = vsel %vm1741, %v1443, %v1594
        %v1765 = vsel %vm1741, %v1444, %v1596
        %v1766 = vsel %vm1741, %v1445, %v1598
        %v1767 = vsel %vm1741, %v1446, %v1600
        %v1768 = vsel %vm1741, %v1447, %v1602
        %v1769 = vsel %vm1741, %v1448, %v1604
        %v1770 = vsel %vm1741, %v1449, %v1606
        %v1771 = vsel %vm1741, %v1450, %v1608
        %v1772 = vsel %vm1741, %v1451, %v1610
        %v1773 = vsel %vm1741, %v1452, %v1612
        %v1774 = vsel %vm1741, %v1453, %v1614
        %v1775 = vsel %vm1741, %v1454, %v1616
        %v1776 = vsel %vm1741, %v1455, %v1618
        %v1777 = vsel %vm1741, %v1456, %v1620
        %v1778 = vsel %vm1741, %v1457, %v1622
        %v1779 = vsel %vm1741, %v1458, %v1624
        %v1780 = vsel %vm1741, %v1459, %v1626
        %v1781 = vsel %vm1741, %v1460, %v1628
        %v1782 = vsel %vm1741, %v1461, %v1630
        %v1783 = vsel %vm1741, %v1462, %v1632
        %v1784 = vsel %vm1741, %v1463, %v1634
        %v1785 = vsel %vm1741, %v1464, %v1636
        %v1786 = vsel %vm1741, %v1465, %v1638
        %v1787 = vsel %vm1741, %v1466, %v1640
        %v1788 = vsel %vm1741, %v1467, %v1642
        %v1789 = vsel %vm1741, %v1468, %v1644
        %v1790 = vsel %vm1741, %v1469, %v1646
        %v1791 = vsel %vm1741, %v1470, %v1648
        %v1792 = vsel %vm1741, %v1471, %v1650
        %v1793 = vsel %vm1741, %v1472, %v1652
        %v1794 = vsel %vm1741, %v1473, %v1654
        %v1795 = vsel %vm1741, %v1474, %v1656
        %v1796 = vsel %vm1741, %v1475, %v1658
        %v1797 = vsel %vm1741, %v1476, %v1660
        %v1798 = vsel %vm1741, %v1477, %v1662
        %v1799 = vsel %vm1741, %v1478, %v1664
        %v1800 = vsel %vm1741, %v1479, %v1666
        %v1801 = vsel %vm1741, %v1480, %v1668
        %v1802 = vsel %vm1741, %v1481, %v1670
        %v1803 = vsel %vm1741, %v1482, %v1672
        %v1804 = vsel %vm1741, %v1483, %v1674
        %v1805 = vsel %vm1741, %v1484, %v1676
        %v1806 = vpack.c.bf16 %v1743, %v1742
        %v1807 = vpack.c.bf16 %v1745, %v1744
        %v1808 = vpack.c.bf16 %v1747, %v1746
        %v1809 = vpack.c.bf16 %v1749, %v1748
        %v1810 = vpack.c.bf16 %v1751, %v1750
        %v1811 = vpack.c.bf16 %v1753, %v1752
        %v1812 = vpack.c.bf16 %v1755, %v1754
        %v1813 = vpack.c.bf16 %v1757, %v1756
        %v1814 = vpack.c.bf16 %v1759, %v1758
        %v1815 = vpack.c.bf16 %v1761, %v1760
        %v1816 = vpack.c.bf16 %v1763, %v1762
        %v1817 = vpack.c.bf16 %v1765, %v1764
        %v1818 = vpack.c.bf16 %v1767, %v1766
        %v1819 = vpack.c.bf16 %v1769, %v1768
        %v1820 = vpack.c.bf16 %v1771, %v1770
        %v1821 = vpack.c.bf16 %v1773, %v1772
        %v1822 = vpack.c.bf16 %v1775, %v1774
        %v1823 = vpack.c.bf16 %v1777, %v1776
        %v1824 = vpack.c.bf16 %v1779, %v1778
        %v1825 = vpack.c.bf16 %v1781, %v1780
        %v1826 = vpack.c.bf16 %v1783, %v1782
        %v1827 = vpack.c.bf16 %v1785, %v1784
        %v1828 = vpack.c.bf16 %v1787, %v1786
        %v1829 = vpack.c.bf16 %v1789, %v1788
        %v1830 = vpack.c.bf16 %v1791, %v1790
        %v1831 = vpack.c.bf16 %v1793, %v1792
        %v1832 = vpack.c.bf16 %v1795, %v1794
        %v1833 = vpack.c.bf16 %v1797, %v1796
        %v1834 = vpack.c.bf16 %v1799, %v1798
        %v1835 = vpack.c.bf16 %v1801, %v1800
        %v1836 = vpack.c.bf16 %v1803, %v1802
        %v1837 = vpack.c.bf16 %v1805, %v1804
        %v1838 = vld [vmem:[%s5] sm:$0xf]
        %v1839 = vld [vmem:[%s5 + $0x4] sm:$0xf]
        %v1840 = vld [vmem:[%s5 + $0x8] sm:$0xf]
        %v1841 = vld [vmem:[%s5 + $0xc] sm:$0xf]
        %v1842 = vld [vmem:[%s5 + $0x10] sm:$0xf]
        %v1843 = vld [vmem:[%s5 + $0x14] sm:$0xf]
        %v1844 = vld [vmem:[%s5 + $0x18] sm:$0xf]
        %v1845 = vld [vmem:[%s5 + $0x1c] sm:$0xf]
        %v1846 = vld [vmem:[%s5 + $0x20] sm:$0xf]
        %v1847 = vld [vmem:[%s5 + $0x24] sm:$0xf]
        %v1848 = vld [vmem:[%s5 + $0x28] sm:$0xf]
        %v1849 = vld [vmem:[%s5 + $0x2c] sm:$0xf]
        %v1850 = vld [vmem:[%s6] sm:$0x1]
        %v1852 = vperm.slane %v1850, 0
        %v1866 = vunpack.c.l.b16 %v1838
        %v1867 = vunpack.c.l.b16 %v1839
        %v1868 = vunpack.c.l.b16 %v1840
        %v1869 = vunpack.c.l.b16 %v1841
        %v1870 = vunpack.c.l.b16 %v1842
        %v1871 = vunpack.c.l.b16 %v1843
        %v1872 = vunpack.c.l.b16 %v1844
        %v1873 = vunpack.c.l.b16 %v1845
        %v1874 = vunpack.c.l.b16 %v1846
        %v1875 = vunpack.c.l.b16 %v1847
        %v1876 = vunpack.c.l.b16 %v1848
        %v1877 = vunpack.c.l.b16 %v1849
        %v1878 = vpack.c.b16 %v1867, %v1866
        %v1879 = vpack.c.b16 %v1869, %v1868
        %v1880 = vpack.c.b16 %v1871, %v1870
        %v1881 = vpack.c.b16 %v1873, %v1872
        %v1882 = vpack.c.b16 %v1875, %v1874
        %v1883 = vpack.c.b16 %v1877, %v1876
        %vm1890 = vcmask 785408
        %v1892 = vsel %vm1890, %v1806, 0
        %v1895 = vsel %vm1890, %v1807, 0
        %v1898 = vsel %vm1890, %v1808, 0
        %v1901 = vsel %vm1890, %v1809, 0
        %v1904 = vsel %vm1890, %v1810, 0
        %v1907 = vsel %vm1890, %v1811, 0
        %v1910 = vsel %vm1890, %v1812, 0
        %v1913 = vsel %vm1890, %v1813, 0
        %v1916 = vsel %vm1890, %v1814, 0
        %v1919 = vsel %vm1890, %v1815, 0
        %v1922 = vsel %vm1890, %v1816, 0
        %v1925 = vsel %vm1890, %v1817, 0
        %v1928 = vsel %vm1890, %v1818, 0
        %v1931 = vsel %vm1890, %v1819, 0
        %v1934 = vsel %vm1890, %v1820, 0
        %v1937 = vsel %vm1890, %v1821, 0
        %v1940 = vsel %vm1890, %v1822, 0
        %v1943 = vsel %vm1890, %v1823, 0
        %v1946 = vsel %vm1890, %v1824, 0
        %v1949 = vsel %vm1890, %v1825, 0
        %v1952 = vsel %vm1890, %v1826, 0
        %v1955 = vsel %vm1890, %v1827, 0
        %v1958 = vsel %vm1890, %v1828, 0
        %v1961 = vsel %vm1890, %v1829, 0
        %v1964 = vsel %vm1890, %v1830, 0
        %v1967 = vsel %vm1890, %v1831, 0
        %v1970 = vsel %vm1890, %v1832, 0
        %v1973 = vsel %vm1890, %v1833, 0
        %v1976 = vsel %vm1890, %v1834, 0
        %v1979 = vsel %vm1890, %v1835, 0
        %v1982 = vsel %vm1890, %v1836, 0
        %v1985 = vsel %vm1890, %v1837, 0
        %1987 = vmatpush.bf16.msra.mxu0 0
        %1988 = vmatpush.bf16.msra.mxu0 0
        %1989 = vmatpush.bf16.msra.mxu0 %v1883
        %1990 = vmatpush.bf16.msra.mxu0 %v1882
        %1991 = vmatpush.bf16.msra.mxu0 %v1881
        %1992 = vmatpush.bf16.msra.mxu0 %v1880
        %1993 = vmatpush.bf16.msra.mxu0 %v1879
        %1994 = vmatpush.bf16.msra.mxu0 %v1878
        %1995 = vmatmul.bf16.gmra.mxu0 %v1892
        %v1996 = vpop.f32.mrf.mxu0
        %v1997 = vadd.f32 %v1852, %v1996
        %v1998 = vpop.f32.mrf.mxu0
        %v1999 = vadd.f32 %v1852, %v1998
        %2000 = vmatmul.bf16.gmra.mxu0 %v1895
        %v2001 = vpop.f32.mrf.mxu0
        %v2002 = vadd.f32 %v1852, %v2001
        %v2003 = vpop.f32.mrf.mxu0
        %v2004 = vadd.f32 %v1852, %v2003
        %2005 = vmatmul.bf16.gmra.mxu0 %v1898
        %v2006 = vpop.f32.mrf.mxu0
        %v2007 = vadd.f32 %v1852, %v2006
        %v2008 = vpop.f32.mrf.mxu0
        %v2009 = vadd.f32 %v1852, %v2008
        %2010 = vmatmul.bf16.gmra.mxu0 %v1901
        %v2011 = vpop.f32.mrf.mxu0
        %v2012 = vadd.f32 %v1852, %v2011
        %v2013 = vpop.f32.mrf.mxu0
        %v2014 = vadd.f32 %v1852, %v2013
        %2015 = vmatmul.bf16.gmra.mxu0 %v1904
        %v2016 = vpop.f32.mrf.mxu0
        %v2017 = vadd.f32 %v1852, %v2016
        %v2018 = vpop.f32.mrf.mxu0
        %v2019 = vadd.f32 %v1852, %v2018
        %2020 = vmatmul.bf16.gmra.mxu0 %v1907
        %v2021 = vpop.f32.mrf.mxu0
        %v2022 = vadd.f32 %v1852, %v2021
        %v2023 = vpop.f32.mrf.mxu0
        %v2024 = vadd.f32 %v1852, %v2023
        %2025 = vmatmul.bf16.gmra.mxu0 %v1910
        %v2026 = vpop.f32.mrf.mxu0
        %v2027 = vadd.f32 %v1852, %v2026
        %v2028 = vpop.f32.mrf.mxu0
        %v2029 = vadd.f32 %v1852, %v2028
        %2030 = vmatmul.bf16.gmra.mxu0 %v1913
        %v2031 = vpop.f32.mrf.mxu0
        %v2032 = vadd.f32 %v1852, %v2031
        %v2033 = vpop.f32.mrf.mxu0
        %v2034 = vadd.f32 %v1852, %v2033
        %2035 = vmatmul.bf16.gmra.mxu0 %v1916
        %v2036 = vpop.f32.mrf.mxu0
        %v2037 = vadd.f32 %v1852, %v2036
        %v2038 = vpop.f32.mrf.mxu0
        %v2039 = vadd.f32 %v1852, %v2038
        %2040 = vmatmul.bf16.gmra.mxu0 %v1919
        %v2041 = vpop.f32.mrf.mxu0
        %v2042 = vadd.f32 %v1852, %v2041
        %v2043 = vpop.f32.mrf.mxu0
        %v2044 = vadd.f32 %v1852, %v2043
        %2045 = vmatmul.bf16.gmra.mxu0 %v1922
        %v2046 = vpop.f32.mrf.mxu0
        %v2047 = vadd.f32 %v1852, %v2046
        %v2048 = vpop.f32.mrf.mxu0
        %v2049 = vadd.f32 %v1852, %v2048
        %2050 = vmatmul.bf16.gmra.mxu0 %v1925
        %v2051 = vpop.f32.mrf.mxu0
        %v2052 = vadd.f32 %v1852, %v2051
        %v2053 = vpop.f32.mrf.mxu0
        %v2054 = vadd.f32 %v1852, %v2053
        %2055 = vmatmul.bf16.gmra.mxu0 %v1928
        %v2056 = vpop.f32.mrf.mxu0
        %v2057 = vadd.f32 %v1852, %v2056
        %v2058 = vpop.f32.mrf.mxu0
        %v2059 = vadd.f32 %v1852, %v2058
        %2060 = vmatmul.bf16.gmra.mxu0 %v1931
        %v2061 = vpop.f32.mrf.mxu0
        %v2062 = vadd.f32 %v1852, %v2061
        %v2063 = vpop.f32.mrf.mxu0
        %v2064 = vadd.f32 %v1852, %v2063
        %2065 = vmatmul.bf16.gmra.mxu0 %v1934
        %v2066 = vpop.f32.mrf.mxu0
        %v2067 = vadd.f32 %v1852, %v2066
        %v2068 = vpop.f32.mrf.mxu0
        %v2069 = vadd.f32 %v1852, %v2068
        %2070 = vmatmul.bf16.gmra.mxu0 %v1937
        %v2071 = vpop.f32.mrf.mxu0
        %v2072 = vadd.f32 %v1852, %v2071
        %v2073 = vpop.f32.mrf.mxu0
        %v2074 = vadd.f32 %v1852, %v2073
        %2075 = vmatmul.bf16.gmra.mxu0 %v1940
        %v2076 = vpop.f32.mrf.mxu0
        %v2077 = vadd.f32 %v1852, %v2076
        %v2078 = vpop.f32.mrf.mxu0
        %v2079 = vadd.f32 %v1852, %v2078
        %2080 = vmatmul.bf16.gmra.mxu0 %v1943
        %v2081 = vpop.f32.mrf.mxu0
        %v2082 = vadd.f32 %v1852, %v2081
        %v2083 = vpop.f32.mrf.mxu0
        %v2084 = vadd.f32 %v1852, %v2083
        %2085 = vmatmul.bf16.gmra.mxu0 %v1946
        %v2086 = vpop.f32.mrf.mxu0
        %v2087 = vadd.f32 %v1852, %v2086
        %v2088 = vpop.f32.mrf.mxu0
        %v2089 = vadd.f32 %v1852, %v2088
        %2090 = vmatmul.bf16.gmra.mxu0 %v1949
        %v2091 = vpop.f32.mrf.mxu0
        %v2092 = vadd.f32 %v1852, %v2091
        %v2093 = vpop.f32.mrf.mxu0
        %v2094 = vadd.f32 %v1852, %v2093
        %2095 = vmatmul.bf16.gmra.mxu0 %v1952
        %v2096 = vpop.f32.mrf.mxu0
        %v2097 = vadd.f32 %v1852, %v2096
        %v2098 = vpop.f32.mrf.mxu0
        %v2099 = vadd.f32 %v1852, %v2098
        %2100 = vmatmul.bf16.gmra.mxu0 %v1955
        %v2101 = vpop.f32.mrf.mxu0
        %v2102 = vadd.f32 %v1852, %v2101
        %v2103 = vpop.f32.mrf.mxu0
        %v2104 = vadd.f32 %v1852, %v2103
        %2105 = vmatmul.bf16.gmra.mxu0 %v1958
        %v2106 = vpop.f32.mrf.mxu0
        %v2107 = vadd.f32 %v1852, %v2106
        %v2108 = vpop.f32.mrf.mxu0
        %v2109 = vadd.f32 %v1852, %v2108
        %2110 = vmatmul.bf16.gmra.mxu0 %v1961
        %v2111 = vpop.f32.mrf.mxu0
        %v2112 = vadd.f32 %v1852, %v2111
        %v2113 = vpop.f32.mrf.mxu0
        %v2114 = vadd.f32 %v1852, %v2113
        %2115 = vmatmul.bf16.gmra.mxu0 %v1964
        %v2116 = vpop.f32.mrf.mxu0
        %v2117 = vadd.f32 %v1852, %v2116
        %v2118 = vpop.f32.mrf.mxu0
        %v2119 = vadd.f32 %v1852, %v2118
        %2120 = vmatmul.bf16.gmra.mxu0 %v1967
        %v2121 = vpop.f32.mrf.mxu0
        %v2122 = vadd.f32 %v1852, %v2121
        %v2123 = vpop.f32.mrf.mxu0
        %v2124 = vadd.f32 %v1852, %v2123
        %2125 = vmatmul.bf16.gmra.mxu0 %v1970
        %v2126 = vpop.f32.mrf.mxu0
        %v2127 = vadd.f32 %v1852, %v2126
        %v2128 = vpop.f32.mrf.mxu0
        %v2129 = vadd.f32 %v1852, %v2128
        %2130 = vmatmul.bf16.gmra.mxu0 %v1973
        %v2131 = vpop.f32.mrf.mxu0
        %v2132 = vadd.f32 %v1852, %v2131
        %v2133 = vpop.f32.mrf.mxu0
        %v2134 = vadd.f32 %v1852, %v2133
        %2135 = vmatmul.bf16.gmra.mxu0 %v1976
        %v2136 = vpop.f32.mrf.mxu0
        %v2137 = vadd.f32 %v1852, %v2136
        %v2138 = vpop.f32.mrf.mxu0
        %v2139 = vadd.f32 %v1852, %v2138
        %2140 = vmatmul.bf16.gmra.mxu0 %v1979
        %v2141 = vpop.f32.mrf.mxu0
        %v2142 = vadd.f32 %v1852, %v2141
        %v2143 = vpop.f32.mrf.mxu0
        %v2144 = vadd.f32 %v1852, %v2143
        %2145 = vmatmul.bf16.gmra.mxu0 %v1982
        %v2146 = vpop.f32.mrf.mxu0
        %v2147 = vadd.f32 %v1852, %v2146
        %v2148 = vpop.f32.mrf.mxu0
        %v2149 = vadd.f32 %v1852, %v2148
        %2150 = vmatmul.bf16.gmra.mxu0 %v1985
        %v2151 = vpop.f32.mrf.mxu0
        %v2152 = vadd.f32 %v1852, %v2151
        %v2153 = vpop.f32.mrf.mxu0
        %v2154 = vadd.f32 %v1852, %v2153
        %2155 = vdwg.mxu0
        %vm2156 = vcmp.ge.f32.partialorder %v1997, 0.0
        %vm2157 = vcmp.ge.f32.partialorder %v1999, 0.0
        %vm2158 = vcmp.ge.f32.partialorder %v2002, 0.0
        %vm2159 = vcmp.ge.f32.partialorder %v2004, 0.0
        %vm2160 = vcmp.ge.f32.partialorder %v2007, 0.0
        %vm2161 = vcmp.ge.f32.partialorder %v2009, 0.0
        %vm2162 = vcmp.ge.f32.partialorder %v2012, 0.0
        %vm2163 = vcmp.ge.f32.partialorder %v2014, 0.0
        %vm2164 = vcmp.ge.f32.partialorder %v2017, 0.0
        %vm2165 = vcmp.ge.f32.partialorder %v2019, 0.0
        %vm2166 = vcmp.ge.f32.partialorder %v2022, 0.0
        %vm2167 = vcmp.ge.f32.partialorder %v2024, 0.0
        %vm2168 = vcmp.ge.f32.partialorder %v2027, 0.0
        %vm2169 = vcmp.ge.f32.partialorder %v2029, 0.0
        %vm2170 = vcmp.ge.f32.partialorder %v2032, 0.0
        %vm2171 = vcmp.ge.f32.partialorder %v2034, 0.0
        %vm2172 = vcmp.ge.f32.partialorder %v2037, 0.0
        %vm2173 = vcmp.ge.f32.partialorder %v2039, 0.0
        %vm2174 = vcmp.ge.f32.partialorder %v2042, 0.0
        %vm2175 = vcmp.ge.f32.partialorder %v2044, 0.0
        %vm2176 = vcmp.ge.f32.partialorder %v2047, 0.0
        %vm2177 = vcmp.ge.f32.partialorder %v2049, 0.0
        %vm2178 = vcmp.ge.f32.partialorder %v2052, 0.0
        %vm2179 = vcmp.ge.f32.partialorder %v2054, 0.0
        %vm2180 = vcmp.ge.f32.partialorder %v2057, 0.0
        %vm2181 = vcmp.ge.f32.partialorder %v2059, 0.0
        %vm2182 = vcmp.ge.f32.partialorder %v2062, 0.0
        %vm2183 = vcmp.ge.f32.partialorder %v2064, 0.0
        %vm2184 = vcmp.ge.f32.partialorder %v2067, 0.0
        %vm2185 = vcmp.ge.f32.partialorder %v2069, 0.0
        %vm2186 = vcmp.ge.f32.partialorder %v2072, 0.0
        %vm2187 = vcmp.ge.f32.partialorder %v2074, 0.0
        %vm2188 = vcmp.ge.f32.partialorder %v2077, 0.0
        %vm2189 = vcmp.ge.f32.partialorder %v2079, 0.0
        %vm2190 = vcmp.ge.f32.partialorder %v2082, 0.0
        %vm2191 = vcmp.ge.f32.partialorder %v2084, 0.0
        %vm2192 = vcmp.ge.f32.partialorder %v2087, 0.0
        %vm2193 = vcmp.ge.f32.partialorder %v2089, 0.0
        %vm2194 = vcmp.ge.f32.partialorder %v2092, 0.0
        %vm2195 = vcmp.ge.f32.partialorder %v2094, 0.0
        %vm2196 = vcmp.ge.f32.partialorder %v2097, 0.0
        %vm2197 = vcmp.ge.f32.partialorder %v2099, 0.0
        %vm2198 = vcmp.ge.f32.partialorder %v2102, 0.0
        %vm2199 = vcmp.ge.f32.partialorder %v2104, 0.0
        %vm2200 = vcmp.ge.f32.partialorder %v2107, 0.0
        %vm2201 = vcmp.ge.f32.partialorder %v2109, 0.0
        %vm2202 = vcmp.ge.f32.partialorder %v2112, 0.0
        %vm2203 = vcmp.ge.f32.partialorder %v2114, 0.0
        %vm2204 = vcmp.ge.f32.partialorder %v2117, 0.0
        %vm2205 = vcmp.ge.f32.partialorder %v2119, 0.0
        %vm2206 = vcmp.ge.f32.partialorder %v2122, 0.0
        %vm2207 = vcmp.ge.f32.partialorder %v2124, 0.0
        %vm2208 = vcmp.ge.f32.partialorder %v2127, 0.0
        %vm2209 = vcmp.ge.f32.partialorder %v2129, 0.0
        %vm2210 = vcmp.ge.f32.partialorder %v2132, 0.0
        %vm2211 = vcmp.ge.f32.partialorder %v2134, 0.0
        %vm2212 = vcmp.ge.f32.partialorder %v2137, 0.0
        %vm2213 = vcmp.ge.f32.partialorder %v2139, 0.0
        %vm2214 = vcmp.ge.f32.partialorder %v2142, 0.0
        %vm2215 = vcmp.ge.f32.partialorder %v2144, 0.0
        %vm2216 = vcmp.ge.f32.partialorder %v2147, 0.0
        %vm2217 = vcmp.ge.f32.partialorder %v2149, 0.0
        %vm2218 = vcmp.ge.f32.partialorder %v2152, 0.0
        %vm2219 = vcmp.ge.f32.partialorder %v2154, 0.0
        %v2220 = vmul.f32 %v1997, 0.1
        %v2221 = vmul.f32 %v1999, 0.1
        %v2222 = vmul.f32 %v2002, 0.1
        %v2223 = vmul.f32 %v2004, 0.1
        %v2224 = vmul.f32 %v2007, 0.1
        %v2225 = vmul.f32 %v2009, 0.1
        %v2226 = vmul.f32 %v2012, 0.1
        %v2227 = vmul.f32 %v2014, 0.1
        %v2228 = vmul.f32 %v2017, 0.1
        %v2229 = vmul.f32 %v2019, 0.1
        %v2230 = vmul.f32 %v2022, 0.1
        %v2231 = vmul.f32 %v2024, 0.1
        %v2232 = vmul.f32 %v2027, 0.1
        %v2233 = vmul.f32 %v2029, 0.1
        %v2234 = vmul.f32 %v2032, 0.1
        %v2235 = vmul.f32 %v2034, 0.1
        %v2236 = vmul.f32 %v2037, 0.1
        %v2237 = vmul.f32 %v2039, 0.1
        %v2238 = vmul.f32 %v2042, 0.1
        %v2239 = vmul.f32 %v2044, 0.1
        %v2240 = vmul.f32 %v2047, 0.1
        %v2241 = vmul.f32 %v2049, 0.1
        %v2242 = vmul.f32 %v2052, 0.1
        %v2243 = vmul.f32 %v2054, 0.1
        %v2244 = vmul.f32 %v2057, 0.1
        %v2245 = vmul.f32 %v2059, 0.1
        %v2246 = vmul.f32 %v2062, 0.1
        %v2247 = vmul.f32 %v2064, 0.1
        %v2248 = vmul.f32 %v2067, 0.1
        %v2249 = vmul.f32 %v2069, 0.1
        %v2250 = vmul.f32 %v2072, 0.1
        %v2251 = vmul.f32 %v2074, 0.1
        %v2252 = vmul.f32 %v2077, 0.1
        %v2253 = vmul.f32 %v2079, 0.1
        %v2254 = vmul.f32 %v2082, 0.1
        %v2255 = vmul.f32 %v2084, 0.1
        %v2256 = vmul.f32 %v2087, 0.1
        %v2257 = vmul.f32 %v2089, 0.1
        %v2258 = vmul.f32 %v2092, 0.1
        %v2259 = vmul.f32 %v2094, 0.1
        %v2260 = vmul.f32 %v2097, 0.1
        %v2261 = vmul.f32 %v2099, 0.1
        %v2262 = vmul.f32 %v2102, 0.1
        %v2263 = vmul.f32 %v2104, 0.1
        %v2264 = vmul.f32 %v2107, 0.1
        %v2265 = vmul.f32 %v2109, 0.1
        %v2266 = vmul.f32 %v2112, 0.1
        %v2267 = vmul.f32 %v2114, 0.1
        %v2268 = vmul.f32 %v2117, 0.1
        %v2269 = vmul.f32 %v2119, 0.1
        %v2270 = vmul.f32 %v2122, 0.1
        %v2271 = vmul.f32 %v2124, 0.1
        %v2272 = vmul.f32 %v2127, 0.1
        %v2273 = vmul.f32 %v2129, 0.1
        %v2274 = vmul.f32 %v2132, 0.1
        %v2275 = vmul.f32 %v2134, 0.1
        %v2276 = vmul.f32 %v2137, 0.1
        %v2277 = vmul.f32 %v2139, 0.1
        %v2278 = vmul.f32 %v2142, 0.1
        %v2279 = vmul.f32 %v2144, 0.1
        %v2280 = vmul.f32 %v2147, 0.1
        %v2281 = vmul.f32 %v2149, 0.1
        %v2282 = vmul.f32 %v2152, 0.1
        %v2283 = vmul.f32 %v2154, 0.1
        %v2284 = vsel %vm2156, %v1997, %v2220
        %v2285 = vsel %vm2157, %v1999, %v2221
        %v2286 = vsel %vm2158, %v2002, %v2222
        %v2287 = vsel %vm2159, %v2004, %v2223
        %v2288 = vsel %vm2160, %v2007, %v2224
        %v2289 = vsel %vm2161, %v2009, %v2225
        %v2290 = vsel %vm2162, %v2012, %v2226
        %v2291 = vsel %vm2163, %v2014, %v2227
        %v2292 = vsel %vm2164, %v2017, %v2228
        %v2293 = vsel %vm2165, %v2019, %v2229
        %v2294 = vsel %vm2166, %v2022, %v2230
        %v2295 = vsel %vm2167, %v2024, %v2231
        %v2296 = vsel %vm2168, %v2027, %v2232
        %v2297 = vsel %vm2169, %v2029, %v2233
        %v2298 = vsel %vm2170, %v2032, %v2234
        %v2299 = vsel %vm2171, %v2034, %v2235
        %v2300 = vsel %vm2172, %v2037, %v2236
        %v2301 = vsel %vm2173, %v2039, %v2237
        %v2302 = vsel %vm2174, %v2042, %v2238
        %v2303 = vsel %vm2175, %v2044, %v2239
        %v2304 = vsel %vm2176, %v2047, %v2240
        %v2305 = vsel %vm2177, %v2049, %v2241
        %v2306 = vsel %vm2178, %v2052, %v2242
        %v2307 = vsel %vm2179, %v2054, %v2243
        %v2308 = vsel %vm2180, %v2057, %v2244
        %v2309 = vsel %vm2181, %v2059, %v2245
        %v2310 = vsel %vm2182, %v2062, %v2246
        %v2311 = vsel %vm2183, %v2064, %v2247
        %v2312 = vsel %vm2184, %v2067, %v2248
        %v2313 = vsel %vm2185, %v2069, %v2249
        %v2314 = vsel %vm2186, %v2072, %v2250
        %v2315 = vsel %vm2187, %v2074, %v2251
        %v2316 = vsel %vm2188, %v2077, %v2252
        %v2317 = vsel %vm2189, %v2079, %v2253
        %v2318 = vsel %vm2190, %v2082, %v2254
        %v2319 = vsel %vm2191, %v2084, %v2255
        %v2320 = vsel %vm2192, %v2087, %v2256
        %v2321 = vsel %vm2193, %v2089, %v2257
        %v2322 = vsel %vm2194, %v2092, %v2258
        %v2323 = vsel %vm2195, %v2094, %v2259
        %v2324 = vsel %vm2196, %v2097, %v2260
        %v2325 = vsel %vm2197, %v2099, %v2261
        %v2326 = vsel %vm2198, %v2102, %v2262
        %v2327 = vsel %vm2199, %v2104, %v2263
        %v2328 = vsel %vm2200, %v2107, %v2264
        %v2329 = vsel %vm2201, %v2109, %v2265
        %v2330 = vsel %vm2202, %v2112, %v2266
        %v2331 = vsel %vm2203, %v2114, %v2267
        %v2332 = vsel %vm2204, %v2117, %v2268
        %v2333 = vsel %vm2205, %v2119, %v2269
        %v2334 = vsel %vm2206, %v2122, %v2270
        %v2335 = vsel %vm2207, %v2124, %v2271
        %v2336 = vsel %vm2208, %v2127, %v2272
        %v2337 = vsel %vm2209, %v2129, %v2273
        %v2338 = vsel %vm2210, %v2132, %v2274
        %v2339 = vsel %vm2211, %v2134, %v2275
        %v2340 = vsel %vm2212, %v2137, %v2276
        %v2341 = vsel %vm2213, %v2139, %v2277
        %v2342 = vsel %vm2214, %v2142, %v2278
        %v2343 = vsel %vm2215, %v2144, %v2279
        %v2344 = vsel %vm2216, %v2147, %v2280
        %v2345 = vsel %vm2217, %v2149, %v2281
        %v2346 = vsel %vm2218, %v2152, %v2282
        %v2347 = vsel %vm2219, %v2154, %v2283
        %v2348 = vpack.c.bf16 %v2285, %v2284
        %v2349 = vpack.c.bf16 %v2287, %v2286
        %v2350 = vpack.c.bf16 %v2289, %v2288
        %v2351 = vpack.c.bf16 %v2291, %v2290
        %v2352 = vpack.c.bf16 %v2293, %v2292
        %v2353 = vpack.c.bf16 %v2295, %v2294
        %v2354 = vpack.c.bf16 %v2297, %v2296
        %v2355 = vpack.c.bf16 %v2299, %v2298
        %v2356 = vpack.c.bf16 %v2301, %v2300
        %v2357 = vpack.c.bf16 %v2303, %v2302
        %v2358 = vpack.c.bf16 %v2305, %v2304
        %v2359 = vpack.c.bf16 %v2307, %v2306
        %v2360 = vpack.c.bf16 %v2309, %v2308
        %v2361 = vpack.c.bf16 %v2311, %v2310
        %v2362 = vpack.c.bf16 %v2313, %v2312
        %v2363 = vpack.c.bf16 %v2315, %v2314
        %v2364 = vpack.c.bf16 %v2317, %v2316
        %v2365 = vpack.c.bf16 %v2319, %v2318
        %v2366 = vpack.c.bf16 %v2321, %v2320
        %v2367 = vpack.c.bf16 %v2323, %v2322
        %v2368 = vpack.c.bf16 %v2325, %v2324
        %v2369 = vpack.c.bf16 %v2327, %v2326
        %v2370 = vpack.c.bf16 %v2329, %v2328
        %v2371 = vpack.c.bf16 %v2331, %v2330
        %v2372 = vpack.c.bf16 %v2333, %v2332
        %v2373 = vpack.c.bf16 %v2335, %v2334
        %v2374 = vpack.c.bf16 %v2337, %v2336
        %v2375 = vpack.c.bf16 %v2339, %v2338
        %v2376 = vpack.c.bf16 %v2341, %v2340
        %v2377 = vpack.c.bf16 %v2343, %v2342
        %v2378 = vpack.c.bf16 %v2345, %v2344
        %v2379 = vpack.c.bf16 %v2347, %v2346
        %v2380 = vld [vmem:[%s7] sm:$0xf]
        %v2381 = vld [vmem:[%s7 + $0x4] sm:$0xf]
        %v2382 = vld [vmem:[%s7 + $0x8] sm:$0xf]
        %v2383 = vld [vmem:[%s7 + $0xc] sm:$0xf]
        %v2384 = vld [vmem:[%s8] sm:$0x1]
        %v2386 = vperm.slane %v2384, 0
        %v2392 = vunpack.c.l.b16 %v2380
        %v2393 = vunpack.c.l.b16 %v2381
        %v2394 = vunpack.c.l.b16 %v2382
        %v2395 = vunpack.c.l.b16 %v2383
        %v2396 = vpack.c.b16 %v2393, %v2392
        %v2397 = vpack.c.b16 %v2395, %v2394
        %v2401 = vsel %vm1027, %v2348, 0
        %v2404 = vsel %vm1027, %v2349, 0
        %v2407 = vsel %vm1027, %v2350, 0
        %v2410 = vsel %vm1027, %v2351, 0
        %v2413 = vsel %vm1027, %v2352, 0
        %v2416 = vsel %vm1027, %v2353, 0
        %v2419 = vsel %vm1027, %v2354, 0
        %v2422 = vsel %vm1027, %v2355, 0
        %v2425 = vsel %vm1027, %v2356, 0
        %v2428 = vsel %vm1027, %v2357, 0
        %v2431 = vsel %vm1027, %v2358, 0
        %v2434 = vsel %vm1027, %v2359, 0
        %v2437 = vsel %vm1027, %v2360, 0
        %v2440 = vsel %vm1027, %v2361, 0
        %v2443 = vsel %vm1027, %v2362, 0
        %v2446 = vsel %vm1027, %v2363, 0
        %v2449 = vsel %vm1027, %v2364, 0
        %v2452 = vsel %vm1027, %v2365, 0
        %v2455 = vsel %vm1027, %v2366, 0
        %v2458 = vsel %vm1027, %v2367, 0
        %v2461 = vsel %vm1027, %v2368, 0
        %v2464 = vsel %vm1027, %v2369, 0
        %v2467 = vsel %vm1027, %v2370, 0
        %v2470 = vsel %vm1027, %v2371, 0
        %v2473 = vsel %vm1027, %v2372, 0
        %v2476 = vsel %vm1027, %v2373, 0
        %v2479 = vsel %vm1027, %v2374, 0
        %v2482 = vsel %vm1027, %v2375, 0
        %v2485 = vsel %vm1027, %v2376, 0
        %v2488 = vsel %vm1027, %v2377, 0
        %v2491 = vsel %vm1027, %v2378, 0
        %v2494 = vsel %vm1027, %v2379, 0
        %2496 = vmatpush.bf16.msra.mxu0 0
        %2497 = vmatpush.bf16.msra.mxu0 0
        %2498 = vmatpush.bf16.msra.mxu0 0
        %2499 = vmatpush.bf16.msra.mxu0 0
        %2500 = vmatpush.bf16.msra.mxu0 0
        %2501 = vmatpush.bf16.msra.mxu0 0
        %2502 = vmatpush.bf16.msra.mxu0 %v2397
        %2503 = vmatpush.bf16.msra.mxu0 %v2396
        %2504 = vmatmul.bf16.gmra.mxu0 %v2401
        %v2505 = vpop.f32.mrf.mxu0
        %v2506 = vadd.f32 %v2386, %v2505
        %v2507 = vpop.f32.mrf.mxu0
        %v2508 = vadd.f32 %v2386, %v2507
        %2509 = vmatmul.bf16.gmra.mxu0 %v2404
        %v2510 = vpop.f32.mrf.mxu0
        %v2511 = vadd.f32 %v2386, %v2510
        %v2512 = vpop.f32.mrf.mxu0
        %v2513 = vadd.f32 %v2386, %v2512
        %2514 = vmatmul.bf16.gmra.mxu0 %v2407
        %v2515 = vpop.f32.mrf.mxu0
        %v2516 = vadd.f32 %v2386, %v2515
        %v2517 = vpop.f32.mrf.mxu0
        %v2518 = vadd.f32 %v2386, %v2517
        %2519 = vmatmul.bf16.gmra.mxu0 %v2410
        %v2520 = vpop.f32.mrf.mxu0
        %v2521 = vadd.f32 %v2386, %v2520
        %v2522 = vpop.f32.mrf.mxu0
        %v2523 = vadd.f32 %v2386, %v2522
        %2524 = vmatmul.bf16.gmra.mxu0 %v2413
        %v2525 = vpop.f32.mrf.mxu0
        %v2526 = vadd.f32 %v2386, %v2525
        %v2527 = vpop.f32.mrf.mxu0
        %v2528 = vadd.f32 %v2386, %v2527
        %2529 = vmatmul.bf16.gmra.mxu0 %v2416
        %v2530 = vpop.f32.mrf.mxu0
        %v2531 = vadd.f32 %v2386, %v2530
        %v2532 = vpop.f32.mrf.mxu0
        %v2533 = vadd.f32 %v2386, %v2532
        %2534 = vmatmul.bf16.gmra.mxu0 %v2419
        %v2535 = vpop.f32.mrf.mxu0
        %v2536 = vadd.f32 %v2386, %v2535
        %v2537 = vpop.f32.mrf.mxu0
        %v2538 = vadd.f32 %v2386, %v2537
        %2539 = vmatmul.bf16.gmra.mxu0 %v2422
        %v2540 = vpop.f32.mrf.mxu0
        %v2541 = vadd.f32 %v2386, %v2540
        %v2542 = vpop.f32.mrf.mxu0
        %v2543 = vadd.f32 %v2386, %v2542
        %2544 = vmatmul.bf16.gmra.mxu0 %v2425
        %v2545 = vpop.f32.mrf.mxu0
        %v2546 = vadd.f32 %v2386, %v2545
        %v2547 = vpop.f32.mrf.mxu0
        %v2548 = vadd.f32 %v2386, %v2547
        %2549 = vmatmul.bf16.gmra.mxu0 %v2428
        %v2550 = vpop.f32.mrf.mxu0
        %v2551 = vadd.f32 %v2386, %v2550
        %v2552 = vpop.f32.mrf.mxu0
        %v2553 = vadd.f32 %v2386, %v2552
        %2554 = vmatmul.bf16.gmra.mxu0 %v2431
        %v2555 = vpop.f32.mrf.mxu0
        %v2556 = vadd.f32 %v2386, %v2555
        %v2557 = vpop.f32.mrf.mxu0
        %v2558 = vadd.f32 %v2386, %v2557
        %2559 = vmatmul.bf16.gmra.mxu0 %v2434
        %v2560 = vpop.f32.mrf.mxu0
        %v2561 = vadd.f32 %v2386, %v2560
        %v2562 = vpop.f32.mrf.mxu0
        %v2563 = vadd.f32 %v2386, %v2562
        %2564 = vmatmul.bf16.gmra.mxu0 %v2437
        %v2565 = vpop.f32.mrf.mxu0
        %v2566 = vadd.f32 %v2386, %v2565
        %v2567 = vpop.f32.mrf.mxu0
        %v2568 = vadd.f32 %v2386, %v2567
        %2569 = vmatmul.bf16.gmra.mxu0 %v2440
        %v2570 = vpop.f32.mrf.mxu0
        %v2571 = vadd.f32 %v2386, %v2570
        %v2572 = vpop.f32.mrf.mxu0
        %v2573 = vadd.f32 %v2386, %v2572
        %2574 = vmatmul.bf16.gmra.mxu0 %v2443
        %v2575 = vpop.f32.mrf.mxu0
        %v2576 = vadd.f32 %v2386, %v2575
        %v2577 = vpop.f32.mrf.mxu0
        %v2578 = vadd.f32 %v2386, %v2577
        %2579 = vmatmul.bf16.gmra.mxu0 %v2446
        %v2580 = vpop.f32.mrf.mxu0
        %v2581 = vadd.f32 %v2386, %v2580
        %v2582 = vpop.f32.mrf.mxu0
        %v2583 = vadd.f32 %v2386, %v2582
        %2584 = vmatmul.bf16.gmra.mxu0 %v2449
        %v2585 = vpop.f32.mrf.mxu0
        %v2586 = vadd.f32 %v2386, %v2585
        %v2587 = vpop.f32.mrf.mxu0
        %v2588 = vadd.f32 %v2386, %v2587
        %2589 = vmatmul.bf16.gmra.mxu0 %v2452
        %v2590 = vpop.f32.mrf.mxu0
        %v2591 = vadd.f32 %v2386, %v2590
        %v2592 = vpop.f32.mrf.mxu0
        %v2593 = vadd.f32 %v2386, %v2592
        %2594 = vmatmul.bf16.gmra.mxu0 %v2455
        %v2595 = vpop.f32.mrf.mxu0
        %v2596 = vadd.f32 %v2386, %v2595
        %v2597 = vpop.f32.mrf.mxu0
        %v2598 = vadd.f32 %v2386, %v2597
        %2599 = vmatmul.bf16.gmra.mxu0 %v2458
        %v2600 = vpop.f32.mrf.mxu0
        %v2601 = vadd.f32 %v2386, %v2600
        %v2602 = vpop.f32.mrf.mxu0
        %v2603 = vadd.f32 %v2386, %v2602
        %2604 = vmatmul.bf16.gmra.mxu0 %v2461
        %v2605 = vpop.f32.mrf.mxu0
        %v2606 = vadd.f32 %v2386, %v2605
        %v2607 = vpop.f32.mrf.mxu0
        %v2608 = vadd.f32 %v2386, %v2607
        %2609 = vmatmul.bf16.gmra.mxu0 %v2464
        %v2610 = vpop.f32.mrf.mxu0
        %v2611 = vadd.f32 %v2386, %v2610
        %v2612 = vpop.f32.mrf.mxu0
        %v2613 = vadd.f32 %v2386, %v2612
        %2614 = vmatmul.bf16.gmra.mxu0 %v2467
        %v2615 = vpop.f32.mrf.mxu0
        %v2616 = vadd.f32 %v2386, %v2615
        %v2617 = vpop.f32.mrf.mxu0
        %v2618 = vadd.f32 %v2386, %v2617
        %2619 = vmatmul.bf16.gmra.mxu0 %v2470
        %v2620 = vpop.f32.mrf.mxu0
        %v2621 = vadd.f32 %v2386, %v2620
        %v2622 = vpop.f32.mrf.mxu0
        %v2623 = vadd.f32 %v2386, %v2622
        %2624 = vmatmul.bf16.gmra.mxu0 %v2473
        %v2625 = vpop.f32.mrf.mxu0
        %v2626 = vadd.f32 %v2386, %v2625
        %v2627 = vpop.f32.mrf.mxu0
        %v2628 = vadd.f32 %v2386, %v2627
        %2629 = vmatmul.bf16.gmra.mxu0 %v2476
        %v2630 = vpop.f32.mrf.mxu0
        %v2631 = vadd.f32 %v2386, %v2630
        %v2632 = vpop.f32.mrf.mxu0
        %v2633 = vadd.f32 %v2386, %v2632
        %2634 = vmatmul.bf16.gmra.mxu0 %v2479
        %v2635 = vpop.f32.mrf.mxu0
        %v2636 = vadd.f32 %v2386, %v2635
        %v2637 = vpop.f32.mrf.mxu0
        %v2638 = vadd.f32 %v2386, %v2637
        %2639 = vmatmul.bf16.gmra.mxu0 %v2482
        %v2640 = vpop.f32.mrf.mxu0
        %v2641 = vadd.f32 %v2386, %v2640
        %v2642 = vpop.f32.mrf.mxu0
        %v2643 = vadd.f32 %v2386, %v2642
        %2644 = vmatmul.bf16.gmra.mxu0 %v2485
        %v2645 = vpop.f32.mrf.mxu0
        %v2646 = vadd.f32 %v2386, %v2645
        %v2647 = vpop.f32.mrf.mxu0
        %v2648 = vadd.f32 %v2386, %v2647
        %2649 = vmatmul.bf16.gmra.mxu0 %v2488
        %v2650 = vpop.f32.mrf.mxu0
        %v2651 = vadd.f32 %v2386, %v2650
        %v2652 = vpop.f32.mrf.mxu0
        %v2653 = vadd.f32 %v2386, %v2652
        %2654 = vmatmul.bf16.gmra.mxu0 %v2491
        %v2655 = vpop.f32.mrf.mxu0
        %v2656 = vadd.f32 %v2386, %v2655
        %v2657 = vpop.f32.mrf.mxu0
        %v2658 = vadd.f32 %v2386, %v2657
        %2659 = vmatmul.bf16.gmra.mxu0 %v2494
        %v2660 = vpop.f32.mrf.mxu0
        %v2661 = vadd.f32 %v2386, %v2660
        %v2662 = vpop.f32.mrf.mxu0
        %v2663 = vadd.f32 %v2386, %v2662
        %2664 = vdwg.mxu0
        %vm2665 = vcmp.ge.f32.partialorder %v2506, 0.0
        %vm2666 = vcmp.ge.f32.partialorder %v2508, 0.0
        %vm2667 = vcmp.ge.f32.partialorder %v2511, 0.0
        %vm2668 = vcmp.ge.f32.partialorder %v2513, 0.0
        %vm2669 = vcmp.ge.f32.partialorder %v2516, 0.0
        %vm2670 = vcmp.ge.f32.partialorder %v2518, 0.0
        %vm2671 = vcmp.ge.f32.partialorder %v2521, 0.0
        %vm2672 = vcmp.ge.f32.partialorder %v2523, 0.0
        %vm2673 = vcmp.ge.f32.partialorder %v2526, 0.0
        %vm2674 = vcmp.ge.f32.partialorder %v2528, 0.0
        %vm2675 = vcmp.ge.f32.partialorder %v2531, 0.0
        %vm2676 = vcmp.ge.f32.partialorder %v2533, 0.0
        %vm2677 = vcmp.ge.f32.partialorder %v2536, 0.0
        %vm2678 = vcmp.ge.f32.partialorder %v2538, 0.0
        %vm2679 = vcmp.ge.f32.partialorder %v2541, 0.0
        %vm2680 = vcmp.ge.f32.partialorder %v2543, 0.0
        %vm2681 = vcmp.ge.f32.partialorder %v2546, 0.0
        %vm2682 = vcmp.ge.f32.partialorder %v2548, 0.0
        %vm2683 = vcmp.ge.f32.partialorder %v2551, 0.0
        %vm2684 = vcmp.ge.f32.partialorder %v2553, 0.0
        %vm2685 = vcmp.ge.f32.partialorder %v2556, 0.0
        %vm2686 = vcmp.ge.f32.partialorder %v2558, 0.0
        %vm2687 = vcmp.ge.f32.partialorder %v2561, 0.0
        %vm2688 = vcmp.ge.f32.partialorder %v2563, 0.0
        %vm2689 = vcmp.ge.f32.partialorder %v2566, 0.0
        %vm2690 = vcmp.ge.f32.partialorder %v2568, 0.0
        %vm2691 = vcmp.ge.f32.partialorder %v2571, 0.0
        %vm2692 = vcmp.ge.f32.partialorder %v2573, 0.0
        %vm2693 = vcmp.ge.f32.partialorder %v2576, 0.0
        %vm2694 = vcmp.ge.f32.partialorder %v2578, 0.0
        %vm2695 = vcmp.ge.f32.partialorder %v2581, 0.0
        %vm2696 = vcmp.ge.f32.partialorder %v2583, 0.0
        %vm2697 = vcmp.ge.f32.partialorder %v2586, 0.0
        %vm2698 = vcmp.ge.f32.partialorder %v2588, 0.0
        %vm2699 = vcmp.ge.f32.partialorder %v2591, 0.0
        %vm2700 = vcmp.ge.f32.partialorder %v2593, 0.0
        %vm2701 = vcmp.ge.f32.partialorder %v2596, 0.0
        %vm2702 = vcmp.ge.f32.partialorder %v2598, 0.0
        %vm2703 = vcmp.ge.f32.partialorder %v2601, 0.0
        %vm2704 = vcmp.ge.f32.partialorder %v2603, 0.0
        %vm2705 = vcmp.ge.f32.partialorder %v2606, 0.0
        %vm2706 = vcmp.ge.f32.partialorder %v2608, 0.0
        %vm2707 = vcmp.ge.f32.partialorder %v2611, 0.0
        %vm2708 = vcmp.ge.f32.partialorder %v2613, 0.0
        %vm2709 = vcmp.ge.f32.partialorder %v2616, 0.0
        %vm2710 = vcmp.ge.f32.partialorder %v2618, 0.0
        %vm2711 = vcmp.ge.f32.partialorder %v2621, 0.0
        %vm2712 = vcmp.ge.f32.partialorder %v2623, 0.0
        %vm2713 = vcmp.ge.f32.partialorder %v2626, 0.0
        %vm2714 = vcmp.ge.f32.partialorder %v2628, 0.0
        %vm2715 = vcmp.ge.f32.partialorder %v2631, 0.0
        %vm2716 = vcmp.ge.f32.partialorder %v2633, 0.0
        %vm2717 = vcmp.ge.f32.partialorder %v2636, 0.0
        %vm2718 = vcmp.ge.f32.partialorder %v2638, 0.0
        %vm2719 = vcmp.ge.f32.partialorder %v2641, 0.0
        %vm2720 = vcmp.ge.f32.partialorder %v2643, 0.0
        %vm2721 = vcmp.ge.f32.partialorder %v2646, 0.0
        %vm2722 = vcmp.ge.f32.partialorder %v2648, 0.0
        %vm2723 = vcmp.ge.f32.partialorder %v2651, 0.0
        %vm2724 = vcmp.ge.f32.partialorder %v2653, 0.0
        %vm2725 = vcmp.ge.f32.partialorder %v2656, 0.0
        %vm2726 = vcmp.ge.f32.partialorder %v2658, 0.0
        %vm2727 = vcmp.ge.f32.partialorder %v2661, 0.0
        %vm2728 = vcmp.ge.f32.partialorder %v2663, 0.0
        %v2729 = vmul.f32 %v2506, 0.1
        %v2730 = vmul.f32 %v2508, 0.1
        %v2731 = vmul.f32 %v2511, 0.1
        %v2732 = vmul.f32 %v2513, 0.1
        %v2733 = vmul.f32 %v2516, 0.1
        %v2734 = vmul.f32 %v2518, 0.1
        %v2735 = vmul.f32 %v2521, 0.1
        %v2736 = vmul.f32 %v2523, 0.1
        %v2737 = vmul.f32 %v2526, 0.1
        %v2738 = vmul.f32 %v2528, 0.1
        %v2739 = vmul.f32 %v2531, 0.1
        %v2740 = vmul.f32 %v2533, 0.1
        %v2741 = vmul.f32 %v2536, 0.1
        %v2742 = vmul.f32 %v2538, 0.1
        %v2743 = vmul.f32 %v2541, 0.1
        %v2744 = vmul.f32 %v2543, 0.1
        %v2745 = vmul.f32 %v2546, 0.1
        %v2746 = vmul.f32 %v2548, 0.1
        %v2747 = vmul.f32 %v2551, 0.1
        %v2748 = vmul.f32 %v2553, 0.1
        %v2749 = vmul.f32 %v2556, 0.1
        %v2750 = vmul.f32 %v2558, 0.1
        %v2751 = vmul.f32 %v2561, 0.1
        %v2752 = vmul.f32 %v2563, 0.1
        %v2753 = vmul.f32 %v2566, 0.1
        %v2754 = vmul.f32 %v2568, 0.1
        %v2755 = vmul.f32 %v2571, 0.1
        %v2756 = vmul.f32 %v2573, 0.1
        %v2757 = vmul.f32 %v2576, 0.1
        %v2758 = vmul.f32 %v2578, 0.1
        %v2759 = vmul.f32 %v2581, 0.1
        %v2760 = vmul.f32 %v2583, 0.1
        %v2761 = vmul.f32 %v2586, 0.1
        %v2762 = vmul.f32 %v2588, 0.1
        %v2763 = vmul.f32 %v2591, 0.1
        %v2764 = vmul.f32 %v2593, 0.1
        %v2765 = vmul.f32 %v2596, 0.1
        %v2766 = vmul.f32 %v2598, 0.1
        %v2767 = vmul.f32 %v2601, 0.1
        %v2768 = vmul.f32 %v2603, 0.1
        %v2769 = vmul.f32 %v2606, 0.1
        %v2770 = vmul.f32 %v2608, 0.1
        %v2771 = vmul.f32 %v2611, 0.1
        %v2772 = vmul.f32 %v2613, 0.1
        %v2773 = vmul.f32 %v2616, 0.1
        %v2774 = vmul.f32 %v2618, 0.1
        %v2775 = vmul.f32 %v2621, 0.1
        %v2776 = vmul.f32 %v2623, 0.1
        %v2777 = vmul.f32 %v2626, 0.1
        %v2778 = vmul.f32 %v2628, 0.1
        %v2779 = vmul.f32 %v2631, 0.1
        %v2780 = vmul.f32 %v2633, 0.1
        %v2781 = vmul.f32 %v2636, 0.1
        %v2782 = vmul.f32 %v2638, 0.1
        %v2783 = vmul.f32 %v2641, 0.1
        %v2784 = vmul.f32 %v2643, 0.1
        %v2785 = vmul.f32 %v2646, 0.1
        %v2786 = vmul.f32 %v2648, 0.1
        %v2787 = vmul.f32 %v2651, 0.1
        %v2788 = vmul.f32 %v2653, 0.1
        %v2789 = vmul.f32 %v2656, 0.1
        %v2790 = vmul.f32 %v2658, 0.1
        %v2791 = vmul.f32 %v2661, 0.1
        %v2792 = vmul.f32 %v2663, 0.1
        %v2793 = vsel %vm2665, %v2506, %v2729
        %v2794 = vsel %vm2666, %v2508, %v2730
        %v2795 = vsel %vm2667, %v2511, %v2731
        %v2796 = vsel %vm2668, %v2513, %v2732
        %v2797 = vsel %vm2669, %v2516, %v2733
        %v2798 = vsel %vm2670, %v2518, %v2734
        %v2799 = vsel %vm2671, %v2521, %v2735
        %v2800 = vsel %vm2672, %v2523, %v2736
        %v2801 = vsel %vm2673, %v2526, %v2737
        %v2802 = vsel %vm2674, %v2528, %v2738
        %v2803 = vsel %vm2675, %v2531, %v2739
        %v2804 = vsel %vm2676, %v2533, %v2740
        %v2805 = vsel %vm2677, %v2536, %v2741
        %v2806 = vsel %vm2678, %v2538, %v2742
        %v2807 = vsel %vm2679, %v2541, %v2743
        %v2808 = vsel %vm2680, %v2543, %v2744
        %v2809 = vsel %vm2681, %v2546, %v2745
        %v2810 = vsel %vm2682, %v2548, %v2746
        %v2811 = vsel %vm2683, %v2551, %v2747
        %v2812 = vsel %vm2684, %v2553, %v2748
        %v2813 = vsel %vm2685, %v2556, %v2749
        %v2814 = vsel %vm2686, %v2558, %v2750
        %v2815 = vsel %vm2687, %v2561, %v2751
        %v2816 = vsel %vm2688, %v2563, %v2752
        %v2817 = vsel %vm2689, %v2566, %v2753
        %v2818 = vsel %vm2690, %v2568, %v2754
        %v2819 = vsel %vm2691, %v2571, %v2755
        %v2820 = vsel %vm2692, %v2573, %v2756
        %v2821 = vsel %vm2693, %v2576, %v2757
        %v2822 = vsel %vm2694, %v2578, %v2758
        %v2823 = vsel %vm2695, %v2581, %v2759
        %v2824 = vsel %vm2696, %v2583, %v2760
        %v2825 = vsel %vm2697, %v2586, %v2761
        %v2826 = vsel %vm2698, %v2588, %v2762
        %v2827 = vsel %vm2699, %v2591, %v2763
        %v2828 = vsel %vm2700, %v2593, %v2764
        %v2829 = vsel %vm2701, %v2596, %v2765
        %v2830 = vsel %vm2702, %v2598, %v2766
        %v2831 = vsel %vm2703, %v2601, %v2767
        %v2832 = vsel %vm2704, %v2603, %v2768
        %v2833 = vsel %vm2705, %v2606, %v2769
        %v2834 = vsel %vm2706, %v2608, %v2770
        %v2835 = vsel %vm2707, %v2611, %v2771
        %v2836 = vsel %vm2708, %v2613, %v2772
        %v2837 = vsel %vm2709, %v2616, %v2773
        %v2838 = vsel %vm2710, %v2618, %v2774
        %v2839 = vsel %vm2711, %v2621, %v2775
        %v2840 = vsel %vm2712, %v2623, %v2776
        %v2841 = vsel %vm2713, %v2626, %v2777
        %v2842 = vsel %vm2714, %v2628, %v2778
        %v2843 = vsel %vm2715, %v2631, %v2779
        %v2844 = vsel %vm2716, %v2633, %v2780
        %v2845 = vsel %vm2717, %v2636, %v2781
        %v2846 = vsel %vm2718, %v2638, %v2782
        %v2847 = vsel %vm2719, %v2641, %v2783
        %v2848 = vsel %vm2720, %v2643, %v2784
        %v2849 = vsel %vm2721, %v2646, %v2785
        %v2850 = vsel %vm2722, %v2648, %v2786
        %v2851 = vsel %vm2723, %v2651, %v2787
        %v2852 = vsel %vm2724, %v2653, %v2788
        %v2853 = vsel %vm2725, %v2656, %v2789
        %v2854 = vsel %vm2726, %v2658, %v2790
        %v2855 = vsel %vm2727, %v2661, %v2791
        %v2856 = vsel %vm2728, %v2663, %v2792
        %v2857 = vpack.c.bf16 %v2794, %v2793
        %v2858 = vpack.c.bf16 %v2796, %v2795
        %v2859 = vpack.c.bf16 %v2798, %v2797
        %v2860 = vpack.c.bf16 %v2800, %v2799
        %v2861 = vpack.c.bf16 %v2802, %v2801
        %v2862 = vpack.c.bf16 %v2804, %v2803
        %v2863 = vpack.c.bf16 %v2806, %v2805
        %v2864 = vpack.c.bf16 %v2808, %v2807
        %v2865 = vpack.c.bf16 %v2810, %v2809
        %v2866 = vpack.c.bf16 %v2812, %v2811
        %v2867 = vpack.c.bf16 %v2814, %v2813
        %v2868 = vpack.c.bf16 %v2816, %v2815
        %v2869 = vpack.c.bf16 %v2818, %v2817
        %v2870 = vpack.c.bf16 %v2820, %v2819
        %v2871 = vpack.c.bf16 %v2822, %v2821
        %v2872 = vpack.c.bf16 %v2824, %v2823
        %v2873 = vpack.c.bf16 %v2826, %v2825
        %v2874 = vpack.c.bf16 %v2828, %v2827
        %v2875 = vpack.c.bf16 %v2830, %v2829
        %v2876 = vpack.c.bf16 %v2832, %v2831
        %v2877 = vpack.c.bf16 %v2834, %v2833
        %v2878 = vpack.c.bf16 %v2836, %v2835
        %v2879 = vpack.c.bf16 %v2838, %v2837
        %v2880 = vpack.c.bf16 %v2840, %v2839
        %v2881 = vpack.c.bf16 %v2842, %v2841
        %v2882 = vpack.c.bf16 %v2844, %v2843
        %v2883 = vpack.c.bf16 %v2846, %v2845
        %v2884 = vpack.c.bf16 %v2848, %v2847
        %v2885 = vpack.c.bf16 %v2850, %v2849
        %v2886 = vpack.c.bf16 %v2852, %v2851
        %v2887 = vpack.c.bf16 %v2854, %v2853
        %v2888 = vpack.c.bf16 %v2856, %v2855
        %v2889 = vld [vmem:[%s9] sm:$0xf]
        %v2890 = vld [vmem:[%s9 + $0x4] sm:$0xf]
        %v2891 = vld [vmem:[%s9 + $0x8] sm:$0xf]
        %v2892 = vld [vmem:[%s9 + $0xc] sm:$0xf]
        %v2893 = vld [vmem:[%s10] sm:$0x1]
        %v2895 = vperm.slane %v2893, 0
        %v2901 = vunpack.c.l.b16 %v2889
        %v2902 = vunpack.c.l.b16 %v2890
        %v2903 = vunpack.c.l.b16 %v2891
        %v2904 = vunpack.c.l.b16 %v2892
        %v2905 = vpack.c.b16 %v2902, %v2901
        %v2906 = vpack.c.b16 %v2904, %v2903
        %v2910 = vsel %vm1027, %v2857, 0
        %v2913 = vsel %vm1027, %v2858, 0
        %v2916 = vsel %vm1027, %v2859, 0
        %v2919 = vsel %vm1027, %v2860, 0
        %v2922 = vsel %vm1027, %v2861, 0
        %v2925 = vsel %vm1027, %v2862, 0
        %v2928 = vsel %vm1027, %v2863, 0
        %v2931 = vsel %vm1027, %v2864, 0
        %v2934 = vsel %vm1027, %v2865, 0
        %v2937 = vsel %vm1027, %v2866, 0
        %v2940 = vsel %vm1027, %v2867, 0
        %v2943 = vsel %vm1027, %v2868, 0
        %v2946 = vsel %vm1027, %v2869, 0
        %v2949 = vsel %vm1027, %v2870, 0
        %v2952 = vsel %vm1027, %v2871, 0
        %v2955 = vsel %vm1027, %v2872, 0
        %v2958 = vsel %vm1027, %v2873, 0
        %v2961 = vsel %vm1027, %v2874, 0
        %v2964 = vsel %vm1027, %v2875, 0
        %v2967 = vsel %vm1027, %v2876, 0
        %v2970 = vsel %vm1027, %v2877, 0
        %v2973 = vsel %vm1027, %v2878, 0
        %v2976 = vsel %vm1027, %v2879, 0
        %v2979 = vsel %vm1027, %v2880, 0
        %v2982 = vsel %vm1027, %v2881, 0
        %v2985 = vsel %vm1027, %v2882, 0
        %v2988 = vsel %vm1027, %v2883, 0
        %v2991 = vsel %vm1027, %v2884, 0
        %v2994 = vsel %vm1027, %v2885, 0
        %v2997 = vsel %vm1027, %v2886, 0
        %v3000 = vsel %vm1027, %v2887, 0
        %v3003 = vsel %vm1027, %v2888, 0
        %3005 = vmatpush.bf16.msra.mxu0 0
        %3006 = vmatpush.bf16.msra.mxu0 0
        %3007 = vmatpush.bf16.msra.mxu0 0
        %3008 = vmatpush.bf16.msra.mxu0 0
        %3009 = vmatpush.bf16.msra.mxu0 0
        %3010 = vmatpush.bf16.msra.mxu0 0
        %3011 = vmatpush.bf16.msra.mxu0 %v2906
        %3012 = vmatpush.bf16.msra.mxu0 %v2905
        %3013 = vmatmul.bf16.gmra.mxu0 %v2910
        %v3014 = vpop.f32.mrf.mxu0
        %v3015 = vadd.f32 %v2895, %v3014
        %v3016 = vpop.f32.mrf.mxu0
        %v3017 = vadd.f32 %v2895, %v3016
        %3018 = vmatmul.bf16.gmra.mxu0 %v2913
        %v3019 = vpop.f32.mrf.mxu0
        %v3020 = vadd.f32 %v2895, %v3019
        %v3021 = vpop.f32.mrf.mxu0
        %v3022 = vadd.f32 %v2895, %v3021
        %3023 = vmatmul.bf16.gmra.mxu0 %v2916
        %v3024 = vpop.f32.mrf.mxu0
        %v3025 = vadd.f32 %v2895, %v3024
        %v3026 = vpop.f32.mrf.mxu0
        %v3027 = vadd.f32 %v2895, %v3026
        %3028 = vmatmul.bf16.gmra.mxu0 %v2919
        %v3029 = vpop.f32.mrf.mxu0
        %v3030 = vadd.f32 %v2895, %v3029
        %v3031 = vpop.f32.mrf.mxu0
        %v3032 = vadd.f32 %v2895, %v3031
        %3033 = vmatmul.bf16.gmra.mxu0 %v2922
        %v3034 = vpop.f32.mrf.mxu0
        %v3035 = vadd.f32 %v2895, %v3034
        %v3036 = vpop.f32.mrf.mxu0
        %v3037 = vadd.f32 %v2895, %v3036
        %3038 = vmatmul.bf16.gmra.mxu0 %v2925
        %v3039 = vpop.f32.mrf.mxu0
        %v3040 = vadd.f32 %v2895, %v3039
        %v3041 = vpop.f32.mrf.mxu0
        %v3042 = vadd.f32 %v2895, %v3041
        %3043 = vmatmul.bf16.gmra.mxu0 %v2928
        %v3044 = vpop.f32.mrf.mxu0
        %v3045 = vadd.f32 %v2895, %v3044
        %v3046 = vpop.f32.mrf.mxu0
        %v3047 = vadd.f32 %v2895, %v3046
        %3048 = vmatmul.bf16.gmra.mxu0 %v2931
        %v3049 = vpop.f32.mrf.mxu0
        %v3050 = vadd.f32 %v2895, %v3049
        %v3051 = vpop.f32.mrf.mxu0
        %v3052 = vadd.f32 %v2895, %v3051
        %3053 = vmatmul.bf16.gmra.mxu0 %v2934
        %v3054 = vpop.f32.mrf.mxu0
        %v3055 = vadd.f32 %v2895, %v3054
        %v3056 = vpop.f32.mrf.mxu0
        %v3057 = vadd.f32 %v2895, %v3056
        %3058 = vmatmul.bf16.gmra.mxu0 %v2937
        %v3059 = vpop.f32.mrf.mxu0
        %v3060 = vadd.f32 %v2895, %v3059
        %v3061 = vpop.f32.mrf.mxu0
        %v3062 = vadd.f32 %v2895, %v3061
        %3063 = vmatmul.bf16.gmra.mxu0 %v2940
        %v3064 = vpop.f32.mrf.mxu0
        %v3065 = vadd.f32 %v2895, %v3064
        %v3066 = vpop.f32.mrf.mxu0
        %v3067 = vadd.f32 %v2895, %v3066
        %3068 = vmatmul.bf16.gmra.mxu0 %v2943
        %v3069 = vpop.f32.mrf.mxu0
        %v3070 = vadd.f32 %v2895, %v3069
        %v3071 = vpop.f32.mrf.mxu0
        %v3072 = vadd.f32 %v2895, %v3071
        %3073 = vmatmul.bf16.gmra.mxu0 %v2946
        %v3074 = vpop.f32.mrf.mxu0
        %v3075 = vadd.f32 %v2895, %v3074
        %v3076 = vpop.f32.mrf.mxu0
        %v3077 = vadd.f32 %v2895, %v3076
        %3078 = vmatmul.bf16.gmra.mxu0 %v2949
        %v3079 = vpop.f32.mrf.mxu0
        %v3080 = vadd.f32 %v2895, %v3079
        %v3081 = vpop.f32.mrf.mxu0
        %v3082 = vadd.f32 %v2895, %v3081
        %3083 = vmatmul.bf16.gmra.mxu0 %v2952
        %v3084 = vpop.f32.mrf.mxu0
        %v3085 = vadd.f32 %v2895, %v3084
        %v3086 = vpop.f32.mrf.mxu0
        %v3087 = vadd.f32 %v2895, %v3086
        %3088 = vmatmul.bf16.gmra.mxu0 %v2955
        %v3089 = vpop.f32.mrf.mxu0
        %v3090 = vadd.f32 %v2895, %v3089
        %v3091 = vpop.f32.mrf.mxu0
        %v3092 = vadd.f32 %v2895, %v3091
        %3093 = vmatmul.bf16.gmra.mxu0 %v2958
        %v3094 = vpop.f32.mrf.mxu0
        %v3095 = vadd.f32 %v2895, %v3094
        %v3096 = vpop.f32.mrf.mxu0
        %v3097 = vadd.f32 %v2895, %v3096
        %3098 = vmatmul.bf16.gmra.mxu0 %v2961
        %v3099 = vpop.f32.mrf.mxu0
        %v3100 = vadd.f32 %v2895, %v3099
        %v3101 = vpop.f32.mrf.mxu0
        %v3102 = vadd.f32 %v2895, %v3101
        %3103 = vmatmul.bf16.gmra.mxu0 %v2964
        %v3104 = vpop.f32.mrf.mxu0
        %v3105 = vadd.f32 %v2895, %v3104
        %v3106 = vpop.f32.mrf.mxu0
        %v3107 = vadd.f32 %v2895, %v3106
        %3108 = vmatmul.bf16.gmra.mxu0 %v2967
        %v3109 = vpop.f32.mrf.mxu0
        %v3110 = vadd.f32 %v2895, %v3109
        %v3111 = vpop.f32.mrf.mxu0
        %v3112 = vadd.f32 %v2895, %v3111
        %3113 = vmatmul.bf16.gmra.mxu0 %v2970
        %v3114 = vpop.f32.mrf.mxu0
        %v3115 = vadd.f32 %v2895, %v3114
        %v3116 = vpop.f32.mrf.mxu0
        %v3117 = vadd.f32 %v2895, %v3116
        %3118 = vmatmul.bf16.gmra.mxu0 %v2973
        %v3119 = vpop.f32.mrf.mxu0
        %v3120 = vadd.f32 %v2895, %v3119
        %v3121 = vpop.f32.mrf.mxu0
        %v3122 = vadd.f32 %v2895, %v3121
        %3123 = vmatmul.bf16.gmra.mxu0 %v2976
        %v3124 = vpop.f32.mrf.mxu0
        %v3125 = vadd.f32 %v2895, %v3124
        %v3126 = vpop.f32.mrf.mxu0
        %v3127 = vadd.f32 %v2895, %v3126
        %3128 = vmatmul.bf16.gmra.mxu0 %v2979
        %v3129 = vpop.f32.mrf.mxu0
        %v3130 = vadd.f32 %v2895, %v3129
        %v3131 = vpop.f32.mrf.mxu0
        %v3132 = vadd.f32 %v2895, %v3131
        %3133 = vmatmul.bf16.gmra.mxu0 %v2982
        %v3134 = vpop.f32.mrf.mxu0
        %v3135 = vadd.f32 %v2895, %v3134
        %v3136 = vpop.f32.mrf.mxu0
        %v3137 = vadd.f32 %v2895, %v3136
        %3138 = vmatmul.bf16.gmra.mxu0 %v2985
        %v3139 = vpop.f32.mrf.mxu0
        %v3140 = vadd.f32 %v2895, %v3139
        %v3141 = vpop.f32.mrf.mxu0
        %v3142 = vadd.f32 %v2895, %v3141
        %3143 = vmatmul.bf16.gmra.mxu0 %v2988
        %v3144 = vpop.f32.mrf.mxu0
        %v3145 = vadd.f32 %v2895, %v3144
        %v3146 = vpop.f32.mrf.mxu0
        %v3147 = vadd.f32 %v2895, %v3146
        %3148 = vmatmul.bf16.gmra.mxu0 %v2991
        %v3149 = vpop.f32.mrf.mxu0
        %v3150 = vadd.f32 %v2895, %v3149
        %v3151 = vpop.f32.mrf.mxu0
        %v3152 = vadd.f32 %v2895, %v3151
        %3153 = vmatmul.bf16.gmra.mxu0 %v2994
        %v3154 = vpop.f32.mrf.mxu0
        %v3155 = vadd.f32 %v2895, %v3154
        %v3156 = vpop.f32.mrf.mxu0
        %v3157 = vadd.f32 %v2895, %v3156
        %3158 = vmatmul.bf16.gmra.mxu0 %v2997
        %v3159 = vpop.f32.mrf.mxu0
        %v3160 = vadd.f32 %v2895, %v3159
        %v3161 = vpop.f32.mrf.mxu0
        %v3162 = vadd.f32 %v2895, %v3161
        %3163 = vmatmul.bf16.gmra.mxu0 %v3000
        %v3164 = vpop.f32.mrf.mxu0
        %v3165 = vadd.f32 %v2895, %v3164
        %v3166 = vpop.f32.mrf.mxu0
        %v3167 = vadd.f32 %v2895, %v3166
        %3168 = vmatmul.bf16.gmra.mxu0 %v3003
        %v3169 = vpop.f32.mrf.mxu0
        %v3170 = vadd.f32 %v2895, %v3169
        %v3171 = vpop.f32.mrf.mxu0
        %v3172 = vadd.f32 %v2895, %v3171
        %3173 = vdwg.mxu0
        %vm3174 = vcmask 72704
        %3175 = vst.msk [vmem:[%s388] sm:$0xff] %vm3174, %v3015
        %3176 = vst.msk [vmem:[%s388 + $0x8] sm:$0xff] %vm3174, %v3017
        %3177 = vst.msk [vmem:[%s388 + $0x10] sm:$0xff] %vm3174, %v3020
        %3178 = vst.msk [vmem:[%s388 + $0x18] sm:$0xff] %vm3174, %v3022
        %3179 = vst.msk [vmem:[%s388 + $0x20] sm:$0xff] %vm3174, %v3025
        %3180 = vst.msk [vmem:[%s388 + $0x28] sm:$0xff] %vm3174, %v3027
        %3181 = vst.msk [vmem:[%s388 + $0x30] sm:$0xff] %vm3174, %v3030
        %3182 = vst.msk [vmem:[%s388 + $0x38] sm:$0xff] %vm3174, %v3032
        %3183 = vst.msk [vmem:[%s388 + $0x40] sm:$0xff] %vm3174, %v3035
        %3184 = vst.msk [vmem:[%s388 + $0x48] sm:$0xff] %vm3174, %v3037
        %3185 = vst.msk [vmem:[%s388 + $0x50] sm:$0xff] %vm3174, %v3040
        %3186 = vst.msk [vmem:[%s388 + $0x58] sm:$0xff] %vm3174, %v3042
        %3187 = vst.msk [vmem:[%s388 + $0x60] sm:$0xff] %vm3174, %v3045
        %3188 = vst.msk [vmem:[%s388 + $0x68] sm:$0xff] %vm3174, %v3047
        %3189 = vst.msk [vmem:[%s388 + $0x70] sm:$0xff] %vm3174, %v3050
        %3190 = vst.msk [vmem:[%s388 + $0x78] sm:$0xff] %vm3174, %v3052
        %3191 = vst.msk [vmem:[%s388 + $0x80] sm:$0xff] %vm3174, %v3055
        %3192 = vst.msk [vmem:[%s388 + $0x88] sm:$0xff] %vm3174, %v3057
        %3193 = vst.msk [vmem:[%s388 + $0x90] sm:$0xff] %vm3174, %v3060
        %3194 = vst.msk [vmem:[%s388 + $0x98] sm:$0xff] %vm3174, %v3062
        %3195 = vst.msk [vmem:[%s388 + $0xa0] sm:$0xff] %vm3174, %v3065
        %3196 = vst.msk [vmem:[%s388 + $0xa8] sm:$0xff] %vm3174, %v3067
        %3197 = vst.msk [vmem:[%s388 + $0xb0] sm:$0xff] %vm3174, %v3070
        %3198 = vst.msk [vmem:[%s388 + $0xb8] sm:$0xff] %vm3174, %v3072
        %3199 = vst.msk [vmem:[%s388 + $0xc0] sm:$0xff] %vm3174, %v3075
        %3200 = vst.msk [vmem:[%s388 + $0xc8] sm:$0xff] %vm3174, %v3077
        %3201 = vst.msk [vmem:[%s388 + $0xd0] sm:$0xff] %vm3174, %v3080
        %3202 = vst.msk [vmem:[%s388 + $0xd8] sm:$0xff] %vm3174, %v3082
        %3203 = vst.msk [vmem:[%s388 + $0xe0] sm:$0xff] %vm3174, %v3085
        %3204 = vst.msk [vmem:[%s388 + $0xe8] sm:$0xff] %vm3174, %v3087
        %3205 = vst.msk [vmem:[%s388 + $0xf0] sm:$0xff] %vm3174, %v3090
        %3206 = vst.msk [vmem:[%s388 + $0xf8] sm:$0xff] %vm3174, %v3092
        %3207 = vst.msk [vmem:[%s388 + $0x100] sm:$0xff] %vm3174, %v3095
        %3208 = vst.msk [vmem:[%s388 + $0x108] sm:$0xff] %vm3174, %v3097
        %3209 = vst.msk [vmem:[%s388 + $0x110] sm:$0xff] %vm3174, %v3100
        %3210 = vst.msk [vmem:[%s388 + $0x118] sm:$0xff] %vm3174, %v3102
        %3211 = vst.msk [vmem:[%s388 + $0x120] sm:$0xff] %vm3174, %v3105
        %3212 = vst.msk [vmem:[%s388 + $0x128] sm:$0xff] %vm3174, %v3107
        %3213 = vst.msk [vmem:[%s388 + $0x130] sm:$0xff] %vm3174, %v3110
        %3214 = vst.msk [vmem:[%s388 + $0x138] sm:$0xff] %vm3174, %v3112
        %3215 = vst.msk [vmem:[%s388 + $0x140] sm:$0xff] %vm3174, %v3115
        %3216 = vst.msk [vmem:[%s388 + $0x148] sm:$0xff] %vm3174, %v3117
        %3217 = vst.msk [vmem:[%s388 + $0x150] sm:$0xff] %vm3174, %v3120
        %3218 = vst.msk [vmem:[%s388 + $0x158] sm:$0xff] %vm3174, %v3122
        %3219 = vst.msk [vmem:[%s388 + $0x160] sm:$0xff] %vm3174, %v3125
        %3220 = vst.msk [vmem:[%s388 + $0x168] sm:$0xff] %vm3174, %v3127
        %3221 = vst.msk [vmem:[%s388 + $0x170] sm:$0xff] %vm3174, %v3130
        %3222 = vst.msk [vmem:[%s388 + $0x178] sm:$0xff] %vm3174, %v3132
        %3223 = vst.msk [vmem:[%s388 + $0x180] sm:$0xff] %vm3174, %v3135
        %3224 = vst.msk [vmem:[%s388 + $0x188] sm:$0xff] %vm3174, %v3137
        %3225 = vst.msk [vmem:[%s388 + $0x190] sm:$0xff] %vm3174, %v3140
        %3226 = vst.msk [vmem:[%s388 + $0x198] sm:$0xff] %vm3174, %v3142
        %3227 = vst.msk [vmem:[%s388 + $0x1a0] sm:$0xff] %vm3174, %v3145
        %3228 = vst.msk [vmem:[%s388 + $0x1a8] sm:$0xff] %vm3174, %v3147
        %3229 = vst.msk [vmem:[%s388 + $0x1b0] sm:$0xff] %vm3174, %v3150
        %3230 = vst.msk [vmem:[%s388 + $0x1b8] sm:$0xff] %vm3174, %v3152
        %3231 = vst.msk [vmem:[%s388 + $0x1c0] sm:$0xff] %vm3174, %v3155
        %3232 = vst.msk [vmem:[%s388 + $0x1c8] sm:$0xff] %vm3174, %v3157
        %3233 = vst.msk [vmem:[%s388 + $0x1d0] sm:$0xff] %vm3174, %v3160
        %3234 = vst.msk [vmem:[%s388 + $0x1d8] sm:$0xff] %vm3174, %v3162
        %3235 = vst.msk [vmem:[%s388 + $0x1e0] sm:$0xff] %vm3174, %v3165
        %3236 = vst.msk [vmem:[%s388 + $0x1e8] sm:$0xff] %vm3174, %v3167
        %3237 = vst.msk [vmem:[%s388 + $0x1f0] sm:$0xff] %vm3174, %v3170
        %3238 = vst.msk [vmem:[%s388 + $0x1f8] sm:$0xff] %vm3174, %v3172
        %s3239 = sand.u32 %s266, 1
        %s3240 = sand.u32 %s266, 1
        %s3241 = smul.addr %s3240, 512
        %s3242 = scalar_lea.vmem [#allocation2], %s3241
        // Predicated region
        $region65: #{tpu_custom_call.1} parent=63 // pred_check
          %p3243 = pneg %p276
        $region66: #{tpu_custom_call.1} parent=63 // pred_check_branch
          %3245 = sbr.rel (%p3243) target = $region68
        $region67: #{tpu_custom_call.1} parent=63 // pred_region
          %s3246 = smul.u32 64, %s22
          %s3247 = ssub.s32 125, %s3246
          %p3248 = scmp.lt.s32.totalorder %s3247, 64
          %s3249 = scalar_select %p3248, %s3247, 64
          %s3250 = smul.u32 8, %s3249
          %p3251 = scmp.ne.s32.totalorder 0, %s3250
          %s3252 = smul.addr %s3246, 8
          %s3253 = scalar_lea.vmem %s11, %s3252
          // Predicated region
          $region69: #{tpu_custom_call.1} parent=67 // pred_check
            %p3254 = pneg %p3251
          $region70: #{tpu_custom_call.1} parent=67 // pred_check_branch
            %3256 = sbr.rel (%p3254) target = $region72
          $region71: #{tpu_custom_call.1} parent=67 // pred_region
            // Predicated region
            $region73: #{tpu_custom_call.1} parent=71 // pred_check
              _
            $region74: #{tpu_custom_call.1} parent=71 // pred_check_branch
              %3258 = sbr.rel (0) target = $region76
            $region75: #{tpu_custom_call.1} parent=71 // pred_region
              // Predicated region
              $region95: #{tpu_custom_call.1} parent=75 // pred_check
                _
              $region96: #{tpu_custom_call.1} parent=75 // pred_check_branch
                %3370 = sbr.rel (0) target = $region98
              $region97: #{tpu_custom_call.1} parent=75 // pred_region
                %s3371 = sshrl.u32 %s3249, 5
                // While loop
                $region99: #{tpu_custom_call.1} parent=97 // loop_pre_header
                  _
                $region100: #{tpu_custom_call.1} parent=97 // loop_header
                  %s3373 = sphi 0, %s3375
                  %p3374 = scmp.ge.s32.totalorder %s3373, %s3371
                  %s3378 = sphi 0, %s3447
                  %s3379 = sphi %s3242, %s3450
                  %s3380 = sphi %s3253, %s3451
                $region101: #{tpu_custom_call.1} parent=97 // loop_header_branch
                  %3377 = sbr.rel (%p3374) target = $region105
                $region102: #{tpu_custom_call.1} parent=97 // loop_body
                  %v3381 = vld [vmem:[%s3379] sm:$0xff]
                  %3382 = vst [vmem:[%s3380] sm:$0xff] %v3381
                  %v3383 = vld [vmem:[%s3379 + $0x8] sm:$0xff]
                  %3384 = vst [vmem:[%s3380 + $0x8] sm:$0xff] %v3383
                  %v3385 = vld [vmem:[%s3379 + $0x10] sm:$0xff]
                  %3386 = vst [vmem:[%s3380 + $0x10] sm:$0xff] %v3385
                  %v3387 = vld [vmem:[%s3379 + $0x18] sm:$0xff]
                  %3388 = vst [vmem:[%s3380 + $0x18] sm:$0xff] %v3387
                  %v3389 = vld [vmem:[%s3379 + $0x20] sm:$0xff]
                  %3390 = vst [vmem:[%s3380 + $0x20] sm:$0xff] %v3389
                  %v3391 = vld [vmem:[%s3379 + $0x28] sm:$0xff]
                  %3392 = vst [vmem:[%s3380 + $0x28] sm:$0xff] %v3391
                  %v3393 = vld [vmem:[%s3379 + $0x30] sm:$0xff]
                  %3394 = vst [vmem:[%s3380 + $0x30] sm:$0xff] %v3393
                  %v3395 = vld [vmem:[%s3379 + $0x38] sm:$0xff]
                  %3396 = vst [vmem:[%s3380 + $0x38] sm:$0xff] %v3395
                  %v3397 = vld [vmem:[%s3379 + $0x40] sm:$0xff]
                  %3398 = vst [vmem:[%s3380 + $0x40] sm:$0xff] %v3397
                  %v3399 = vld [vmem:[%s3379 + $0x48] sm:$0xff]
                  %3400 = vst [vmem:[%s3380 + $0x48] sm:$0xff] %v3399
                  %v3401 = vld [vmem:[%s3379 + $0x50] sm:$0xff]
                  %3402 = vst [vmem:[%s3380 + $0x50] sm:$0xff] %v3401
                  %v3403 = vld [vmem:[%s3379 + $0x58] sm:$0xff]
                  %3404 = vst [vmem:[%s3380 + $0x58] sm:$0xff] %v3403
                  %v3405 = vld [vmem:[%s3379 + $0x60] sm:$0xff]
                  %3406 = vst [vmem:[%s3380 + $0x60] sm:$0xff] %v3405
                  %v3407 = vld [vmem:[%s3379 + $0x68] sm:$0xff]
                  %3408 = vst [vmem:[%s3380 + $0x68] sm:$0xff] %v3407
                  %v3409 = vld [vmem:[%s3379 + $0x70] sm:$0xff]
                  %3410 = vst [vmem:[%s3380 + $0x70] sm:$0xff] %v3409
                  %v3411 = vld [vmem:[%s3379 + $0x78] sm:$0xff]
                  %3412 = vst [vmem:[%s3380 + $0x78] sm:$0xff] %v3411
                  %v3413 = vld [vmem:[%s3379 + $0x80] sm:$0xff]
                  %3414 = vst [vmem:[%s3380 + $0x80] sm:$0xff] %v3413
                  %v3415 = vld [vmem:[%s3379 + $0x88] sm:$0xff]
                  %3416 = vst [vmem:[%s3380 + $0x88] sm:$0xff] %v3415
                  %v3417 = vld [vmem:[%s3379 + $0x90] sm:$0xff]
                  %3418 = vst [vmem:[%s3380 + $0x90] sm:$0xff] %v3417
                  %v3419 = vld [vmem:[%s3379 + $0x98] sm:$0xff]
                  %3420 = vst [vmem:[%s3380 + $0x98] sm:$0xff] %v3419
                  %v3421 = vld [vmem:[%s3379 + $0xa0] sm:$0xff]
                  %3422 = vst [vmem:[%s3380 + $0xa0] sm:$0xff] %v3421
                  %v3423 = vld [vmem:[%s3379 + $0xa8] sm:$0xff]
                  %3424 = vst [vmem:[%s3380 + $0xa8] sm:$0xff] %v3423
                  %v3425 = vld [vmem:[%s3379 + $0xb0] sm:$0xff]
                  %3426 = vst [vmem:[%s3380 + $0xb0] sm:$0xff] %v3425
                  %v3427 = vld [vmem:[%s3379 + $0xb8] sm:$0xff]
                  %3428 = vst [vmem:[%s3380 + $0xb8] sm:$0xff] %v3427
                  %v3429 = vld [vmem:[%s3379 + $0xc0] sm:$0xff]
                  %3430 = vst [vmem:[%s3380 + $0xc0] sm:$0xff] %v3429
                  %v3431 = vld [vmem:[%s3379 + $0xc8] sm:$0xff]
                  %3432 = vst [vmem:[%s3380 + $0xc8] sm:$0xff] %v3431
                  %v3433 = vld [vmem:[%s3379 + $0xd0] sm:$0xff]
                  %3434 = vst [vmem:[%s3380 + $0xd0] sm:$0xff] %v3433
                  %v3435 = vld [vmem:[%s3379 + $0xd8] sm:$0xff]
                  %3436 = vst [vmem:[%s3380 + $0xd8] sm:$0xff] %v3435
                  %v3437 = vld [vmem:[%s3379 + $0xe0] sm:$0xff]
                  %3438 = vst [vmem:[%s3380 + $0xe0] sm:$0xff] %v3437
                  %v3439 = vld [vmem:[%s3379 + $0xe8] sm:$0xff]
                  %3440 = vst [vmem:[%s3380 + $0xe8] sm:$0xff] %v3439
                  %v3441 = vld [vmem:[%s3379 + $0xf0] sm:$0xff]
                  %3442 = vst [vmem:[%s3380 + $0xf0] sm:$0xff] %v3441
                  %v3443 = vld [vmem:[%s3379 + $0xf8] sm:$0xff]
                  %3444 = vst [vmem:[%s3380 + $0xf8] sm:$0xff] %v3443
                  %s3445 = sadd.s32 1, %s3378
                  %p3446 = scmp.ge.s32.totalorder %s3445, %s3371
                  %s3447 = scalar_select %p3446, 0, %s3445
                  %s3448 = smul.u32 %s3447, 256
                  %s3449 = smul.u32 %s3447, 256
                  %s3450 = scalar_lea.vmem %s3242, %s3448 [#allocation2]
                  %s3451 = scalar_lea.vmem %s3253, %s3449
                $region103: #{tpu_custom_call.1} parent=97 // loop_footer
                  %s3375 = sadd.s32 %s3373, 1
                $region104: #{tpu_custom_call.1} parent=97 // loop_footer_branch
                  %3372 = sbr.rel target = $region100
                $region105: #{tpu_custom_call.1} parent=97 // loop_exit
                  _
                %s3452 = sshrl.u32 %s3249, 5
                %s3453 = sand.u32 %s3249, 31
                %s3454 = smul.u32 %s3452, 32
                %s3455 = smul.u32 8, %s3454
                %s3456 = scalar_lea.vmem %s3242, %s3455 [#allocation2]
                %s3457 = smul.u32 8, %s3454
                %s3458 = scalar_lea.vmem %s3253, %s3457
                // While loop
                $region106: #{tpu_custom_call.1} parent=97 // loop_pre_header
                  _
                $region107: #{tpu_custom_call.1} parent=97 // loop_header
                  %s3460 = sphi 0, %s3462
                  %p3461 = scmp.ge.s32.totalorder %s3460, %s3453
                  %s3465 = sphi 0, %s3472
                  %s3466 = sphi %s3456, %s3475
                  %s3467 = sphi %s3458, %s3476
                $region108: #{tpu_custom_call.1} parent=97 // loop_header_branch
                  %3464 = sbr.rel (%p3461) target = $region112
                $region109: #{tpu_custom_call.1} parent=97 // loop_body
                  %v3468 = vld [vmem:[%s3466] sm:$0xff]
                  %3469 = vst [vmem:[%s3467] sm:$0xff] %v3468
                  %s3470 = sadd.s32 1, %s3465
                  %p3471 = scmp.ge.s32.totalorder %s3470, %s3453
                  %s3472 = scalar_select %p3471, 0, %s3470
                  %s3473 = smul.u32 %s3472, 8
                  %s3474 = smul.u32 %s3472, 8
                  %s3475 = scalar_lea.vmem %s3456, %s3473 [#allocation2]
                  %s3476 = scalar_lea.vmem %s3458, %s3474
                $region110: #{tpu_custom_call.1} parent=97 // loop_footer
                  %s3462 = sadd.s32 %s3460, 1
                $region111: #{tpu_custom_call.1} parent=97 // loop_footer_branch
                  %3459 = sbr.rel target = $region107
                $region112: #{tpu_custom_call.1} parent=97 // loop_exit
                  _
              $region98: #{tpu_custom_call.1} parent=75 // pred_fallthru
                _
              // Predicated region
              $region113: #{tpu_custom_call.1} parent=75 // pred_check
                _
              $region114: #{tpu_custom_call.1} parent=75 // pred_check_branch
                %3478 = sbr.rel target = $region116
              $region115: #{tpu_custom_call.1} parent=75 // pred_region
                _
              $region116: #{tpu_custom_call.1} parent=75 // pred_fallthru
                _
            $region76: #{tpu_custom_call.1} parent=71 // pred_fallthru
              _
            // Predicated region
            $region77: #{tpu_custom_call.1} parent=71 // pred_check
              _
            $region78: #{tpu_custom_call.1} parent=71 // pred_check_branch
              %3260 = sbr.rel target = $region80
            $region79: #{tpu_custom_call.1} parent=71 // pred_region
              %s3262 = ssub.s32 256, 1
              %s3263 = sshrl.u32 %s3249, 5
              // While loop
              $region81: #{tpu_custom_call.1} parent=79 // loop_pre_header
                _
              $region82: #{tpu_custom_call.1} parent=79 // loop_header
                %s3265 = sphi 0, %s3267
                %p3266 = scmp.ge.s32.totalorder %s3265, %s3263
                %s3270 = sphi 0, %s3339
                %s3271 = sphi %s3242, %s3342
                %s3272 = sphi %s3253, %s3343
              $region83: #{tpu_custom_call.1} parent=79 // loop_header_branch
                %3269 = sbr.rel (%p3266) target = $region87
              $region84: #{tpu_custom_call.1} parent=79 // loop_body
                %v3273 = vld [vmem:[%s3271] sm:%s3262]
                %3274 = vst [vmem:[%s3272] sm:%s3262] %v3273
                %v3275 = vld [vmem:[%s3271 + $0x8] sm:%s3262]
                %3276 = vst [vmem:[%s3272 + $0x8] sm:%s3262] %v3275
                %v3277 = vld [vmem:[%s3271 + $0x10] sm:%s3262]
                %3278 = vst [vmem:[%s3272 + $0x10] sm:%s3262] %v3277
                %v3279 = vld [vmem:[%s3271 + $0x18] sm:%s3262]
                %3280 = vst [vmem:[%s3272 + $0x18] sm:%s3262] %v3279
                %v3281 = vld [vmem:[%s3271 + $0x20] sm:%s3262]
                %3282 = vst [vmem:[%s3272 + $0x20] sm:%s3262] %v3281
                %v3283 = vld [vmem:[%s3271 + $0x28] sm:%s3262]
                %3284 = vst [vmem:[%s3272 + $0x28] sm:%s3262] %v3283
                %v3285 = vld [vmem:[%s3271 + $0x30] sm:%s3262]
                %3286 = vst [vmem:[%s3272 + $0x30] sm:%s3262] %v3285
                %v3287 = vld [vmem:[%s3271 + $0x38] sm:%s3262]
                %3288 = vst [vmem:[%s3272 + $0x38] sm:%s3262] %v3287
                %v3289 = vld [vmem:[%s3271 + $0x40] sm:%s3262]
                %3290 = vst [vmem:[%s3272 + $0x40] sm:%s3262] %v3289
                %v3291 = vld [vmem:[%s3271 + $0x48] sm:%s3262]
                %3292 = vst [vmem:[%s3272 + $0x48] sm:%s3262] %v3291
                %v3293 = vld [vmem:[%s3271 + $0x50] sm:%s3262]
                %3294 = vst [vmem:[%s3272 + $0x50] sm:%s3262] %v3293
                %v3295 = vld [vmem:[%s3271 + $0x58] sm:%s3262]
                %3296 = vst [vmem:[%s3272 + $0x58] sm:%s3262] %v3295
                %v3297 = vld [vmem:[%s3271 + $0x60] sm:%s3262]
                %3298 = vst [vmem:[%s3272 + $0x60] sm:%s3262] %v3297
                %v3299 = vld [vmem:[%s3271 + $0x68] sm:%s3262]
                %3300 = vst [vmem:[%s3272 + $0x68] sm:%s3262] %v3299
                %v3301 = vld [vmem:[%s3271 + $0x70] sm:%s3262]
                %3302 = vst [vmem:[%s3272 + $0x70] sm:%s3262] %v3301
                %v3303 = vld [vmem:[%s3271 + $0x78] sm:%s3262]
                %3304 = vst [vmem:[%s3272 + $0x78] sm:%s3262] %v3303
                %v3305 = vld [vmem:[%s3271 + $0x80] sm:%s3262]
                %3306 = vst [vmem:[%s3272 + $0x80] sm:%s3262] %v3305
                %v3307 = vld [vmem:[%s3271 + $0x88] sm:%s3262]
                %3308 = vst [vmem:[%s3272 + $0x88] sm:%s3262] %v3307
                %v3309 = vld [vmem:[%s3271 + $0x90] sm:%s3262]
                %3310 = vst [vmem:[%s3272 + $0x90] sm:%s3262] %v3309
                %v3311 = vld [vmem:[%s3271 + $0x98] sm:%s3262]
                %3312 = vst [vmem:[%s3272 + $0x98] sm:%s3262] %v3311
                %v3313 = vld [vmem:[%s3271 + $0xa0] sm:%s3262]
                %3314 = vst [vmem:[%s3272 + $0xa0] sm:%s3262] %v3313
                %v3315 = vld [vmem:[%s3271 + $0xa8] sm:%s3262]
                %3316 = vst [vmem:[%s3272 + $0xa8] sm:%s3262] %v3315
                %v3317 = vld [vmem:[%s3271 + $0xb0] sm:%s3262]
                %3318 = vst [vmem:[%s3272 + $0xb0] sm:%s3262] %v3317
                %v3319 = vld [vmem:[%s3271 + $0xb8] sm:%s3262]
                %3320 = vst [vmem:[%s3272 + $0xb8] sm:%s3262] %v3319
                %v3321 = vld [vmem:[%s3271 + $0xc0] sm:%s3262]
                %3322 = vst [vmem:[%s3272 + $0xc0] sm:%s3262] %v3321
                %v3323 = vld [vmem:[%s3271 + $0xc8] sm:%s3262]
                %3324 = vst [vmem:[%s3272 + $0xc8] sm:%s3262] %v3323
                %v3325 = vld [vmem:[%s3271 + $0xd0] sm:%s3262]
                %3326 = vst [vmem:[%s3272 + $0xd0] sm:%s3262] %v3325
                %v3327 = vld [vmem:[%s3271 + $0xd8] sm:%s3262]
                %3328 = vst [vmem:[%s3272 + $0xd8] sm:%s3262] %v3327
                %v3329 = vld [vmem:[%s3271 + $0xe0] sm:%s3262]
                %3330 = vst [vmem:[%s3272 + $0xe0] sm:%s3262] %v3329
                %v3331 = vld [vmem:[%s3271 + $0xe8] sm:%s3262]
                %3332 = vst [vmem:[%s3272 + $0xe8] sm:%s3262] %v3331
                %v3333 = vld [vmem:[%s3271 + $0xf0] sm:%s3262]
                %3334 = vst [vmem:[%s3272 + $0xf0] sm:%s3262] %v3333
                %v3335 = vld [vmem:[%s3271 + $0xf8] sm:%s3262]
                %3336 = vst [vmem:[%s3272 + $0xf8] sm:%s3262] %v3335
                %s3337 = sadd.s32 1, %s3270
                %p3338 = scmp.ge.s32.totalorder %s3337, %s3263
                %s3339 = scalar_select %p3338, 0, %s3337
                %s3340 = smul.u32 %s3339, 256
                %s3341 = smul.u32 %s3339, 256
                %s3342 = scalar_lea.vmem %s3242, %s3340 [#allocation2]
                %s3343 = scalar_lea.vmem %s3253, %s3341
              $region85: #{tpu_custom_call.1} parent=79 // loop_footer
                %s3267 = sadd.s32 %s3265, 1
              $region86: #{tpu_custom_call.1} parent=79 // loop_footer_branch
                %3264 = sbr.rel target = $region82
              $region87: #{tpu_custom_call.1} parent=79 // loop_exit
                _
              %s3344 = sshrl.u32 %s3249, 5
              %s3345 = sand.u32 %s3249, 31
              %s3346 = smul.u32 %s3344, 32
              %s3347 = smul.u32 8, %s3346
              %s3348 = scalar_lea.vmem %s3242, %s3347 [#allocation2]
              %s3349 = smul.u32 8, %s3346
              %s3350 = scalar_lea.vmem %s3253, %s3349
              // While loop
              $region88: #{tpu_custom_call.1} parent=79 // loop_pre_header
                _
              $region89: #{tpu_custom_call.1} parent=79 // loop_header
                %s3352 = sphi 0, %s3354
                %p3353 = scmp.ge.s32.totalorder %s3352, %s3345
                %s3357 = sphi 0, %s3364
                %s3358 = sphi %s3348, %s3367
                %s3359 = sphi %s3350, %s3368
              $region90: #{tpu_custom_call.1} parent=79 // loop_header_branch
                %3356 = sbr.rel (%p3353) target = $region94
              $region91: #{tpu_custom_call.1} parent=79 // loop_body
                %v3360 = vld [vmem:[%s3358] sm:%s3262]
                %3361 = vst [vmem:[%s3359] sm:%s3262] %v3360
                %s3362 = sadd.s32 1, %s3357
                %p3363 = scmp.ge.s32.totalorder %s3362, %s3345
                %s3364 = scalar_select %p3363, 0, %s3362
                %s3365 = smul.u32 %s3364, 8
                %s3366 = smul.u32 %s3364, 8
                %s3367 = scalar_lea.vmem %s3348, %s3365 [#allocation2]
                %s3368 = scalar_lea.vmem %s3350, %s3366
              $region92: #{tpu_custom_call.1} parent=79 // loop_footer
                %s3354 = sadd.s32 %s3352, 1
              $region93: #{tpu_custom_call.1} parent=79 // loop_footer_branch
                %3351 = sbr.rel target = $region89
              $region94: #{tpu_custom_call.1} parent=79 // loop_exit
                _
            $region80: #{tpu_custom_call.1} parent=71 // pred_fallthru
              _
          $region72: #{tpu_custom_call.1} parent=67 // pred_fallthru
            _
          %3479 = vnop
        $region68: #{tpu_custom_call.1} parent=63 // pred_fallthru
          _
      $region64: #{tpu_custom_call.1} parent=5 // pred_fallthru
        _
      %p3480 = scmp.le.s32.totalorder 2, %s17
      // Predicated region
      $region117: #{tpu_custom_call.1} parent=5 // pred_check
        %p3481 = pneg %p3480
      $region118: #{tpu_custom_call.1} parent=5 // pred_check_branch
        %3483 = sbr.rel (%p3481) target = $region120
      $region119: #{tpu_custom_call.1} parent=5 // pred_region
        %s3484 = ssub.s32 %s17, 2
        // Predicated region
        $region121: #{tpu_custom_call.1} parent=119 // pred_check
          %p3485 = pneg %p282
        $region122: #{tpu_custom_call.1} parent=119 // pred_check_branch
          %3487 = sbr.rel (%p3485) target = $region124
        $region123: #{tpu_custom_call.1} parent=119 // pred_region
          %s3488 = sand.u32 %s267, 1
          %s3489 = sand.u32 %s267, 1
          %s3490 = smul.addr %s3489, 512
          %s3491 = scalar_lea.vmem [#allocation2], %s3490
        $region124: #{tpu_custom_call.1} parent=119 // pred_fallthru
          _
      $region120: #{tpu_custom_call.1} parent=5 // pred_fallthru
        _
    $region6: #{tpu_custom_call.1} parent=1 // loop_footer
      %s21 = sadd.s32 1, %s17
    $region7: #{tpu_custom_call.1} parent=1 // loop_footer_branch
      %16 = sbr.rel target = $region3
    $region8: #{tpu_custom_call.1} parent=1 // loop_exit
      _

</llo_original>
